<compile_context>
chip_gen: v6e
topology: v6e:2x2x1
jax: 0.10.0
libtpu: 0.0.40
codegen_flags: <defaults>
</compile_context>

<pallas_src>
import math
import functools

import jax
import jax.numpy as jnp
from jax.experimental import pallas as pl
from jax.experimental.pallas import tpu as pltpu


# ----------------------------------------------------------------------------
# Kernel (one batch per grid step)
# ----------------------------------------------------------------------------
def _layernorm(x, gamma, beta, eps=1e-5):
    mean = jnp.mean(x, axis=-1, keepdims=True)
    var = jnp.mean((x - mean) ** 2, axis=-1, keepdims=True)
    return (x - mean) * jax.lax.rsqrt(var + eps) * gamma + beta


def transformer_kernel(
    x_ref, y_ref, base_ref,
    wf_ref, wqkv_ref, bqkv_ref, wo_ref, vecs_ref,
    w1_ref, bm1_ref, w2_ref, wout_ref, bout_ref,
    mask_ref, segsum_ref,
    out_ref,
    *, n_heads,
):
    D = wo_ref.shape[0]

    # Packed (1, D) vectors: [wt, bo, g1, be1, g2, be2, bm2]
    vecs = vecs_ref[...]
    wt, bo = vecs[0:1, :], vecs[1:2, :]
    g1, be1 = vecs[2:3, :], vecs[3:4, :]
    g2, be2 = vecs[4:5, :], vecs[5:6, :]
    bm2 = vecs[6:7, :]

    x = x_ref[...]                    # (S, F)
    y = y_ref[...]                    # (S, 1)
    y_clean = jnp.where(jnp.isnan(y), jnp.zeros_like(y), y)

    # Encoders: feature projection + broadcast target encoder + folded
    # (bf + bt + positional encoding) constant (shared across batches).
    h = (jnp.dot(x, wf_ref[...], preferred_element_type=jnp.float32)
         + y_clean * wt
         + base_ref[...])             # (S, D)

    # Fused QKV projection (1/sqrt(head_dim) already folded into the Q block).
    qkv = jnp.dot(h, wqkv_ref[...], preferred_element_type=jnp.float32) + bqkv_ref[...]
    q = qkv[:, :D]                    # (S, D)
    k = qkv[:, D:2 * D]               # (S, D)
    v = qkv[:, 2 * D:3 * D]           # (S, D)

    # ---- Multi-head attention via block-diagonal head packing --------------
    # mask (H*S, D): row block h keeps only head-h columns.
    mask = mask_ref[...]
    k_rep = jnp.concatenate([k] * n_heads, axis=0) * mask   # (H*S, D)
    v_rep = jnp.concatenate([v] * n_heads, axis=0) * mask   # (H*S, D)

    # scores[:, h*S + s] = <q_h[i], k_h[s]>  — one matmul for all heads,
    # contracting the last dims (no explicit K transpose).
    scores = jax.lax.dot_general(
        q, k_rep, (((1,), (1,)), ((), ())),
        preferred_element_type=jnp.float32)                  # (S, H*S)

    # Row max is constant within each head segment -> exact softmax shift.
    m = jnp.max(scores, axis=-1, keepdims=True)
    p = jnp.exp(scores - m)
    # Segmented per-head sums, broadcast back to (S, H*S) by one matmul with a
    # constant block-diagonal ones matrix.
    denom = jnp.dot(p, segsum_ref[...], preferred_element_type=jnp.float32)
    p = p / denom

    # ctx lands with heads already concatenated along lanes in head order.
    ctx = jnp.dot(p, v_rep, preferred_element_type=jnp.float32)          # (S, D)
    attn = jnp.dot(ctx, wo_ref[...], preferred_element_type=jnp.float32) + bo

    # Residual + LayerNorm 1
    h = _layernorm(h + attn, g1, be1)

    # MLP (Linear -> ReLU -> [Dropout no-op] -> Linear)
    mlp = jnp.dot(h, w1_ref[...], preferred_element_type=jnp.float32) + bm1_ref[...]
    mlp = jnp.maximum(mlp, 0.0)
    mlp = jnp.dot(mlp, w2_ref[...], preferred_element_type=jnp.float32) + bm2

    # Residual + LayerNorm 2
    h = _layernorm(h + mlp, g2, be2)

    # Output head on the full S-row block (lane-dense 128-wide store);
    # test rows are sliced in the wrapper.
    out_ref[...] = (
        jnp.dot(h, wout_ref[...], preferred_element_type=jnp.float32) + bout_ref[...]
    )


# ----------------------------------------------------------------------------
# Wrapper
# ----------------------------------------------------------------------------
def naive_transformer_forward(params, x_train, y_train, x_test, *, n_heads):
    B, train_len, F = x_train.shape
    test_len = x_test.shape[1]
    S = train_len + test_len
    D = params["wf"].shape[1]
    NB = params["wout"].shape[1]
    head_dim = D // n_heads
    scale = 1.0 / math.sqrt(head_dim)
    HS = n_heads * S

    # Flatten batch into the sublane axis; grid splits it back into S-row blocks.
    x = jnp.concatenate([x_train, x_test], axis=1).reshape(B * S, F)
    y_pad = jnp.full((B, test_len, 1), jnp.nan, dtype=x_test.dtype)
    y = jnp.concatenate([y_train, y_pad], axis=1).reshape(B * S, 1)

    # Host-side constant folding / weight packing.
    base = params["pos"][:S] + params["bf"] + params["bt"]            # (S, D), NOT tiled
    wqkv = jnp.concatenate(
        [params["wq"] * scale, params["wk"], params["wv"]], axis=1)   # (D, 3D)
    bqkv = jnp.concatenate(
        [params["bq"] * scale, params["bk"], params["bv"]], axis=1)   # (1, 3D)
    vecs = jnp.concatenate(
        [params["wt"], params["bo"], params["g1"], params["be1"],
         params["g2"], params["be2"], params["bm2"]], axis=0)         # (7, D)

    # Block-diagonal head-packing constants.
    head_of_row = jnp.repeat(jnp.arange(n_heads), S)                  # (H*S,)
    head_of_col = jnp.arange(D) // head_dim                           # (D,)
    mask = (head_of_row[:, None] == head_of_col[None, :]).astype(jnp.float32)    # (H*S, D)
    segsum = (head_of_row[:, None] == head_of_row[None, :]).astype(jnp.float32)  # (H*S, H*S)

    kernel = functools.partial(transformer_kernel, n_heads=n_heads)

    in_specs = [
        pl.BlockSpec((S, F), lambda b: (b, 0)),        # x        (per-batch block)
        pl.BlockSpec((S, 1), lambda b: (b, 0)),        # y        (per-batch block)
        pl.BlockSpec((S, D), lambda b: (0, 0)),        # base     (shared)
        pl.BlockSpec((F, D), lambda b: (0, 0)),        # wf
        pl.BlockSpec((D, 3 * D), lambda b: (0, 0)),    # wqkv
        pl.BlockSpec((1, 3 * D), lambda b: (0, 0)),    # bqkv
        pl.BlockSpec((D, D), lambda b: (0, 0)),        # wo
        pl.BlockSpec((7, D), lambda b: (0, 0)),        # packed (1,D) vectors
        pl.BlockSpec((D, 2 * D), lambda b: (0, 0)),    # w1
        pl.BlockSpec((1, 2 * D), lambda b: (0, 0)),    # bm1
        pl.BlockSpec((2 * D, D), lambda b: (0, 0)),    # w2
        pl.BlockSpec((D, NB), lambda b: (0, 0)),       # wout
        pl.BlockSpec((1, NB), lambda b: (0, 0)),       # bout
        pl.BlockSpec((HS, D), lambda b: (0, 0)),       # head mask
        pl.BlockSpec((HS, HS), lambda b: (0, 0)),      # segmented-sum matrix
    ]

    out_full = pl.pallas_call(
        kernel,
        out_shape=jax.ShapeDtypeStruct((B * S, NB), jnp.float32),
        grid=(B,),
        in_specs=in_specs,
        out_specs=pl.BlockSpec((S, NB), lambda b: (b, 0)),
        compiler_params=pltpu.CompilerParams(
            dimension_semantics=("parallel",)),
    )(x, y, base,
      params["wf"], wqkv, bqkv, params["wo"], vecs,
      params["w1"], params["bm1"], params["w2"], params["wout"], params["bout"],
      mask, segsum)

    return out_full.reshape(B, S, NB)[:, train_len:]


# ----------------------------------------------------------------------------
# Pure-JAX reference (for correctness check)
# ----------------------------------------------------------------------------
def reference_forward(params, x_train, y_train, x_test, *, n_heads):
    B, train_len, F = x_train.shape
    test_len = x_test.shape[1]
    S = train_len + test_len
    D = params["wf"].shape[1]
    head_dim = D // n_heads

    x = jnp.concatenate([x_train, x_test], axis=1)
    y_pad = jnp.full((B, test_len, 1), jnp.nan, dtype=x_test.dtype)
    y = jnp.concatenate([y_train, y_pad], axis=1)

    x_enc = x @ params["wf"] + params["bf"]
    y_enc = jnp.where(jnp.isnan(y), 0.0, y) @ params["wt"] + params["bt"]
    h = x_enc + y_enc + params["pos"][:S][None]

    q = h @ params["wq"] + params["bq"]
    k = h @ params["wk"] + params["bk"]
    v = h @ params["wv"] + params["bv"]
    q = q.reshape(B, S, n_heads, head_dim).transpose(0, 2, 1, 3)
    k = k.reshape(B, S, n_heads, head_dim).transpose(0, 2, 1, 3)
    v = v.reshape(B, S, n_heads, head_dim).transpose(0, 2, 1, 3)
    scores = jnp.einsum("bhqd,bhkd->bhqk", q, k) / math.sqrt(head_dim)
    p = jax.nn.softmax(scores, axis=-1)
    attn = jnp.einsum("bhqk,bhkd->bhqd", p, v).transpose(0, 2, 1, 3).reshape(B, S, D)
    attn = attn @ params["wo"] + params["bo"]

    def ln(z, g, b):
        mu = z.mean(-1, keepdims=True)
        var = ((z - mu) ** 2).mean(-1, keepdims=True)
        return (z - mu) / jnp.sqrt(var + 1e-5) * g + b

    h = ln(h + attn, params["g1"], params["be1"])
    m = jnp.maximum(h @ params["w1"] + params["bm1"], 0.0) @ params["w2"] + params["bm2"]
    h = ln(h + m, params["g2"], params["be2"])
    return h[:, train_len:] @ params["wout"] + params["bout"]


# ----------------------------------------------------------------------------
# Main
# ----------------------------------------------------------------------------
if __name__ == "__main__":
    # Highest matmul precision for both kernel and reference so the f32
    # comparison is tight on the MXU.
    jax.config.update("jax_default_matmul_precision", "highest")

    # Small, forward-consistent shapes
    B = 2
    num_features = 4
    d_model = 32
    n_heads = 4
    train_len, test_len = 6, 2
    max_seq_len = 16
    n_buckets = 128

    key = jax.random.PRNGKey(0)
    ks = iter(jax.random.split(key, 32))

    def w(shape, scale=0.02):
        return jax.random.normal(next(ks), shape, dtype=jnp.float32) * scale

    params = {
        # weights stored as (in, out), i.e. PyTorch Linear weight transposed
        "wf": w((num_features, d_model)), "bf": w((1, d_model)),
        "wt": w((1, d_model)),            "bt": w((1, d_model)),
        "wq": w((d_model, d_model)),      "bq": w((1, d_model)),
        "wk": w((d_model, d_model)),      "bk": w((1, d_model)),
        "wv": w((d_model, d_model)),      "bv": w((1, d_model)),
        "wo": w((d_model, d_model)),      "bo": w((1, d_model)),
        "g1": jnp.ones((1, d_model), jnp.float32),
        "be1": jnp.zeros((1, d_model), jnp.float32),
        "g2": jnp.ones((1, d_model), jnp.float32),
        "be2": jnp.zeros((1, d_model), jnp.float32),
        "w1": w((d_model, 2 * d_model)),  "bm1": w((1, 2 * d_model)),
        "w2": w((2 * d_model, d_model)),  "bm2": w((1, d_model)),
        "wout": w((d_model, n_buckets)),  "bout": w((1, n_buckets)),
        "pos": jax.random.normal(next(ks), (max_seq_len, d_model), jnp.float32) * 0.1,
    }

    x_train = jax.random.normal(next(ks), (B, train_len, num_features), jnp.float32)
    y_train = jax.random.normal(next(ks), (B, train_len, 1), jnp.float32)
    x_test = jax.random.normal(next(ks), (B, test_len, num_features), jnp.float32)

    # TODO(synk): FullSupportBarDistribution loss / predict_mean not part of the
    # forward hot path; only the logits computation is implemented.
    logits = naive_transformer_forward(params, x_train, y_train, x_test, n_heads=n_heads)
    logits = jax.block_until_ready(logits)

    ref = reference_forward(params, x_train, y_train, x_test, n_heads=n_heads)
    assert logits.shape == (B, test_len, n_buckets)
    assert jnp.allclose(logits, ref, atol=1e-3, rtol=1e-3), "mismatch vs reference"

    print("KERNEL_OK")
</pallas_src>

<mosaic_0001>
module attributes {stable_mosaic.version = 11 : i64} {
  func.func @transformer_kernel(%arg0: i32, %arg1: memref<8x4xf32, #tpu.memory_space<vmem>>, %arg2: memref<8x1xf32, #tpu.memory_space<vmem>>, %arg3: memref<8x32xf32, #tpu.memory_space<vmem>>, %arg4: memref<4x32xf32, #tpu.memory_space<vmem>>, %arg5: memref<32x96xf32, #tpu.memory_space<vmem>>, %arg6: memref<1x96xf32, #tpu.memory_space<vmem>>, %arg7: memref<32x32xf32, #tpu.memory_space<vmem>>, %arg8: memref<7x32xf32, #tpu.memory_space<vmem>>, %arg9: memref<32x64xf32, #tpu.memory_space<vmem>>, %arg10: memref<1x64xf32, #tpu.memory_space<vmem>>, %arg11: memref<64x32xf32, #tpu.memory_space<vmem>>, %arg12: memref<32x128xf32, #tpu.memory_space<vmem>>, %arg13: memref<1x128xf32, #tpu.memory_space<vmem>>, %arg14: memref<32x32xf32, #tpu.memory_space<vmem>>, %arg15: memref<32x32xf32, #tpu.memory_space<vmem>>, %arg16: memref<8x128xf32, #tpu.memory_space<vmem>>) attributes {dimension_semantics = [#tpu.dimension_semantics<parallel>], iteration_bounds = array<i64: 2>, scalar_prefetch = 0 : i64, scratch_operands = 0 : i64, tpu.core_type = #tpu.core_type<tc>, window_params = [{transform_indices = @transform_0, window_bounds = array<i64: 8, 4>}, {transform_indices = @transform_1, window_bounds = array<i64: 8, 1>}, {pipeline_mode = #tpu.pipeline_mode<synchronous>, transform_indices = @transform_2, window_bounds = array<i64: 8, 32>}, {pipeline_mode = #tpu.pipeline_mode<synchronous>, transform_indices = @transform_3, window_bounds = array<i64: 4, 32>}, {pipeline_mode = #tpu.pipeline_mode<synchronous>, transform_indices = @transform_4, window_bounds = array<i64: 32, 96>}, {pipeline_mode = #tpu.pipeline_mode<synchronous>, transform_indices = @transform_5, window_bounds = array<i64: 1, 96>}, {pipeline_mode = #tpu.pipeline_mode<synchronous>, transform_indices = @transform_6, window_bounds = array<i64: 32, 32>}, {pipeline_mode = #tpu.pipeline_mode<synchronous>, transform_indices = @transform_7, window_bounds = array<i64: 7, 32>}, {pipeline_mode = #tpu.pipeline_mode<synchronous>, transform_indices = @transform_8, window_bounds = array<i64: 32, 64>}, {pipeline_mode = #tpu.pipeline_mode<synchronous>, transform_indices = @transform_9, window_bounds = array<i64: 1, 64>}, {pipeline_mode = #tpu.pipeline_mode<synchronous>, transform_indices = @transform_10, window_bounds = array<i64: 64, 32>}, {pipeline_mode = #tpu.pipeline_mode<synchronous>, transform_indices = @transform_11, window_bounds = array<i64: 32, 128>}, {pipeline_mode = #tpu.pipeline_mode<synchronous>, transform_indices = @transform_12, window_bounds = array<i64: 1, 128>}, {pipeline_mode = #tpu.pipeline_mode<synchronous>, transform_indices = @transform_13, window_bounds = array<i64: 32, 32>}, {pipeline_mode = #tpu.pipeline_mode<synchronous>, transform_indices = @transform_14, window_bounds = array<i64: 32, 32>}, {transform_indices = @transform_15, window_bounds = array<i64: 8, 128>}]} {
    %c0 = arith.constant 0 : index
    %c0_0 = arith.constant 0 : index
    %0 = vector.load %arg8[%c0, %c0_0] : memref<7x32xf32, #tpu.memory_space<vmem>>, vector<7x32xf32>
    %1 = vector.extract_strided_slice %0 {offsets = [0, 0], sizes = [1, 32], strides = [1, 1]} : vector<7x32xf32> to vector<1x32xf32>
    %2 = vector.extract_strided_slice %0 {offsets = [1, 0], sizes = [1, 32], strides = [1, 1]} : vector<7x32xf32> to vector<1x32xf32>
    %3 = vector.extract_strided_slice %0 {offsets = [2, 0], sizes = [1, 32], strides = [1, 1]} : vector<7x32xf32> to vector<1x32xf32>
    %4 = vector.extract_strided_slice %0 {offsets = [3, 0], sizes = [1, 32], strides = [1, 1]} : vector<7x32xf32> to vector<1x32xf32>
    %5 = vector.extract_strided_slice %0 {offsets = [4, 0], sizes = [1, 32], strides = [1, 1]} : vector<7x32xf32> to vector<1x32xf32>
    %6 = vector.extract_strided_slice %0 {offsets = [5, 0], sizes = [1, 32], strides = [1, 1]} : vector<7x32xf32> to vector<1x32xf32>
    %7 = vector.extract_strided_slice %0 {offsets = [6, 0], sizes = [1, 32], strides = [1, 1]} : vector<7x32xf32> to vector<1x32xf32>
    %c0_1 = arith.constant 0 : index
    %c0_2 = arith.constant 0 : index
    %8 = vector.load %arg1[%c0_1, %c0_2] : memref<8x4xf32, #tpu.memory_space<vmem>>, vector<8x4xf32>
    %c0_3 = arith.constant 0 : index
    %c0_4 = arith.constant 0 : index
    %9 = vector.load %arg2[%c0_3, %c0_4] : memref<8x1xf32, #tpu.memory_space<vmem>>, vector<8x1xf32>
    %10 = arith.cmpf one, %9, %9 : vector<8x1xf32>
    %cst = arith.constant 0.000000e+00 : f32
    %11 = vector.broadcast %cst : f32 to vector<8x1xf32>
    %12 = arith.select %10, %11, %9 : vector<8x1xi1>, vector<8x1xf32>
    %c0_5 = arith.constant 0 : index
    %c0_6 = arith.constant 0 : index
    %13 = vector.load %arg4[%c0_5, %c0_6] : memref<4x32xf32, #tpu.memory_space<vmem>>, vector<4x32xf32>
    %cst_7 = arith.constant dense<0.000000e+00> : vector<8x32xf32>
    %14 = tpu.matmul %8, %13, %cst_7 {dimension_numbers = #tpu.dot_dimension_numbers<[1], [0], [0], [1], [0, 0, 1, 1], [], []>, precision = #tpu.contract_precision<fp32>} : vector<8x4xf32>, vector<4x32xf32>, vector<8x32xf32> -> vector<8x32xf32>
    %15 = vector.broadcast %12 : vector<8x1xf32> to vector<8x32xf32>
    %16 = vector.broadcast %1 : vector<1x32xf32> to vector<8x32xf32>
    %17 = arith.mulf %15, %16 : vector<8x32xf32>
    %18 = arith.addf %14, %17 : vector<8x32xf32>
    %c0_8 = arith.constant 0 : index
    %c0_9 = arith.constant 0 : index
    %19 = vector.load %arg3[%c0_8, %c0_9] : memref<8x32xf32, #tpu.memory_space<vmem>>, vector<8x32xf32>
    %20 = arith.addf %18, %19 : vector<8x32xf32>
    %c0_10 = arith.constant 0 : index
    %c0_11 = arith.constant 0 : index
    %21 = vector.load %arg5[%c0_10, %c0_11] : memref<32x96xf32, #tpu.memory_space<vmem>>, vector<32x96xf32>
    %cst_12 = arith.constant dense<0.000000e+00> : vector<8x96xf32>
    %22 = tpu.matmul %20, %21, %cst_12 {dimension_numbers = #tpu.dot_dimension_numbers<[1], [0], [0], [1], [0, 0, 1, 1], [], []>, precision = #tpu.contract_precision<fp32>} : vector<8x32xf32>, vector<32x96xf32>, vector<8x96xf32> -> vector<8x96xf32>
    %c0_13 = arith.constant 0 : index
    %c0_14 = arith.constant 0 : index
    %23 = vector.load %arg6[%c0_13, %c0_14] : memref<1x96xf32, #tpu.memory_space<vmem>>, vector<1x96xf32>
    %24 = vector.broadcast %23 : vector<1x96xf32> to vector<8x96xf32>
    %25 = arith.addf %22, %24 : vector<8x96xf32>
    %26 = vector.extract_strided_slice %25 {offsets = [0, 0], sizes = [8, 32], strides = [1, 1]} : vector<8x96xf32> to vector<8x32xf32>
    %27 = vector.extract_strided_slice %25 {offsets = [0, 32], sizes = [8, 32], strides = [1, 1]} : vector<8x96xf32> to vector<8x32xf32>
    %28 = vector.extract_strided_slice %25 {offsets = [0, 64], sizes = [8, 32], strides = [1, 1]} : vector<8x96xf32> to vector<8x32xf32>
    %c0_15 = arith.constant 0 : index
    %c0_16 = arith.constant 0 : index
    %29 = vector.load %arg14[%c0_15, %c0_16] : memref<32x32xf32, #tpu.memory_space<vmem>>, vector<32x32xf32>
    %30 = tpu.concatenate %27, %27, %27, %27 in 0 : vector<8x32xf32>, vector<8x32xf32>, vector<8x32xf32>, vector<8x32xf32> -> vector<32x32xf32>
    %31 = arith.mulf %30, %29 : vector<32x32xf32>
    %32 = tpu.concatenate %28, %28, %28, %28 in 0 : vector<8x32xf32>, vector<8x32xf32>, vector<8x32xf32>, vector<8x32xf32> -> vector<32x32xf32>
    %33 = arith.mulf %32, %29 : vector<32x32xf32>
    %cst_17 = arith.constant dense<0.000000e+00> : vector<8x32xf32>
    %34 = tpu.matmul %26, %31, %cst_17 {dimension_numbers = #tpu.dot_dimension_numbers<[1], [1], [0], [0], [0, 0, 1, 0], [], []>, precision = #tpu.contract_precision<fp32>} : vector<8x32xf32>, vector<32x32xf32>, vector<8x32xf32> -> vector<8x32xf32>
    %cst_18 = arith.constant dense<0xFF800000> : vector<8xf32>
    %35 = vector.multi_reduction <maximumf>, %34, %cst_18 [1] : vector<8x32xf32> to vector<8xf32>
    %36 = vector.shape_cast %35 : vector<8xf32> to vector<8x1xf32>
    %37 = vector.broadcast %36 : vector<8x1xf32> to vector<8x32xf32>
    %38 = arith.subf %34, %37 : vector<8x32xf32>
    %39 = math.exp %38 : vector<8x32xf32>
    %c0_19 = arith.constant 0 : index
    %c0_20 = arith.constant 0 : index
    %40 = vector.load %arg15[%c0_19, %c0_20] : memref<32x32xf32, #tpu.memory_space<vmem>>, vector<32x32xf32>
    %cst_21 = arith.constant dense<0.000000e+00> : vector<8x32xf32>
    %41 = tpu.matmul %39, %40, %cst_21 {dimension_numbers = #tpu.dot_dimension_numbers<[1], [0], [0], [1], [0, 0, 1, 1], [], []>, precision = #tpu.contract_precision<fp32>} : vector<8x32xf32>, vector<32x32xf32>, vector<8x32xf32> -> vector<8x32xf32>
    %42 = arith.divf %39, %41 : vector<8x32xf32>
    %cst_22 = arith.constant dense<0.000000e+00> : vector<8x32xf32>
    %43 = tpu.matmul %42, %33, %cst_22 {dimension_numbers = #tpu.dot_dimension_numbers<[1], [0], [0], [1], [0, 0, 1, 1], [], []>, precision = #tpu.contract_precision<fp32>} : vector<8x32xf32>, vector<32x32xf32>, vector<8x32xf32> -> vector<8x32xf32>
    %c0_23 = arith.constant 0 : index
    %c0_24 = arith.constant 0 : index
    %44 = vector.load %arg7[%c0_23, %c0_24] : memref<32x32xf32, #tpu.memory_space<vmem>>, vector<32x32xf32>
    %cst_25 = arith.constant dense<0.000000e+00> : vector<8x32xf32>
    %45 = tpu.matmul %43, %44, %cst_25 {dimension_numbers = #tpu.dot_dimension_numbers<[1], [0], [0], [1], [0, 0, 1, 1], [], []>, precision = #tpu.contract_precision<fp32>} : vector<8x32xf32>, vector<32x32xf32>, vector<8x32xf32> -> vector<8x32xf32>
    %46 = vector.broadcast %2 : vector<1x32xf32> to vector<8x32xf32>
    %47 = arith.addf %45, %46 : vector<8x32xf32>
    %48 = arith.addf %20, %47 : vector<8x32xf32>
    %cst_26 = arith.constant dense<0.000000e+00> : vector<8xf32>
    %49 = vector.multi_reduction <add>, %48, %cst_26 [1] : vector<8x32xf32> to vector<8xf32>
    %50 = vector.shape_cast %49 : vector<8xf32> to vector<8x1xf32>
    %cst_27 = arith.constant 3.200000e+01 : f32
    %51 = vector.broadcast %cst_27 : f32 to vector<8x1xf32>
    %52 = arith.divf %50, %51 : vector<8x1xf32>
    %53 = vector.broadcast %52 : vector<8x1xf32> to vector<8x32xf32>
    %54 = arith.subf %48, %53 : vector<8x32xf32>
    %55 = arith.mulf %54, %54 : vector<8x32xf32>
    %cst_28 = arith.constant dense<0.000000e+00> : vector<8xf32>
    %56 = vector.multi_reduction <add>, %55, %cst_28 [1] : vector<8x32xf32> to vector<8xf32>
    %57 = vector.shape_cast %56 : vector<8xf32> to vector<8x1xf32>
    %cst_29 = arith.constant 3.200000e+01 : f32
    %58 = vector.broadcast %cst_29 : f32 to vector<8x1xf32>
    %59 = arith.divf %57, %58 : vector<8x1xf32>
    %60 = vector.broadcast %52 : vector<8x1xf32> to vector<8x32xf32>
    %61 = arith.subf %48, %60 : vector<8x32xf32>
    %cst_30 = arith.constant 9.99999974E-6 : f32
    %62 = vector.broadcast %cst_30 : f32 to vector<8x1xf32>
    %63 = arith.addf %59, %62 : vector<8x1xf32>
    %64 = math.rsqrt %63 : vector<8x1xf32>
    %65 = vector.broadcast %64 : vector<8x1xf32> to vector<8x32xf32>
    %66 = arith.mulf %61, %65 : vector<8x32xf32>
    %67 = vector.broadcast %3 : vector<1x32xf32> to vector<8x32xf32>
    %68 = arith.mulf %66, %67 : vector<8x32xf32>
    %69 = vector.broadcast %4 : vector<1x32xf32> to vector<8x32xf32>
    %70 = arith.addf %68, %69 : vector<8x32xf32>
    %c0_31 = arith.constant 0 : index
    %c0_32 = arith.constant 0 : index
    %71 = vector.load %arg9[%c0_31, %c0_32] : memref<32x64xf32, #tpu.memory_space<vmem>>, vector<32x64xf32>
    %cst_33 = arith.constant dense<0.000000e+00> : vector<8x64xf32>
    %72 = tpu.matmul %70, %71, %cst_33 {dimension_numbers = #tpu.dot_dimension_numbers<[1], [0], [0], [1], [0, 0, 1, 1], [], []>, precision = #tpu.contract_precision<fp32>} : vector<8x32xf32>, vector<32x64xf32>, vector<8x64xf32> -> vector<8x64xf32>
    %c0_34 = arith.constant 0 : index
    %c0_35 = arith.constant 0 : index
    %73 = vector.load %arg10[%c0_34, %c0_35] : memref<1x64xf32, #tpu.memory_space<vmem>>, vector<1x64xf32>
    %74 = vector.broadcast %73 : vector<1x64xf32> to vector<8x64xf32>
    %75 = arith.addf %72, %74 : vector<8x64xf32>
    %cst_36 = arith.constant 0.000000e+00 : f32
    %76 = vector.broadcast %cst_36 : f32 to vector<8x64xf32>
    %77 = arith.maximumf %75, %76 : vector<8x64xf32>
    %c0_37 = arith.constant 0 : index
    %c0_38 = arith.constant 0 : index
    %78 = vector.load %arg11[%c0_37, %c0_38] : memref<64x32xf32, #tpu.memory_space<vmem>>, vector<64x32xf32>
    %cst_39 = arith.constant dense<0.000000e+00> : vector<8x32xf32>
    %79 = tpu.matmul %77, %78, %cst_39 {dimension_numbers = #tpu.dot_dimension_numbers<[1], [0], [0], [1], [0, 0, 1, 1], [], []>, precision = #tpu.contract_precision<fp32>} : vector<8x64xf32>, vector<64x32xf32>, vector<8x32xf32> -> vector<8x32xf32>
    %80 = vector.broadcast %7 : vector<1x32xf32> to vector<8x32xf32>
    %81 = arith.addf %79, %80 : vector<8x32xf32>
    %82 = arith.addf %70, %81 : vector<8x32xf32>
    %cst_40 = arith.constant dense<0.000000e+00> : vector<8xf32>
    %83 = vector.multi_reduction <add>, %82, %cst_40 [1] : vector<8x32xf32> to vector<8xf32>
    %84 = vector.shape_cast %83 : vector<8xf32> to vector<8x1xf32>
    %cst_41 = arith.constant 3.200000e+01 : f32
    %85 = vector.broadcast %cst_41 : f32 to vector<8x1xf32>
    %86 = arith.divf %84, %85 : vector<8x1xf32>
    %87 = vector.broadcast %86 : vector<8x1xf32> to vector<8x32xf32>
    %88 = arith.subf %82, %87 : vector<8x32xf32>
    %89 = arith.mulf %88, %88 : vector<8x32xf32>
    %cst_42 = arith.constant dense<0.000000e+00> : vector<8xf32>
    %90 = vector.multi_reduction <add>, %89, %cst_42 [1] : vector<8x32xf32> to vector<8xf32>
    %91 = vector.shape_cast %90 : vector<8xf32> to vector<8x1xf32>
    %cst_43 = arith.constant 3.200000e+01 : f32
    %92 = vector.broadcast %cst_43 : f32 to vector<8x1xf32>
    %93 = arith.divf %91, %92 : vector<8x1xf32>
    %94 = vector.broadcast %86 : vector<8x1xf32> to vector<8x32xf32>
    %95 = arith.subf %82, %94 : vector<8x32xf32>
    %cst_44 = arith.constant 9.99999974E-6 : f32
    %96 = vector.broadcast %cst_44 : f32 to vector<8x1xf32>
    %97 = arith.addf %93, %96 : vector<8x1xf32>
    %98 = math.rsqrt %97 : vector<8x1xf32>
    %99 = vector.broadcast %98 : vector<8x1xf32> to vector<8x32xf32>
    %100 = arith.mulf %95, %99 : vector<8x32xf32>
    %101 = vector.broadcast %5 : vector<1x32xf32> to vector<8x32xf32>
    %102 = arith.mulf %100, %101 : vector<8x32xf32>
    %103 = vector.broadcast %6 : vector<1x32xf32> to vector<8x32xf32>
    %104 = arith.addf %102, %103 : vector<8x32xf32>
    %c0_45 = arith.constant 0 : index
    %c0_46 = arith.constant 0 : index
    %105 = vector.load %arg12[%c0_45, %c0_46] : memref<32x128xf32, #tpu.memory_space<vmem>>, vector<32x128xf32>
    %cst_47 = arith.constant dense<0.000000e+00> : vector<8x128xf32>
    %106 = tpu.matmul %104, %105, %cst_47 {dimension_numbers = #tpu.dot_dimension_numbers<[1], [0], [0], [1], [0, 0, 1, 1], [], []>, precision = #tpu.contract_precision<fp32>} : vector<8x32xf32>, vector<32x128xf32>, vector<8x128xf32> -> vector<8x128xf32>
    %c0_48 = arith.constant 0 : index
    %c0_49 = arith.constant 0 : index
    %107 = vector.load %arg13[%c0_48, %c0_49] : memref<1x128xf32, #tpu.memory_space<vmem>>, vector<1x128xf32>
    %108 = vector.broadcast %107 : vector<1x128xf32> to vector<8x128xf32>
    %109 = arith.addf %106, %108 : vector<8x128xf32>
    %c0_50 = arith.constant 0 : index
    %c0_51 = arith.constant 0 : index
    %110 = vector.load %arg16[%c0_50, %c0_51] : memref<8x128xf32, #tpu.memory_space<vmem>>, vector<8x128xf32>
    tpu.vector_store %arg16[%c0_50, %c0_51], %109 {strides = array<i32>} : memref<8x128xf32, #tpu.memory_space<vmem>>, vector<8x128xf32>,
    return
  }
  func.func @transform_0(%arg0: i32) -> (i32, i32) {
    %c0_i32 = arith.constant 0 : i32
    %c0_i32_0 = arith.constant 0 : i32
    return %arg0, %c0_i32 : i32, i32
  }
  func.func @transform_1(%arg0: i32) -> (i32, i32) {
    %c0_i32 = arith.constant 0 : i32
    %c0_i32_0 = arith.constant 0 : i32
    return %arg0, %c0_i32 : i32, i32
  }
  func.func @transform_2(%arg0: i32) -> (i32, i32) {
    %c0_i32 = arith.constant 0 : i32
    %c0_i32_0 = arith.constant 0 : i32
    %c0_i32_1 = arith.constant 0 : i32
    return %c0_i32, %c0_i32_0 : i32, i32
  }
  func.func @transform_3(%arg0: i32) -> (i32, i32) {
    %c0_i32 = arith.constant 0 : i32
    %c0_i32_0 = arith.constant 0 : i32
    %c0_i32_1 = arith.constant 0 : i32
    return %c0_i32, %c0_i32_0 : i32, i32
  }
  func.func @transform_4(%arg0: i32) -> (i32, i32) {
    %c0_i32 = arith.constant 0 : i32
    %c0_i32_0 = arith.constant 0 : i32
    %c0_i32_1 = arith.constant 0 : i32
    return %c0_i32, %c0_i32_0 : i32, i32
  }
  func.func @transform_5(%arg0: i32) -> (i32, i32) {
    %c0_i32 = arith.constant 0 : i32
    %c0_i32_0 = arith.constant 0 : i32
    %c0_i32_1 = arith.constant 0 : i32
    return %c0_i32, %c0_i32_0 : i32, i32
  }
  func.func @transform_6(%arg0: i32) -> (i32, i32) {
    %c0_i32 = arith.constant 0 : i32
    %c0_i32_0 = arith.constant 0 : i32
    %c0_i32_1 = arith.constant 0 : i32
    return %c0_i32, %c0_i32_0 : i32, i32
  }
  func.func @transform_7(%arg0: i32) -> (i32, i32) {
    %c0_i32 = arith.constant 0 : i32
    %c0_i32_0 = arith.constant 0 : i32
    %c0_i32_1 = arith.constant 0 : i32
    return %c0_i32, %c0_i32_0 : i32, i32
  }
  func.func @transform_8(%arg0: i32) -> (i32, i32) {
    %c0_i32 = arith.constant 0 : i32
    %c0_i32_0 = arith.constant 0 : i32
    %c0_i32_1 = arith.constant 0 : i32
    return %c0_i32, %c0_i32_0 : i32, i32
  }
  func.func @transform_9(%arg0: i32) -> (i32, i32) {
    %c0_i32 = arith.constant 0 : i32
    %c0_i32_0 = arith.constant 0 : i32
    %c0_i32_1 = arith.constant 0 : i32
    return %c0_i32, %c0_i32_0 : i32, i32
  }
  func.func @transform_10(%arg0: i32) -> (i32, i32) {
    %c0_i32 = arith.constant 0 : i32
    %c0_i32_0 = arith.constant 0 : i32
    %c0_i32_1 = arith.constant 0 : i32
    return %c0_i32, %c0_i32_0 : i32, i32
  }
  func.func @transform_11(%arg0: i32) -> (i32, i32) {
    %c0_i32 = arith.constant 0 : i32
    %c0_i32_0 = arith.constant 0 : i32
    %c0_i32_1 = arith.constant 0 : i32
    return %c0_i32, %c0_i32_0 : i32, i32
  }
  func.func @transform_12(%arg0: i32) -> (i32, i32) {
    %c0_i32 = arith.constant 0 : i32
    %c0_i32_0 = arith.constant 0 : i32
    %c0_i32_1 = arith.constant 0 : i32
    return %c0_i32, %c0_i32_0 : i32, i32
  }
  func.func @transform_13(%arg0: i32) -> (i32, i32) {
    %c0_i32 = arith.constant 0 : i32
    %c0_i32_0 = arith.constant 0 : i32
    %c0_i32_1 = arith.constant 0 : i32
    return %c0_i32, %c0_i32_0 : i32, i32
  }
  func.func @transform_14(%arg0: i32) -> (i32, i32) {
    %c0_i32 = arith.constant 0 : i32
    %c0_i32_0 = arith.constant 0 : i32
    %c0_i32_1 = arith.constant 0 : i32
    return %c0_i32, %c0_i32_0 : i32, i32
  }
  func.func @transform_15(%arg0: i32) -> (i32, i32) {
    %c0_i32 = arith.constant 0 : i32
    %c0_i32_0 = arith.constant 0 : i32
    return %arg0, %c0_i32 : i32, i32
  }
}

</mosaic_0001>

<llo_original>
// kernel: tpu_custom_call.1
$region0: #{tpu_custom_call.1}
  #allocation0 [shape = 'u32[]', space=smem, size = 0x4, offset = 0x4, fixed_abs, tag = 'smem constant byte address 0x4 - core index']
  #allocation1 [shape = 'u32[144,128]{1,0:T(1,128)}', space=vmem, size = 0x12000, scoped, tag = 'internal scratch']
  %s0 = inlined_call_operand.vmem [shape: f32[16,4], index: 0, kind: input, shape index: {}]
  %s1 = inlined_call_operand.vmem [shape: f32[16,1], index: 1, kind: input, shape index: {}]
  %s2 = inlined_call_operand.vmem [shape: f32[8,32], index: 2, kind: input, shape index: {}]
  %s3 = inlined_call_operand.vmem [shape: f32[4,32], index: 3, kind: input, shape index: {}]
  %s4 = inlined_call_operand.vmem [shape: f32[32,96], index: 4, kind: input, shape index: {}]
  %s5 = inlined_call_operand.vmem [shape: f32[1,96], index: 5, kind: input, shape index: {}]
  %s6 = inlined_call_operand.vmem [shape: f32[32,32], index: 6, kind: input, shape index: {}]
  %s7 = inlined_call_operand.vmem [shape: f32[7,32], index: 7, kind: input, shape index: {}]
  %s8 = inlined_call_operand.vmem [shape: f32[32,64], index: 8, kind: input, shape index: {}]
  %s9 = inlined_call_operand.vmem [shape: f32[1,64], index: 9, kind: input, shape index: {}]
  %s10 = inlined_call_operand.vmem [shape: f32[64,32], index: 10, kind: input, shape index: {}]
  %s11 = inlined_call_operand.hbm [shape: f32[32,128], index: 11, kind: input, shape index: {}]
  %s12 = inlined_call_operand.vmem [shape: f32[1,128], index: 12, kind: input, shape index: {}]
  %s13 = inlined_call_operand.hbm [shape: f32[32,32], index: 13, kind: input, shape index: {}]
  %s14 = inlined_call_operand.hbm [shape: f32[32,32], index: 14, kind: input, shape index: {}]
  %s15 = inlined_call_operand.hbm [shape: f32[16,128], index: 15, kind: output, shape index: {}]
  %s16 = sld [smem:[#allocation0]]
  $region105: #{tpu_custom_call.1} parent=0
    _
  %s18 = ssub.s32 1, %s16
  %s19 = scalar_select 0, %s18, %s16
  $region1: #{tpu_custom_call.1} parent=0
    #allocation2 [shape = 'u8[16384]{0}', space=vmem, size = 0x4000, scoped, tag = 'input window, operand 11, single buffered']
    #allocation3 [shape = 's32[2]{0}', space=sflag, size = 0x8, scoped, tag = 'scoped memory for tpu_custom_call.1']
    #allocation4 [shape = 's32[2]{0}', space=sflag, size = 0x8, scoped, tag = 'scoped memory for tpu_custom_call.1']
    #allocation5 [shape = 'u8[16384]{0}', space=vmem, size = 0x4000, scoped, tag = 'input window, operand 13, single buffered']
    #allocation6 [shape = 's32[1]{0}', space=sflag, size = 0x4, scoped, tag = 'scoped memory for tpu_custom_call.1']
    #allocation7 [shape = 'u8[16384]{0}', space=vmem, size = 0x4000, scoped, tag = 'input window, operand 14, single buffered']
    #allocation8 [shape = 'u8[8192]{0}', space=vmem, size = 0x2000, scoped, tag = 'output window, operand 0']
    %20 = vsyncpa [#allocation3], 0
    %21 = vsyncpa [#allocation6], 0
    %22 = vsyncpa [#allocation4], 0
    %s23 = scalar_lea.sflag [#allocation4], 1
    %24 = vsyncpa %s23, 0
    loop: start=0, step=1, limit=4
    $region2: #{tpu_custom_call.1} parent=1 // loop_pre_header
      _
    $region3: #{tpu_custom_call.1} parent=1 // loop_header
      %s26 = sphi 0, %s30
      %p27 = scmp.ge.s32.totalorder %s26, 4
      %s36 = sphi 0, %s38
      %s39 = sphi 0, %s36
      %s40 = sphi 0, %s39
      %s56 = sphi 0, %s40
      %s62 = sphi 0, %s64
      %s65 = sphi 0, %s62
      %s66 = sphi 0, %s65
      %s82 = sphi 0, %s66
      %s86 = sphi 0, %s86
      %s88 = sphi 0, %s86
      %s89 = sphi 0, %s88
      %s103 = sphi 0, %s89
      %s107 = sphi 0, %s107
      %s109 = sphi 0, %s107
      %s110 = sphi 0, %s109
      %s124 = sphi 0, %s110
      %s128 = sphi 0, %s128
      %s130 = sphi 0, %s128
      %s131 = sphi 0, %s130
      %s145 = sphi 0, %s131
      %s149 = sphi 0, %s149
      %s151 = sphi 0, %s149
      %s152 = sphi 0, %s151
      %s166 = sphi 0, %s152
      %s170 = sphi 0, %s170
      %s172 = sphi 0, %s170
      %s173 = sphi 0, %s172
      %s187 = sphi 0, %s173
      %s191 = sphi 0, %s191
      %s193 = sphi 0, %s191
      %s194 = sphi 0, %s193
      %s208 = sphi 0, %s194
      %s212 = sphi 0, %s212
      %s214 = sphi 0, %s212
      %s215 = sphi 0, %s214
      %s229 = sphi 0, %s215
      %s233 = sphi 0, %s233
      %s235 = sphi 0, %s233
      %s236 = sphi 0, %s235
      %s250 = sphi 0, %s236
      %s254 = sphi 0, %s254
      %s256 = sphi 0, %s254
      %s257 = sphi 0, %s256
      %s271 = sphi 0, %s257
      %s275 = sphi 0, %s275
      %s277 = sphi 0, %s275
      %s278 = sphi 0, %s277
      %s292 = sphi 0, %s278
      %s296 = sphi 0, %s296
      %s298 = sphi 0, %s296
      %s299 = sphi 0, %s298
      %s313 = sphi 0, %s299
      %s317 = sphi 0, %s317
      %s319 = sphi 0, %s317
      %s320 = sphi 0, %s319
      %s334 = sphi 0, %s320
      %s338 = sphi 0, %s338
      %s340 = sphi 0, %s338
      %s341 = sphi 0, %s340
      %s355 = sphi 0, %s341
      %s361 = sphi 0, %s363
      %s364 = sphi 0, %s361
      %s365 = sphi 0, %s364
      %s381 = sphi 0, %s365
    $region4: #{tpu_custom_call.1} parent=1 // loop_header_branch
      %29 = sbr.rel (%p27) target = $region8
    $region5: #{tpu_custom_call.1} parent=1 // loop_body
      %s31 = ssub.s32 %s26, 1
      %s32 = ssub.s32 %s26, 2
      %s33 = sadd.s32 %s26, 1
      %s34 = ssub.s32 %s26, %s33
      %p35 = scmp.eq.s32.totalorder %s34, 0
      %s37 = sadd.s32 %s36, 1
      %s38 = scalar_select %p35, %s36, %s37
      %p41 = pneg %p35
      %p42 = scmp.eq.s32.totalorder %s26, 1
      %p43 = por %p41, %p42
      %p44 = scmp.ne.s32.totalorder %s36, %s39
      %p45 = scmp.eq.s32.totalorder %s26, 0
      %p46 = por %p44, %p45
      %p47 = scmp.ne.s32.totalorder %s36, %s39
      %p48 = scmp.eq.s32.totalorder %s31, 1
      %p49 = por %p47, %p48
      %p50 = scmp.ne.s32.totalorder %s39, %s40
      %p51 = scmp.eq.s32.totalorder %s31, 0
      %p52 = por %p50, %p51
      %p53 = scmp.ne.s32.totalorder %s39, %s40
      %p54 = scmp.eq.s32.totalorder %s32, 1
      %p55 = por %p53, %p54
      %p57 = scmp.ne.s32.totalorder %s40, %s56
      %p58 = scmp.eq.s32.totalorder %s32, 0
      %p59 = por %p57, %p58
      %s60 = ssub.s32 %s26, %s33
      %p61 = scmp.eq.s32.totalorder %s60, 0
      %s63 = sadd.s32 %s62, 1
      %s64 = scalar_select %p61, %s62, %s63
      %p67 = pneg %p61
      %p68 = scmp.eq.s32.totalorder %s26, 1
      %p69 = por %p67, %p68
      %p70 = scmp.ne.s32.totalorder %s62, %s65
      %p71 = scmp.eq.s32.totalorder %s26, 0
      %p72 = por %p70, %p71
      %p73 = scmp.ne.s32.totalorder %s62, %s65
      %p74 = scmp.eq.s32.totalorder %s31, 1
      %p75 = por %p73, %p74
      %p76 = scmp.ne.s32.totalorder %s65, %s66
      %p77 = scmp.eq.s32.totalorder %s31, 0
      %p78 = por %p76, %p77
      %p79 = scmp.ne.s32.totalorder %s65, %s66
      %p80 = scmp.eq.s32.totalorder %s32, 1
      %p81 = por %p79, %p80
      %p83 = scmp.ne.s32.totalorder %s66, %s82
      %p84 = scmp.eq.s32.totalorder %s32, 0
      %p85 = por %p83, %p84
      %s87 = sadd.s32 %s86, 1
      %p90 = scmp.eq.s32.totalorder %s26, 1
      %p91 = scmp.ne.s32.totalorder %s86, %s88
      %p92 = scmp.eq.s32.totalorder %s26, 0
      %p93 = por %p91, %p92
      %p94 = scmp.ne.s32.totalorder %s86, %s88
      %p95 = scmp.eq.s32.totalorder %s31, 1
      %p96 = por %p94, %p95
      %p97 = scmp.ne.s32.totalorder %s88, %s89
      %p98 = scmp.eq.s32.totalorder %s31, 0
      %p99 = por %p97, %p98
      %p100 = scmp.ne.s32.totalorder %s88, %s89
      %p101 = scmp.eq.s32.totalorder %s32, 1
      %p102 = por %p100, %p101
      %p104 = scmp.ne.s32.totalorder %s89, %s103
      %p105 = scmp.eq.s32.totalorder %s32, 0
      %p106 = por %p104, %p105
      %s108 = sadd.s32 %s107, 1
      %p111 = scmp.eq.s32.totalorder %s26, 1
      %p112 = scmp.ne.s32.totalorder %s107, %s109
      %p113 = scmp.eq.s32.totalorder %s26, 0
      %p114 = por %p112, %p113
      %p115 = scmp.ne.s32.totalorder %s107, %s109
      %p116 = scmp.eq.s32.totalorder %s31, 1
      %p117 = por %p115, %p116
      %p118 = scmp.ne.s32.totalorder %s109, %s110
      %p119 = scmp.eq.s32.totalorder %s31, 0
      %p120 = por %p118, %p119
      %p121 = scmp.ne.s32.totalorder %s109, %s110
      %p122 = scmp.eq.s32.totalorder %s32, 1
      %p123 = por %p121, %p122
      %p125 = scmp.ne.s32.totalorder %s110, %s124
      %p126 = scmp.eq.s32.totalorder %s32, 0
      %p127 = por %p125, %p126
      %s129 = sadd.s32 %s128, 1
      %p132 = scmp.eq.s32.totalorder %s26, 1
      %p133 = scmp.ne.s32.totalorder %s128, %s130
      %p134 = scmp.eq.s32.totalorder %s26, 0
      %p135 = por %p133, %p134
      %p136 = scmp.ne.s32.totalorder %s128, %s130
      %p137 = scmp.eq.s32.totalorder %s31, 1
      %p138 = por %p136, %p137
      %p139 = scmp.ne.s32.totalorder %s130, %s131
      %p140 = scmp.eq.s32.totalorder %s31, 0
      %p141 = por %p139, %p140
      %p142 = scmp.ne.s32.totalorder %s130, %s131
      %p143 = scmp.eq.s32.totalorder %s32, 1
      %p144 = por %p142, %p143
      %p146 = scmp.ne.s32.totalorder %s131, %s145
      %p147 = scmp.eq.s32.totalorder %s32, 0
      %p148 = por %p146, %p147
      %s150 = sadd.s32 %s149, 1
      %p153 = scmp.eq.s32.totalorder %s26, 1
      %p154 = scmp.ne.s32.totalorder %s149, %s151
      %p155 = scmp.eq.s32.totalorder %s26, 0
      %p156 = por %p154, %p155
      %p157 = scmp.ne.s32.totalorder %s149, %s151
      %p158 = scmp.eq.s32.totalorder %s31, 1
      %p159 = por %p157, %p158
      %p160 = scmp.ne.s32.totalorder %s151, %s152
      %p161 = scmp.eq.s32.totalorder %s31, 0
      %p162 = por %p160, %p161
      %p163 = scmp.ne.s32.totalorder %s151, %s152
      %p164 = scmp.eq.s32.totalorder %s32, 1
      %p165 = por %p163, %p164
      %p167 = scmp.ne.s32.totalorder %s152, %s166
      %p168 = scmp.eq.s32.totalorder %s32, 0
      %p169 = por %p167, %p168
      %s171 = sadd.s32 %s170, 1
      %p174 = scmp.eq.s32.totalorder %s26, 1
      %p175 = scmp.ne.s32.totalorder %s170, %s172
      %p176 = scmp.eq.s32.totalorder %s26, 0
      %p177 = por %p175, %p176
      %p178 = scmp.ne.s32.totalorder %s170, %s172
      %p179 = scmp.eq.s32.totalorder %s31, 1
      %p180 = por %p178, %p179
      %p181 = scmp.ne.s32.totalorder %s172, %s173
      %p182 = scmp.eq.s32.totalorder %s31, 0
      %p183 = por %p181, %p182
      %p184 = scmp.ne.s32.totalorder %s172, %s173
      %p185 = scmp.eq.s32.totalorder %s32, 1
      %p186 = por %p184, %p185
      %p188 = scmp.ne.s32.totalorder %s173, %s187
      %p189 = scmp.eq.s32.totalorder %s32, 0
      %p190 = por %p188, %p189
      %s192 = sadd.s32 %s191, 1
      %p195 = scmp.eq.s32.totalorder %s26, 1
      %p196 = scmp.ne.s32.totalorder %s191, %s193
      %p197 = scmp.eq.s32.totalorder %s26, 0
      %p198 = por %p196, %p197
      %p199 = scmp.ne.s32.totalorder %s191, %s193
      %p200 = scmp.eq.s32.totalorder %s31, 1
      %p201 = por %p199, %p200
      %p202 = scmp.ne.s32.totalorder %s193, %s194
      %p203 = scmp.eq.s32.totalorder %s31, 0
      %p204 = por %p202, %p203
      %p205 = scmp.ne.s32.totalorder %s193, %s194
      %p206 = scmp.eq.s32.totalorder %s32, 1
      %p207 = por %p205, %p206
      %p209 = scmp.ne.s32.totalorder %s194, %s208
      %p210 = scmp.eq.s32.totalorder %s32, 0
      %p211 = por %p209, %p210
      %s213 = sadd.s32 %s212, 1
      %p216 = scmp.eq.s32.totalorder %s26, 1
      %p217 = scmp.ne.s32.totalorder %s212, %s214
      %p218 = scmp.eq.s32.totalorder %s26, 0
      %p219 = por %p217, %p218
      %p220 = scmp.ne.s32.totalorder %s212, %s214
      %p221 = scmp.eq.s32.totalorder %s31, 1
      %p222 = por %p220, %p221
      %p223 = scmp.ne.s32.totalorder %s214, %s215
      %p224 = scmp.eq.s32.totalorder %s31, 0
      %p225 = por %p223, %p224
      %p226 = scmp.ne.s32.totalorder %s214, %s215
      %p227 = scmp.eq.s32.totalorder %s32, 1
      %p228 = por %p226, %p227
      %p230 = scmp.ne.s32.totalorder %s215, %s229
      %p231 = scmp.eq.s32.totalorder %s32, 0
      %p232 = por %p230, %p231
      %s234 = sadd.s32 %s233, 1
      %p237 = scmp.eq.s32.totalorder %s26, 1
      %p238 = scmp.ne.s32.totalorder %s233, %s235
      %p239 = scmp.eq.s32.totalorder %s26, 0
      %p240 = por %p238, %p239
      %p241 = scmp.ne.s32.totalorder %s233, %s235
      %p242 = scmp.eq.s32.totalorder %s31, 1
      %p243 = por %p241, %p242
      %p244 = scmp.ne.s32.totalorder %s235, %s236
      %p245 = scmp.eq.s32.totalorder %s31, 0
      %p246 = por %p244, %p245
      %p247 = scmp.ne.s32.totalorder %s235, %s236
      %p248 = scmp.eq.s32.totalorder %s32, 1
      %p249 = por %p247, %p248
      %p251 = scmp.ne.s32.totalorder %s236, %s250
      %p252 = scmp.eq.s32.totalorder %s32, 0
      %p253 = por %p251, %p252
      %s255 = sadd.s32 %s254, 1
      %p258 = scmp.eq.s32.totalorder %s26, 1
      %p259 = scmp.ne.s32.totalorder %s254, %s256
      %p260 = scmp.eq.s32.totalorder %s26, 0
      %p261 = por %p259, %p260
      %p262 = scmp.ne.s32.totalorder %s254, %s256
      %p263 = scmp.eq.s32.totalorder %s31, 1
      %p264 = por %p262, %p263
      %p265 = scmp.ne.s32.totalorder %s256, %s257
      %p266 = scmp.eq.s32.totalorder %s31, 0
      %p267 = por %p265, %p266
      %p268 = scmp.ne.s32.totalorder %s256, %s257
      %p269 = scmp.eq.s32.totalorder %s32, 1
      %p270 = por %p268, %p269
      %p272 = scmp.ne.s32.totalorder %s257, %s271
      %p273 = scmp.eq.s32.totalorder %s32, 0
      %p274 = por %p272, %p273
      %s276 = sadd.s32 %s275, 1
      %p279 = scmp.eq.s32.totalorder %s26, 1
      %p280 = scmp.ne.s32.totalorder %s275, %s277
      %p281 = scmp.eq.s32.totalorder %s26, 0
      %p282 = por %p280, %p281
      %p283 = scmp.ne.s32.totalorder %s275, %s277
      %p284 = scmp.eq.s32.totalorder %s31, 1
      %p285 = por %p283, %p284
      %p286 = scmp.ne.s32.totalorder %s277, %s278
      %p287 = scmp.eq.s32.totalorder %s31, 0
      %p288 = por %p286, %p287
      %p289 = scmp.ne.s32.totalorder %s277, %s278
      %p290 = scmp.eq.s32.totalorder %s32, 1
      %p291 = por %p289, %p290
      %p293 = scmp.ne.s32.totalorder %s278, %s292
      %p294 = scmp.eq.s32.totalorder %s32, 0
      %p295 = por %p293, %p294
      %s297 = sadd.s32 %s296, 1
      %p300 = scmp.eq.s32.totalorder %s26, 1
      %p301 = scmp.ne.s32.totalorder %s296, %s298
      %p302 = scmp.eq.s32.totalorder %s26, 0
      %p303 = por %p301, %p302
      %p304 = scmp.ne.s32.totalorder %s296, %s298
      %p305 = scmp.eq.s32.totalorder %s31, 1
      %p306 = por %p304, %p305
      %p307 = scmp.ne.s32.totalorder %s298, %s299
      %p308 = scmp.eq.s32.totalorder %s31, 0
      %p309 = por %p307, %p308
      %p310 = scmp.ne.s32.totalorder %s298, %s299
      %p311 = scmp.eq.s32.totalorder %s32, 1
      %p312 = por %p310, %p311
      %p314 = scmp.ne.s32.totalorder %s299, %s313
      %p315 = scmp.eq.s32.totalorder %s32, 0
      %p316 = por %p314, %p315
      %s318 = sadd.s32 %s317, 1
      %p321 = scmp.eq.s32.totalorder %s26, 1
      %p322 = scmp.ne.s32.totalorder %s317, %s319
      %p323 = scmp.eq.s32.totalorder %s26, 0
      %p324 = por %p322, %p323
      %p325 = scmp.ne.s32.totalorder %s317, %s319
      %p326 = scmp.eq.s32.totalorder %s31, 1
      %p327 = por %p325, %p326
      %p328 = scmp.ne.s32.totalorder %s319, %s320
      %p329 = scmp.eq.s32.totalorder %s31, 0
      %p330 = por %p328, %p329
      %p331 = scmp.ne.s32.totalorder %s319, %s320
      %p332 = scmp.eq.s32.totalorder %s32, 1
      %p333 = por %p331, %p332
      %p335 = scmp.ne.s32.totalorder %s320, %s334
      %p336 = scmp.eq.s32.totalorder %s32, 0
      %p337 = por %p335, %p336
      %s339 = sadd.s32 %s338, 1
      %p342 = scmp.eq.s32.totalorder %s26, 1
      %p343 = scmp.ne.s32.totalorder %s338, %s340
      %p344 = scmp.eq.s32.totalorder %s26, 0
      %p345 = por %p343, %p344
      %p346 = scmp.ne.s32.totalorder %s338, %s340
      %p347 = scmp.eq.s32.totalorder %s31, 1
      %p348 = por %p346, %p347
      %p349 = scmp.ne.s32.totalorder %s340, %s341
      %p350 = scmp.eq.s32.totalorder %s31, 0
      %p351 = por %p349, %p350
      %p352 = scmp.ne.s32.totalorder %s340, %s341
      %p353 = scmp.eq.s32.totalorder %s32, 1
      %p354 = por %p352, %p353
      %p356 = scmp.ne.s32.totalorder %s341, %s355
      %p357 = scmp.eq.s32.totalorder %s32, 0
      %p358 = por %p356, %p357
      %s359 = ssub.s32 %s26, %s33
      %p360 = scmp.eq.s32.totalorder %s359, 0
      %s362 = sadd.s32 %s361, 1
      %s363 = scalar_select %p360, %s361, %s362
      %p366 = pneg %p360
      %p367 = scmp.eq.s32.totalorder %s26, 1
      %p368 = por %p366, %p367
      %p369 = scmp.ne.s32.totalorder %s361, %s364
      %p370 = scmp.eq.s32.totalorder %s26, 0
      %p371 = por %p369, %p370
      %p372 = scmp.ne.s32.totalorder %s361, %s364
      %p373 = scmp.eq.s32.totalorder %s31, 1
      %p374 = por %p372, %p373
      %p375 = scmp.ne.s32.totalorder %s364, %s365
      %p376 = scmp.eq.s32.totalorder %s31, 0
      %p377 = por %p375, %p376
      %p378 = scmp.ne.s32.totalorder %s364, %s365
      %p379 = scmp.eq.s32.totalorder %s32, 1
      %p380 = por %p378, %p379
      %p382 = scmp.ne.s32.totalorder %s365, %s381
      %p383 = scmp.eq.s32.totalorder %s32, 0
      %p384 = por %p382, %p383
      %p385 = scmp.le.s32.totalorder 1, %s26
      %p386 = scmp.lt.s32.totalorder %s26, 3
      %p387 = pnand %p385, %p386
      %p388 = pneg %p387
      // Predicated region
      $region9: #{tpu_custom_call.1} parent=5 // pred_check
        _
      $region10: #{tpu_custom_call.1} parent=5 // pred_check_branch
        %390 = sbr.rel (%p387) target = $region12
      $region11: #{tpu_custom_call.1} parent=5 // pred_region
        %s391 = ssub.s32 %s26, 1
        // Predicated region
        $region13: #{tpu_custom_call.1} parent=11 // pred_check
          %p392 = pneg %p99
        $region14: #{tpu_custom_call.1} parent=11 // pred_check_branch
          %394 = sbr.rel (%p392) target = $region16
        $region15: #{tpu_custom_call.1} parent=11 // pred_region
          _
        $region16: #{tpu_custom_call.1} parent=11 // pred_fallthru
          _
        // Predicated region
        $region17: #{tpu_custom_call.1} parent=11 // pred_check
          %p395 = pneg %p120
        $region18: #{tpu_custom_call.1} parent=11 // pred_check_branch
          %397 = sbr.rel (%p395) target = $region20
        $region19: #{tpu_custom_call.1} parent=11 // pred_region
          _
        $region20: #{tpu_custom_call.1} parent=11 // pred_fallthru
          _
        // Predicated region
        $region21: #{tpu_custom_call.1} parent=11 // pred_check
          %p398 = pneg %p141
        $region22: #{tpu_custom_call.1} parent=11 // pred_check_branch
          %400 = sbr.rel (%p398) target = $region24
        $region23: #{tpu_custom_call.1} parent=11 // pred_region
          _
        $region24: #{tpu_custom_call.1} parent=11 // pred_fallthru
          _
        // Predicated region
        $region25: #{tpu_custom_call.1} parent=11 // pred_check
          %p401 = pneg %p162
        $region26: #{tpu_custom_call.1} parent=11 // pred_check_branch
          %403 = sbr.rel (%p401) target = $region28
        $region27: #{tpu_custom_call.1} parent=11 // pred_region
          _
        $region28: #{tpu_custom_call.1} parent=11 // pred_fallthru
          _
        // Predicated region
        $region29: #{tpu_custom_call.1} parent=11 // pred_check
          %p404 = pneg %p183
        $region30: #{tpu_custom_call.1} parent=11 // pred_check_branch
          %406 = sbr.rel (%p404) target = $region32
        $region31: #{tpu_custom_call.1} parent=11 // pred_region
          _
        $region32: #{tpu_custom_call.1} parent=11 // pred_fallthru
          _
        // Predicated region
        $region33: #{tpu_custom_call.1} parent=11 // pred_check
          %p407 = pneg %p204
        $region34: #{tpu_custom_call.1} parent=11 // pred_check_branch
          %409 = sbr.rel (%p407) target = $region36
        $region35: #{tpu_custom_call.1} parent=11 // pred_region
          _
        $region36: #{tpu_custom_call.1} parent=11 // pred_fallthru
          _
        // Predicated region
        $region37: #{tpu_custom_call.1} parent=11 // pred_check
          %p410 = pneg %p225
        $region38: #{tpu_custom_call.1} parent=11 // pred_check_branch
          %412 = sbr.rel (%p410) target = $region40
        $region39: #{tpu_custom_call.1} parent=11 // pred_region
          _
        $region40: #{tpu_custom_call.1} parent=11 // pred_fallthru
          _
        // Predicated region
        $region41: #{tpu_custom_call.1} parent=11 // pred_check
          %p413 = pneg %p246
        $region42: #{tpu_custom_call.1} parent=11 // pred_check_branch
          %415 = sbr.rel (%p413) target = $region44
        $region43: #{tpu_custom_call.1} parent=11 // pred_region
          _
        $region44: #{tpu_custom_call.1} parent=11 // pred_fallthru
          _
        // Predicated region
        $region45: #{tpu_custom_call.1} parent=11 // pred_check
          %p416 = pneg %p267
        $region46: #{tpu_custom_call.1} parent=11 // pred_check_branch
          %418 = sbr.rel (%p416) target = $region48
        $region47: #{tpu_custom_call.1} parent=11 // pred_region
          _
        $region48: #{tpu_custom_call.1} parent=11 // pred_fallthru
          _
        // Predicated region
        $region49: #{tpu_custom_call.1} parent=11 // pred_check
          %p419 = pneg %p288
        $region50: #{tpu_custom_call.1} parent=11 // pred_check_branch
          %421 = sbr.rel (%p419) target = $region52
        $region51: #{tpu_custom_call.1} parent=11 // pred_region
          %s423 = ssub.s32 512, 512
          %424 = vsyncadd [#allocation3], %s423
          %s425 = sshll.u32 [#allocation2], 4
          %s426 = int_to_ptr.vmem [resolvable:$true] %s425
          %431 = dma.hbm_to_vmem [thread:$0]  %s11, 512, %s426, [#allocation3], 128, 128, 8
        $region52: #{tpu_custom_call.1} parent=11 // pred_fallthru
          _
        // Predicated region
        $region53: #{tpu_custom_call.1} parent=11 // pred_check
          %p432 = pneg %p309
        $region54: #{tpu_custom_call.1} parent=11 // pred_check_branch
          %434 = sbr.rel (%p432) target = $region56
        $region55: #{tpu_custom_call.1} parent=11 // pred_region
          _
        $region56: #{tpu_custom_call.1} parent=11 // pred_fallthru
          _
        // Predicated region
        $region57: #{tpu_custom_call.1} parent=11 // pred_check
          %p435 = pneg %p330
        $region58: #{tpu_custom_call.1} parent=11 // pred_check_branch
          %437 = sbr.rel (%p435) target = $region60
        $region59: #{tpu_custom_call.1} parent=11 // pred_region
          %s439 = ssub.s32 512, 512
          %440 = vsyncadd [#allocation6], %s439
          %s441 = sshll.u32 [#allocation5], 4
          %s442 = int_to_ptr.vmem [resolvable:$true] %s441
          %447 = dma.hbm_to_vmem [thread:$0]  %s13, 512, %s442, [#allocation6], 128, 128, 8
        $region60: #{tpu_custom_call.1} parent=11 // pred_fallthru
          _
        // Predicated region
        $region61: #{tpu_custom_call.1} parent=11 // pred_check
          %p448 = pneg %p351
        $region62: #{tpu_custom_call.1} parent=11 // pred_check_branch
          %450 = sbr.rel (%p448) target = $region64
        $region63: #{tpu_custom_call.1} parent=11 // pred_region
          %s452 = ssub.s32 512, 512
          %453 = vsyncadd [#allocation6], %s452
          %s454 = sshll.u32 [#allocation7], 4
          %s455 = int_to_ptr.vmem [resolvable:$true] %s454
          %460 = dma.hbm_to_vmem [thread:$0]  %s14, 512, %s455, [#allocation6], 128, 128, 8
        $region64: #{tpu_custom_call.1} parent=11 // pred_fallthru
          _
      $region12: #{tpu_custom_call.1} parent=5 // pred_fallthru
        _
      %p461 = scmp.lt.s32.totalorder %s26, 2
      // Predicated region
      $region65: #{tpu_custom_call.1} parent=5 // pred_check
        %p462 = pneg %p461
      $region66: #{tpu_custom_call.1} parent=5 // pred_check_branch
        %464 = sbr.rel (%p462) target = $region68
      $region67: #{tpu_custom_call.1} parent=5 // pred_region
        // Predicated region
        $region69: #{tpu_custom_call.1} parent=67 // pred_check
          %p465 = pneg %p46
        $region70: #{tpu_custom_call.1} parent=67 // pred_check_branch
          %467 = sbr.rel (%p465) target = $region72
        $region71: #{tpu_custom_call.1} parent=67 // pred_region
          %p468 = scmp.lt.s32.totalorder %s26, 1
          %s469 = scalar_select %p468, %s26, 1
          %s470 = smul.addr %s469, 8
          %s471 = scalar_lea.vmem %s0, %s470
        $region72: #{tpu_custom_call.1} parent=67 // pred_fallthru
          _
        // Predicated region
        $region73: #{tpu_custom_call.1} parent=67 // pred_check
          %p472 = pneg %p72
        $region74: #{tpu_custom_call.1} parent=67 // pred_check_branch
          %474 = sbr.rel (%p472) target = $region76
        $region75: #{tpu_custom_call.1} parent=67 // pred_region
          %p475 = scmp.lt.s32.totalorder %s26, 1
          %s476 = scalar_select %p475, %s26, 1
          %s477 = smul.addr %s476, 8
          %s478 = scalar_lea.vmem %s1, %s477
        $region76: #{tpu_custom_call.1} parent=67 // pred_fallthru
          _
      $region68: #{tpu_custom_call.1} parent=5 // pred_fallthru
        _
      %p479 = scmp.le.s32.totalorder 1, %s26
      %p480 = scmp.lt.s32.totalorder %s26, 3
      %p481 = pnand %p479, %p480
      %p482 = pneg %p481
      // Predicated region
      $region77: #{tpu_custom_call.1} parent=5 // pred_check
        _
      $region78: #{tpu_custom_call.1} parent=5 // pred_check_branch
        %484 = sbr.rel (%p481) target = $region80
      $region79: #{tpu_custom_call.1} parent=5 // pred_region
        %s485 = ssub.s32 %s26, 1
        // Predicated region
        $region81: #{tpu_custom_call.1} parent=79 // pred_check
          %p486 = pneg %p288
        $region82: #{tpu_custom_call.1} parent=79 // pred_check_branch
          %488 = sbr.rel (%p486) target = $region84
        $region83: #{tpu_custom_call.1} parent=79 // pred_region
          %489 = dma.done [#allocation3], 512
        $region84: #{tpu_custom_call.1} parent=79 // pred_fallthru
          _
        // Predicated region
        $region85: #{tpu_custom_call.1} parent=79 // pred_check
          %p490 = pneg %p330
        $region86: #{tpu_custom_call.1} parent=79 // pred_check_branch
          %492 = sbr.rel (%p490) target = $region88
        $region87: #{tpu_custom_call.1} parent=79 // pred_region
          %493 = dma.done [#allocation6], 512
        $region88: #{tpu_custom_call.1} parent=79 // pred_fallthru
          _
        // Predicated region
        $region89: #{tpu_custom_call.1} parent=79 // pred_check
          %p494 = pneg %p351
        $region90: #{tpu_custom_call.1} parent=79 // pred_check_branch
          %496 = sbr.rel (%p494) target = $region92
        $region91: #{tpu_custom_call.1} parent=79 // pred_region
          %497 = dma.done [#allocation6], 512
        $region92: #{tpu_custom_call.1} parent=79 // pred_fallthru
          _
        %p498 = scmp.lt.s32.totalorder %s31, 1
        %s499 = scalar_select %p498, %s31, 1
        %s500 = smul.addr %s499, 8
        %s501 = scalar_lea.vmem %s0, %s500
        %p502 = pneg %p52
        %p503 = pneg %p49
        %p504 = scmp.lt.s32.totalorder %s31, 1
        %s505 = scalar_select %p504, %s31, 1
        %s506 = smul.addr %s505, 8
        %s507 = scalar_lea.vmem %s1, %s506
        %p508 = pneg %p78
        %p509 = pneg %p75
        %p510 = pneg %p99
        %p511 = pneg %p96
        %p512 = pneg %p120
        %p513 = pneg %p117
        %p514 = pneg %p141
        %p515 = pneg %p138
        %p516 = pneg %p162
        %p517 = pneg %p159
        %p518 = pneg %p183
        %p519 = pneg %p180
        %p520 = pneg %p204
        %p521 = pneg %p201
        %p522 = pneg %p225
        %p523 = pneg %p222
        %p524 = pneg %p246
        %p525 = pneg %p243
        %p526 = pneg %p267
        %p527 = pneg %p264
        %p528 = pneg %p288
        %p529 = pneg %p285
        %p530 = pneg %p309
        %p531 = pneg %p306
        %p532 = pneg %p330
        %p533 = pneg %p327
        %p534 = pneg %p351
        %p535 = pneg %p348
        %p536 = pneg %p377
        %p537 = pneg %p374
        %s538 = sand.u32 %s364, 1
        %s539 = scalar_lea.sflag [#allocation4], %s538
        %s540 = sand.u32 %s364, 1
        %s541 = smul.addr %s540, 8
        %s542 = scalar_lea.vmem [#allocation8], %s541
        %p543 = scmp.lt.s32.totalorder %s31, 1
        %s544 = scalar_select %p543, %s31, 1
        %s545 = smul.addr %s544, 8
        %s546 = scalar_lea.vmem %s0, %s545
        %p547 = scmp.lt.s32.totalorder %s31, 1
        %s548 = scalar_select %p547, %s31, 1
        %s549 = smul.addr %s548, 8
        %s550 = scalar_lea.vmem %s1, %s549
        %v551 = vld [vmem:[%s7] sm:$0x7f]
        %v552 = vld [vmem:[%s546] sm:$0xff]
        %v553 = vld [vmem:[%s550] sm:$0xff]
        %vm554 = vcmp.ne.f32.partialorder %v553, %v553
        %v555 = vsel %vm554, 0.0, %v553
        %v556 = vld [vmem:[%s3] sm:$0xf]
        %558 = vset.pattern.permute.xlu0 0
        %559 = vperm.xlu0 %558, %v555
        %v560 = vpop.permute.xlu0 %559
        %v562 = vlaneseq
        %v563 = vshrl.u32 %v562, 7
        %v564 = vsub.s32 0, %v563
        %v565 = vrot.slane %v551, %v564
        %v566 = vmul.f32 %v560, %v565
        %vm567 = vcmask 31744
        %v569 = vsel %vm567, %v552, 0
        %vm571 = vcmask 1043456
        %v573 = vsel %vm571, %v556, 0
        %575 = vmatprep.subr.mxu0 0.0
        %576 = vmatpush1.msra.mxu0 0.0
        %577 = vmatprep.subr.mxu0 0.0
        %578 = vmatpush1.msra.mxu0 0.0
        %579 = vmatprep.subr.mxu0 0.0
        %580 = vmatpush1.msra.mxu0 0.0
        %581 = vmatprep.subr.mxu0 0.0
        %582 = vmatpush1.msra.mxu0 0.0
        %583 = vmatprep.subr.mxu0 0.0
        %584 = vmatpush1.msra.mxu0 0.0
        %585 = vmatprep.subr.mxu0 0.0
        %586 = vmatpush1.msra.mxu0 0.0
        %587 = vmatprep.subr.mxu0 0.0
        %588 = vmatpush1.msra.mxu0 0.0
        %589 = vmatprep.subr.mxu0 0.0
        %590 = vmatpush1.msra.mxu0 0.0
        %591 = vmatprep.subr.mxu0 0.0
        %592 = vmatpush1.msra.mxu0 0.0
        %593 = vmatprep.subr.mxu0 0.0
        %594 = vmatpush1.msra.mxu0 0.0
        %595 = vmatprep.subr.mxu0 0.0
        %596 = vmatpush1.msra.mxu0 0.0
        %597 = vmatprep.subr.mxu0 0.0
        %598 = vmatpush1.msra.mxu0 0.0
        %599 = vmatprep.subr.mxu0 0.0
        %600 = vmatpush1.msra.mxu0 0.0
        %601 = vmatprep.subr.mxu0 0.0
        %602 = vmatpush1.msra.mxu0 0.0
        %603 = vmatprep.subr.mxu0 0.0
        %604 = vmatpush1.msra.mxu0 0.0
        %605 = vmatprep.subr.mxu0 0.0
        %v606 = vand.u32 %v573, 4294901760
        %607 = vmatpush1.msra.mxu0 %v606
        %608 = vmatprep.subr.mxu0 0.0
        %609 = vmatpush2.msra.mxu0 0.0
        %610 = vmatprep.subr.mxu0 0.0
        %611 = vmatpush2.msra.mxu0 0.0
        %612 = vmatprep.subr.mxu0 0.0
        %613 = vmatpush2.msra.mxu0 0.0
        %614 = vmatprep.subr.mxu0 0.0
        %615 = vmatpush2.msra.mxu0 0.0
        %616 = vmatprep.subr.mxu0 0.0
        %617 = vmatpush2.msra.mxu0 0.0
        %618 = vmatprep.subr.mxu0 0.0
        %619 = vmatpush2.msra.mxu0 0.0
        %620 = vmatprep.subr.mxu0 0.0
        %621 = vmatpush2.msra.mxu0 0.0
        %622 = vmatprep.subr.mxu0 0.0
        %623 = vmatpush2.msra.mxu0 0.0
        %624 = vmatprep.subr.mxu0 0.0
        %625 = vmatpush2.msra.mxu0 0.0
        %626 = vmatprep.subr.mxu0 0.0
        %627 = vmatpush2.msra.mxu0 0.0
        %628 = vmatprep.subr.mxu0 0.0
        %629 = vmatpush2.msra.mxu0 0.0
        %630 = vmatprep.subr.mxu0 0.0
        %631 = vmatpush2.msra.mxu0 0.0
        %632 = vmatprep.subr.mxu0 0.0
        %633 = vmatpush2.msra.mxu0 0.0
        %634 = vmatprep.subr.mxu0 0.0
        %635 = vmatpush2.msra.mxu0 0.0
        %636 = vmatprep.subr.mxu0 0.0
        %637 = vmatpush2.msra.mxu0 0.0
        %638 = vmatprep.subr.mxu0 0.0
        %639 = vmatpush2.msra.mxu0 0.0
        %640 = vmatprep.mubr.f32.mxu0 0.0
        %v641 = vand.u32 %v569, 4294901760
        %v642 = vsub.f32 %v569, %v641
        %v643 = vand.u32 %v642, 4294901760
        %v644 = vsub.f32 %v642, %v643
        %v645 = vand.u32 %v644, 4294901760
        %646 = vmatmul.mubr.f32.gmra.mxu0 %v645
        %v647 = vpop.f32.mrf.mxu0
        %v648 = vadd.f32 %v566, %v647
        %v649 = vpop.f32.mrf.mxu0
        %650 = vdwg.mxu0
        %651 = vmatprep.subr.mxu0 0.0
        %652 = vmatpush1.msra.mxu0 0.0
        %653 = vmatprep.subr.mxu0 0.0
        %654 = vmatpush1.msra.mxu0 0.0
        %655 = vmatprep.subr.mxu0 0.0
        %656 = vmatpush1.msra.mxu0 0.0
        %657 = vmatprep.subr.mxu0 0.0
        %658 = vmatpush1.msra.mxu0 0.0
        %659 = vmatprep.subr.mxu0 0.0
        %660 = vmatpush1.msra.mxu0 0.0
        %661 = vmatprep.subr.mxu0 0.0
        %662 = vmatpush1.msra.mxu0 0.0
        %663 = vmatprep.subr.mxu0 0.0
        %664 = vmatpush1.msra.mxu0 0.0
        %665 = vmatprep.subr.mxu0 0.0
        %666 = vmatpush1.msra.mxu0 0.0
        %667 = vmatprep.subr.mxu0 0.0
        %668 = vmatpush1.msra.mxu0 0.0
        %669 = vmatprep.subr.mxu0 0.0
        %670 = vmatpush1.msra.mxu0 0.0
        %671 = vmatprep.subr.mxu0 0.0
        %672 = vmatpush1.msra.mxu0 0.0
        %673 = vmatprep.subr.mxu0 0.0
        %674 = vmatpush1.msra.mxu0 0.0
        %675 = vmatprep.subr.mxu0 0.0
        %676 = vmatpush1.msra.mxu0 0.0
        %677 = vmatprep.subr.mxu0 0.0
        %678 = vmatpush1.msra.mxu0 0.0
        %679 = vmatprep.subr.mxu0 0.0
        %680 = vmatpush1.msra.mxu0 0.0
        %681 = vmatprep.subr.mxu0 0.0
        %v682 = vand.u32 %v573, 4294901760
        %v683 = vsub.f32 %v573, %v682
        %v684 = vand.u32 %v683, 4294901760
        %v685 = vsub.f32 %v683, %v684
        %v686 = vand.u32 %v685, 4294901760
        %687 = vmatpush1.msra.mxu0 %v686
        %688 = vmatprep.subr.mxu0 0.0
        %689 = vmatpush2.msra.mxu0 0.0
        %690 = vmatprep.subr.mxu0 0.0
        %691 = vmatpush2.msra.mxu0 0.0
        %692 = vmatprep.subr.mxu0 0.0
        %693 = vmatpush2.msra.mxu0 0.0
        %694 = vmatprep.subr.mxu0 0.0
        %695 = vmatpush2.msra.mxu0 0.0
        %696 = vmatprep.subr.mxu0 0.0
        %697 = vmatpush2.msra.mxu0 0.0
        %698 = vmatprep.subr.mxu0 0.0
        %699 = vmatpush2.msra.mxu0 0.0
        %700 = vmatprep.subr.mxu0 0.0
        %701 = vmatpush2.msra.mxu0 0.0
        %702 = vmatprep.subr.mxu0 0.0
        %703 = vmatpush2.msra.mxu0 0.0
        %704 = vmatprep.subr.mxu0 0.0
        %705 = vmatpush2.msra.mxu0 0.0
        %706 = vmatprep.subr.mxu0 0.0
        %707 = vmatpush2.msra.mxu0 0.0
        %708 = vmatprep.subr.mxu0 0.0
        %709 = vmatpush2.msra.mxu0 0.0
        %710 = vmatprep.subr.mxu0 0.0
        %711 = vmatpush2.msra.mxu0 0.0
        %712 = vmatprep.subr.mxu0 0.0
        %713 = vmatpush2.msra.mxu0 0.0
        %714 = vmatprep.subr.mxu0 0.0
        %715 = vmatpush2.msra.mxu0 0.0
        %716 = vmatprep.subr.mxu0 0.0
        %717 = vmatpush2.msra.mxu0 0.0
        %718 = vmatprep.subr.mxu0 0.0
        %719 = vmatpush2.msra.mxu0 0.0
        %720 = vmatprep.mubr.f32.mxu0 0.0
        %v721 = vand.u32 %v569, 4294901760
        %722 = vmatmul.mubr.f32.gmra.mxu0 %v721
        %v723 = vpop.f32.mrf.mxu0
        %v724 = vadd.f32 %v648, %v723
        %v725 = vpop.f32.mrf.mxu0
        %726 = vdwg.mxu0
        %727 = vmatprep.subr.mxu0 0.0
        %728 = vmatpush1.msra.mxu0 0.0
        %729 = vmatprep.subr.mxu0 0.0
        %730 = vmatpush1.msra.mxu0 0.0
        %731 = vmatprep.subr.mxu0 0.0
        %732 = vmatpush1.msra.mxu0 0.0
        %733 = vmatprep.subr.mxu0 0.0
        %734 = vmatpush1.msra.mxu0 0.0
        %735 = vmatprep.subr.mxu0 0.0
        %736 = vmatpush1.msra.mxu0 0.0
        %737 = vmatprep.subr.mxu0 0.0
        %738 = vmatpush1.msra.mxu0 0.0
        %739 = vmatprep.subr.mxu0 0.0
        %740 = vmatpush1.msra.mxu0 0.0
        %741 = vmatprep.subr.mxu0 0.0
        %742 = vmatpush1.msra.mxu0 0.0
        %743 = vmatprep.subr.mxu0 0.0
        %744 = vmatpush1.msra.mxu0 0.0
        %745 = vmatprep.subr.mxu0 0.0
        %746 = vmatpush1.msra.mxu0 0.0
        %747 = vmatprep.subr.mxu0 0.0
        %748 = vmatpush1.msra.mxu0 0.0
        %749 = vmatprep.subr.mxu0 0.0
        %750 = vmatpush1.msra.mxu0 0.0
        %751 = vmatprep.subr.mxu0 0.0
        %752 = vmatpush1.msra.mxu0 0.0
        %753 = vmatprep.subr.mxu0 0.0
        %754 = vmatpush1.msra.mxu0 0.0
        %755 = vmatprep.subr.mxu0 0.0
        %756 = vmatpush1.msra.mxu0 0.0
        %757 = vmatprep.subr.mxu0 0.0
        %v758 = vand.u32 %v573, 4294901760
        %v759 = vsub.f32 %v573, %v758
        %760 = vmatpush1.msra.mxu0 %v759
        %761 = vmatprep.subr.mxu0 0.0
        %762 = vmatpush2.msra.mxu0 0.0
        %763 = vmatprep.subr.mxu0 0.0
        %764 = vmatpush2.msra.mxu0 0.0
        %765 = vmatprep.subr.mxu0 0.0
        %766 = vmatpush2.msra.mxu0 0.0
        %767 = vmatprep.subr.mxu0 0.0
        %768 = vmatpush2.msra.mxu0 0.0
        %769 = vmatprep.subr.mxu0 0.0
        %770 = vmatpush2.msra.mxu0 0.0
        %771 = vmatprep.subr.mxu0 0.0
        %772 = vmatpush2.msra.mxu0 0.0
        %773 = vmatprep.subr.mxu0 0.0
        %774 = vmatpush2.msra.mxu0 0.0
        %775 = vmatprep.subr.mxu0 0.0
        %776 = vmatpush2.msra.mxu0 0.0
        %777 = vmatprep.subr.mxu0 0.0
        %778 = vmatpush2.msra.mxu0 0.0
        %779 = vmatprep.subr.mxu0 0.0
        %780 = vmatpush2.msra.mxu0 0.0
        %781 = vmatprep.subr.mxu0 0.0
        %782 = vmatpush2.msra.mxu0 0.0
        %783 = vmatprep.subr.mxu0 0.0
        %784 = vmatpush2.msra.mxu0 0.0
        %785 = vmatprep.subr.mxu0 0.0
        %786 = vmatpush2.msra.mxu0 0.0
        %787 = vmatprep.subr.mxu0 0.0
        %788 = vmatpush2.msra.mxu0 0.0
        %789 = vmatprep.subr.mxu0 0.0
        %790 = vmatpush2.msra.mxu0 0.0
        %791 = vmatprep.subr.mxu0 0.0
        %792 = vmatpush2.msra.mxu0 0.0
        %793 = vmatprep.mubr.f32.mxu0 0.0
        %v794 = vand.u32 %v569, 4294901760
        %v795 = vsub.f32 %v569, %v794
        %796 = vmatmul.mubr.f32.gmra.mxu0 %v795
        %v797 = vpop.f32.mrf.mxu0
        %v798 = vadd.f32 %v724, %v797
        %v799 = vpop.f32.mrf.mxu0
        %800 = vdwg.mxu0
        %801 = vmatprep.subr.mxu0 0.0
        %802 = vmatpush1.msra.mxu0 0.0
        %803 = vmatprep.subr.mxu0 0.0
        %804 = vmatpush1.msra.mxu0 0.0
        %805 = vmatprep.subr.mxu0 0.0
        %806 = vmatpush1.msra.mxu0 0.0
        %807 = vmatprep.subr.mxu0 0.0
        %808 = vmatpush1.msra.mxu0 0.0
        %809 = vmatprep.subr.mxu0 0.0
        %810 = vmatpush1.msra.mxu0 0.0
        %811 = vmatprep.subr.mxu0 0.0
        %812 = vmatpush1.msra.mxu0 0.0
        %813 = vmatprep.subr.mxu0 0.0
        %814 = vmatpush1.msra.mxu0 0.0
        %815 = vmatprep.subr.mxu0 0.0
        %816 = vmatpush1.msra.mxu0 0.0
        %817 = vmatprep.subr.mxu0 0.0
        %818 = vmatpush1.msra.mxu0 0.0
        %819 = vmatprep.subr.mxu0 0.0
        %820 = vmatpush1.msra.mxu0 0.0
        %821 = vmatprep.subr.mxu0 0.0
        %822 = vmatpush1.msra.mxu0 0.0
        %823 = vmatprep.subr.mxu0 0.0
        %824 = vmatpush1.msra.mxu0 0.0
        %825 = vmatprep.subr.mxu0 0.0
        %826 = vmatpush1.msra.mxu0 0.0
        %827 = vmatprep.subr.mxu0 0.0
        %828 = vmatpush1.msra.mxu0 0.0
        %829 = vmatprep.subr.mxu0 0.0
        %830 = vmatpush1.msra.mxu0 0.0
        %831 = vmatprep.subr.mxu0 0.0
        %v832 = vand.u32 %v573, 4294901760
        %833 = vmatpush1.msra.mxu0 %v832
        %834 = vmatprep.subr.mxu0 0.0
        %835 = vmatpush2.msra.mxu0 0.0
        %836 = vmatprep.subr.mxu0 0.0
        %837 = vmatpush2.msra.mxu0 0.0
        %838 = vmatprep.subr.mxu0 0.0
        %839 = vmatpush2.msra.mxu0 0.0
        %840 = vmatprep.subr.mxu0 0.0
        %841 = vmatpush2.msra.mxu0 0.0
        %842 = vmatprep.subr.mxu0 0.0
        %843 = vmatpush2.msra.mxu0 0.0
        %844 = vmatprep.subr.mxu0 0.0
        %845 = vmatpush2.msra.mxu0 0.0
        %846 = vmatprep.subr.mxu0 0.0
        %847 = vmatpush2.msra.mxu0 0.0
        %848 = vmatprep.subr.mxu0 0.0
        %849 = vmatpush2.msra.mxu0 0.0
        %850 = vmatprep.subr.mxu0 0.0
        %851 = vmatpush2.msra.mxu0 0.0
        %852 = vmatprep.subr.mxu0 0.0
        %853 = vmatpush2.msra.mxu0 0.0
        %854 = vmatprep.subr.mxu0 0.0
        %855 = vmatpush2.msra.mxu0 0.0
        %856 = vmatprep.subr.mxu0 0.0
        %857 = vmatpush2.msra.mxu0 0.0
        %858 = vmatprep.subr.mxu0 0.0
        %859 = vmatpush2.msra.mxu0 0.0
        %860 = vmatprep.subr.mxu0 0.0
        %861 = vmatpush2.msra.mxu0 0.0
        %862 = vmatprep.subr.mxu0 0.0
        %863 = vmatpush2.msra.mxu0 0.0
        %864 = vmatprep.subr.mxu0 0.0
        %865 = vmatpush2.msra.mxu0 0.0
        %866 = vmatprep.mubr.f32.mxu0 0.0
        %v867 = vand.u32 %v569, 4294901760
        %v868 = vsub.f32 %v569, %v867
        %v869 = vand.u32 %v868, 4294901760
        %870 = vmatmul.mubr.f32.gmra.mxu0 %v869
        %v871 = vpop.f32.mrf.mxu0
        %v872 = vadd.f32 %v798, %v871
        %v873 = vpop.f32.mrf.mxu0
        %874 = vdwg.mxu0
        %875 = vmatprep.subr.mxu0 0.0
        %876 = vmatpush1.msra.mxu0 0.0
        %877 = vmatprep.subr.mxu0 0.0
        %878 = vmatpush1.msra.mxu0 0.0
        %879 = vmatprep.subr.mxu0 0.0
        %880 = vmatpush1.msra.mxu0 0.0
        %881 = vmatprep.subr.mxu0 0.0
        %882 = vmatpush1.msra.mxu0 0.0
        %883 = vmatprep.subr.mxu0 0.0
        %884 = vmatpush1.msra.mxu0 0.0
        %885 = vmatprep.subr.mxu0 0.0
        %886 = vmatpush1.msra.mxu0 0.0
        %887 = vmatprep.subr.mxu0 0.0
        %888 = vmatpush1.msra.mxu0 0.0
        %889 = vmatprep.subr.mxu0 0.0
        %890 = vmatpush1.msra.mxu0 0.0
        %891 = vmatprep.subr.mxu0 0.0
        %892 = vmatpush1.msra.mxu0 0.0
        %893 = vmatprep.subr.mxu0 0.0
        %894 = vmatpush1.msra.mxu0 0.0
        %895 = vmatprep.subr.mxu0 0.0
        %896 = vmatpush1.msra.mxu0 0.0
        %897 = vmatprep.subr.mxu0 0.0
        %898 = vmatpush1.msra.mxu0 0.0
        %899 = vmatprep.subr.mxu0 0.0
        %900 = vmatpush1.msra.mxu0 0.0
        %901 = vmatprep.subr.mxu0 0.0
        %902 = vmatpush1.msra.mxu0 0.0
        %903 = vmatprep.subr.mxu0 0.0
        %904 = vmatpush1.msra.mxu0 0.0
        %905 = vmatprep.subr.mxu0 0.0
        %v906 = vand.u32 %v573, 4294901760
        %v907 = vsub.f32 %v573, %v906
        %v908 = vand.u32 %v907, 4294901760
        %909 = vmatpush1.msra.mxu0 %v908
        %910 = vmatprep.subr.mxu0 0.0
        %911 = vmatpush2.msra.mxu0 0.0
        %912 = vmatprep.subr.mxu0 0.0
        %913 = vmatpush2.msra.mxu0 0.0
        %914 = vmatprep.subr.mxu0 0.0
        %915 = vmatpush2.msra.mxu0 0.0
        %916 = vmatprep.subr.mxu0 0.0
        %917 = vmatpush2.msra.mxu0 0.0
        %918 = vmatprep.subr.mxu0 0.0
        %919 = vmatpush2.msra.mxu0 0.0
        %920 = vmatprep.subr.mxu0 0.0
        %921 = vmatpush2.msra.mxu0 0.0
        %922 = vmatprep.subr.mxu0 0.0
        %923 = vmatpush2.msra.mxu0 0.0
        %924 = vmatprep.subr.mxu0 0.0
        %925 = vmatpush2.msra.mxu0 0.0
        %926 = vmatprep.subr.mxu0 0.0
        %927 = vmatpush2.msra.mxu0 0.0
        %928 = vmatprep.subr.mxu0 0.0
        %929 = vmatpush2.msra.mxu0 0.0
        %930 = vmatprep.subr.mxu0 0.0
        %931 = vmatpush2.msra.mxu0 0.0
        %932 = vmatprep.subr.mxu0 0.0
        %933 = vmatpush2.msra.mxu0 0.0
        %934 = vmatprep.subr.mxu0 0.0
        %935 = vmatpush2.msra.mxu0 0.0
        %936 = vmatprep.subr.mxu0 0.0
        %937 = vmatpush2.msra.mxu0 0.0
        %938 = vmatprep.subr.mxu0 0.0
        %939 = vmatpush2.msra.mxu0 0.0
        %940 = vmatprep.subr.mxu0 0.0
        %941 = vmatpush2.msra.mxu0 0.0
        %942 = vmatprep.mubr.f32.mxu0 0.0
        %v943 = vand.u32 %v569, 4294901760
        %944 = vmatmul.mubr.f32.gmra.mxu0 %v943
        %v945 = vpop.f32.mrf.mxu0
        %v946 = vadd.f32 %v872, %v945
        %v947 = vpop.f32.mrf.mxu0
        %948 = vdwg.mxu0
        %949 = vmatprep.subr.mxu0 0.0
        %950 = vmatpush1.msra.mxu0 0.0
        %951 = vmatprep.subr.mxu0 0.0
        %952 = vmatpush1.msra.mxu0 0.0
        %953 = vmatprep.subr.mxu0 0.0
        %954 = vmatpush1.msra.mxu0 0.0
        %955 = vmatprep.subr.mxu0 0.0
        %956 = vmatpush1.msra.mxu0 0.0
        %957 = vmatprep.subr.mxu0 0.0
        %958 = vmatpush1.msra.mxu0 0.0
        %959 = vmatprep.subr.mxu0 0.0
        %960 = vmatpush1.msra.mxu0 0.0
        %961 = vmatprep.subr.mxu0 0.0
        %962 = vmatpush1.msra.mxu0 0.0
        %963 = vmatprep.subr.mxu0 0.0
        %964 = vmatpush1.msra.mxu0 0.0
        %965 = vmatprep.subr.mxu0 0.0
        %966 = vmatpush1.msra.mxu0 0.0
        %967 = vmatprep.subr.mxu0 0.0
        %968 = vmatpush1.msra.mxu0 0.0
        %969 = vmatprep.subr.mxu0 0.0
        %970 = vmatpush1.msra.mxu0 0.0
        %971 = vmatprep.subr.mxu0 0.0
        %972 = vmatpush1.msra.mxu0 0.0
        %973 = vmatprep.subr.mxu0 0.0
        %974 = vmatpush1.msra.mxu0 0.0
        %975 = vmatprep.subr.mxu0 0.0
        %976 = vmatpush1.msra.mxu0 0.0
        %977 = vmatprep.subr.mxu0 0.0
        %978 = vmatpush1.msra.mxu0 0.0
        %979 = vmatprep.subr.mxu0 0.0
        %v980 = vand.u32 %v573, 4294901760
        %981 = vmatpush1.msra.mxu0 %v980
        %982 = vmatprep.subr.mxu0 0.0
        %983 = vmatpush2.msra.mxu0 0.0
        %984 = vmatprep.subr.mxu0 0.0
        %985 = vmatpush2.msra.mxu0 0.0
        %986 = vmatprep.subr.mxu0 0.0
        %987 = vmatpush2.msra.mxu0 0.0
        %988 = vmatprep.subr.mxu0 0.0
        %989 = vmatpush2.msra.mxu0 0.0
        %990 = vmatprep.subr.mxu0 0.0
        %991 = vmatpush2.msra.mxu0 0.0
        %992 = vmatprep.subr.mxu0 0.0
        %993 = vmatpush2.msra.mxu0 0.0
        %994 = vmatprep.subr.mxu0 0.0
        %995 = vmatpush2.msra.mxu0 0.0
        %996 = vmatprep.subr.mxu0 0.0
        %997 = vmatpush2.msra.mxu0 0.0
        %998 = vmatprep.subr.mxu0 0.0
        %999 = vmatpush2.msra.mxu0 0.0
        %1000 = vmatprep.subr.mxu0 0.0
        %1001 = vmatpush2.msra.mxu0 0.0
        %1002 = vmatprep.subr.mxu0 0.0
        %1003 = vmatpush2.msra.mxu0 0.0
        %1004 = vmatprep.subr.mxu0 0.0
        %1005 = vmatpush2.msra.mxu0 0.0
        %1006 = vmatprep.subr.mxu0 0.0
        %1007 = vmatpush2.msra.mxu0 0.0
        %1008 = vmatprep.subr.mxu0 0.0
        %1009 = vmatpush2.msra.mxu0 0.0
        %1010 = vmatprep.subr.mxu0 0.0
        %1011 = vmatpush2.msra.mxu0 0.0
        %1012 = vmatprep.subr.mxu0 0.0
        %1013 = vmatpush2.msra.mxu0 0.0
        %1014 = vmatprep.mubr.f32.mxu0 0.0
        %v1015 = vand.u32 %v569, 4294901760
        %1016 = vmatmul.mubr.f32.gmra.mxu0 %v1015
        %v1017 = vpop.f32.mrf.mxu0
        %v1018 = vadd.f32 %v946, %v1017
        %v1019 = vpop.f32.mrf.mxu0
        %1020 = vdwg.mxu0
        %v1021 = vld [vmem:[%s2] sm:$0xff]
        %v1022 = vadd.f32 %v1018, %v1021
        %v1023 = vld [vmem:[%s4] sm:$0xff]
        %v1024 = vld [vmem:[%s4 + $0x8] sm:$0xff]
        %v1025 = vld [vmem:[%s4 + $0x10] sm:$0xff]
        %v1026 = vld [vmem:[%s4 + $0x18] sm:$0xff]
        %v1027 = vld [vmem:[%s5] sm:$0x1]
        %v1029 = vlaneseq
        %v1030 = vshrl.u32 %v1029, 7
        %v1031 = vsub.s32 0, %v1030
        %v1032 = vrot.slane %v1027, %v1031
        %vm1034 = vcmask 261120
        %v1036 = vsel %vm1034, %v1022, 0
        %1038 = vmatprep.subr.mxu0 0.0
        %1039 = vmatpush1.msra.mxu0 0.0
        %1040 = vmatprep.subr.mxu0 0.0
        %1041 = vmatpush1.msra.mxu0 0.0
        %1042 = vmatprep.subr.mxu0 0.0
        %1043 = vmatpush1.msra.mxu0 0.0
        %1044 = vmatprep.subr.mxu0 0.0
        %1045 = vmatpush1.msra.mxu0 0.0
        %1046 = vmatprep.subr.mxu0 0.0
        %1047 = vmatpush1.msra.mxu0 0.0
        %1048 = vmatprep.subr.mxu0 0.0
        %1049 = vmatpush1.msra.mxu0 0.0
        %1050 = vmatprep.subr.mxu0 0.0
        %1051 = vmatpush1.msra.mxu0 0.0
        %1052 = vmatprep.subr.mxu0 0.0
        %1053 = vmatpush1.msra.mxu0 0.0
        %1054 = vmatprep.subr.mxu0 0.0
        %1055 = vmatpush1.msra.mxu0 0.0
        %1056 = vmatprep.subr.mxu0 0.0
        %1057 = vmatpush1.msra.mxu0 0.0
        %1058 = vmatprep.subr.mxu0 0.0
        %1059 = vmatpush1.msra.mxu0 0.0
        %1060 = vmatprep.subr.mxu0 0.0
        %1061 = vmatpush1.msra.mxu0 0.0
        %1062 = vmatprep.subr.mxu0 0.0
        %v1063 = vand.u32 %v1026, 4294901760
        %1064 = vmatpush1.msra.mxu0 %v1063
        %1065 = vmatprep.subr.mxu0 0.0
        %v1066 = vand.u32 %v1025, 4294901760
        %1067 = vmatpush1.msra.mxu0 %v1066
        %1068 = vmatprep.subr.mxu0 0.0
        %v1069 = vand.u32 %v1024, 4294901760
        %1070 = vmatpush1.msra.mxu0 %v1069
        %1071 = vmatprep.subr.mxu0 0.0
        %v1072 = vand.u32 %v1023, 4294901760
        %1073 = vmatpush1.msra.mxu0 %v1072
        %1074 = vmatprep.subr.mxu0 0.0
        %1075 = vmatpush2.msra.mxu0 0.0
        %1076 = vmatprep.subr.mxu0 0.0
        %1077 = vmatpush2.msra.mxu0 0.0
        %1078 = vmatprep.subr.mxu0 0.0
        %1079 = vmatpush2.msra.mxu0 0.0
        %1080 = vmatprep.subr.mxu0 0.0
        %1081 = vmatpush2.msra.mxu0 0.0
        %1082 = vmatprep.subr.mxu0 0.0
        %1083 = vmatpush2.msra.mxu0 0.0
        %1084 = vmatprep.subr.mxu0 0.0
        %1085 = vmatpush2.msra.mxu0 0.0
        %1086 = vmatprep.subr.mxu0 0.0
        %1087 = vmatpush2.msra.mxu0 0.0
        %1088 = vmatprep.subr.mxu0 0.0
        %1089 = vmatpush2.msra.mxu0 0.0
        %1090 = vmatprep.subr.mxu0 0.0
        %1091 = vmatpush2.msra.mxu0 0.0
        %1092 = vmatprep.subr.mxu0 0.0
        %1093 = vmatpush2.msra.mxu0 0.0
        %1094 = vmatprep.subr.mxu0 0.0
        %1095 = vmatpush2.msra.mxu0 0.0
        %1096 = vmatprep.subr.mxu0 0.0
        %1097 = vmatpush2.msra.mxu0 0.0
        %1098 = vmatprep.subr.mxu0 0.0
        %1099 = vmatpush2.msra.mxu0 0.0
        %1100 = vmatprep.subr.mxu0 0.0
        %1101 = vmatpush2.msra.mxu0 0.0
        %1102 = vmatprep.subr.mxu0 0.0
        %1103 = vmatpush2.msra.mxu0 0.0
        %1104 = vmatprep.subr.mxu0 0.0
        %1105 = vmatpush2.msra.mxu0 0.0
        %1106 = vmatprep.mubr.f32.mxu0 0.0
        %v1107 = vand.u32 %v1036, 4294901760
        %v1108 = vsub.f32 %v1036, %v1107
        %v1109 = vand.u32 %v1108, 4294901760
        %v1110 = vsub.f32 %v1108, %v1109
        %v1111 = vand.u32 %v1110, 4294901760
        %1112 = vmatmul.mubr.f32.gmra.mxu0 %v1111
        %v1113 = vpop.f32.mrf.mxu0
        %v1114 = vadd.f32 %v1032, %v1113
        %v1115 = vpop.f32.mrf.mxu0
        %1116 = vdwg.mxu0
        %1117 = vmatprep.subr.mxu0 0.0
        %1118 = vmatpush1.msra.mxu0 0.0
        %1119 = vmatprep.subr.mxu0 0.0
        %1120 = vmatpush1.msra.mxu0 0.0
        %1121 = vmatprep.subr.mxu0 0.0
        %1122 = vmatpush1.msra.mxu0 0.0
        %1123 = vmatprep.subr.mxu0 0.0
        %1124 = vmatpush1.msra.mxu0 0.0
        %1125 = vmatprep.subr.mxu0 0.0
        %1126 = vmatpush1.msra.mxu0 0.0
        %1127 = vmatprep.subr.mxu0 0.0
        %1128 = vmatpush1.msra.mxu0 0.0
        %1129 = vmatprep.subr.mxu0 0.0
        %1130 = vmatpush1.msra.mxu0 0.0
        %1131 = vmatprep.subr.mxu0 0.0
        %1132 = vmatpush1.msra.mxu0 0.0
        %1133 = vmatprep.subr.mxu0 0.0
        %1134 = vmatpush1.msra.mxu0 0.0
        %1135 = vmatprep.subr.mxu0 0.0
        %1136 = vmatpush1.msra.mxu0 0.0
        %1137 = vmatprep.subr.mxu0 0.0
        %1138 = vmatpush1.msra.mxu0 0.0
        %1139 = vmatprep.subr.mxu0 0.0
        %1140 = vmatpush1.msra.mxu0 0.0
        %1141 = vmatprep.subr.mxu0 0.0
        %v1142 = vand.u32 %v1026, 4294901760
        %v1143 = vsub.f32 %v1026, %v1142
        %v1144 = vand.u32 %v1143, 4294901760
        %v1145 = vsub.f32 %v1143, %v1144
        %v1146 = vand.u32 %v1145, 4294901760
        %1147 = vmatpush1.msra.mxu0 %v1146
        %1148 = vmatprep.subr.mxu0 0.0
        %v1149 = vand.u32 %v1025, 4294901760
        %v1150 = vsub.f32 %v1025, %v1149
        %v1151 = vand.u32 %v1150, 4294901760
        %v1152 = vsub.f32 %v1150, %v1151
        %v1153 = vand.u32 %v1152, 4294901760
        %1154 = vmatpush1.msra.mxu0 %v1153
        %1155 = vmatprep.subr.mxu0 0.0
        %v1156 = vand.u32 %v1024, 4294901760
        %v1157 = vsub.f32 %v1024, %v1156
        %v1158 = vand.u32 %v1157, 4294901760
        %v1159 = vsub.f32 %v1157, %v1158
        %v1160 = vand.u32 %v1159, 4294901760
        %1161 = vmatpush1.msra.mxu0 %v1160
        %1162 = vmatprep.subr.mxu0 0.0
        %v1163 = vand.u32 %v1023, 4294901760
        %v1164 = vsub.f32 %v1023, %v1163
        %v1165 = vand.u32 %v1164, 4294901760
        %v1166 = vsub.f32 %v1164, %v1165
        %v1167 = vand.u32 %v1166, 4294901760
        %1168 = vmatpush1.msra.mxu0 %v1167
        %1169 = vmatprep.subr.mxu0 0.0
        %1170 = vmatpush2.msra.mxu0 0.0
        %1171 = vmatprep.subr.mxu0 0.0
        %1172 = vmatpush2.msra.mxu0 0.0
        %1173 = vmatprep.subr.mxu0 0.0
        %1174 = vmatpush2.msra.mxu0 0.0
        %1175 = vmatprep.subr.mxu0 0.0
        %1176 = vmatpush2.msra.mxu0 0.0
        %1177 = vmatprep.subr.mxu0 0.0
        %1178 = vmatpush2.msra.mxu0 0.0
        %1179 = vmatprep.subr.mxu0 0.0
        %1180 = vmatpush2.msra.mxu0 0.0
        %1181 = vmatprep.subr.mxu0 0.0
        %1182 = vmatpush2.msra.mxu0 0.0
        %1183 = vmatprep.subr.mxu0 0.0
        %1184 = vmatpush2.msra.mxu0 0.0
        %1185 = vmatprep.subr.mxu0 0.0
        %1186 = vmatpush2.msra.mxu0 0.0
        %1187 = vmatprep.subr.mxu0 0.0
        %1188 = vmatpush2.msra.mxu0 0.0
        %1189 = vmatprep.subr.mxu0 0.0
        %1190 = vmatpush2.msra.mxu0 0.0
        %1191 = vmatprep.subr.mxu0 0.0
        %1192 = vmatpush2.msra.mxu0 0.0
        %1193 = vmatprep.subr.mxu0 0.0
        %1194 = vmatpush2.msra.mxu0 0.0
        %1195 = vmatprep.subr.mxu0 0.0
        %1196 = vmatpush2.msra.mxu0 0.0
        %1197 = vmatprep.subr.mxu0 0.0
        %1198 = vmatpush2.msra.mxu0 0.0
        %1199 = vmatprep.subr.mxu0 0.0
        %1200 = vmatpush2.msra.mxu0 0.0
        %1201 = vmatprep.mubr.f32.mxu0 0.0
        %v1202 = vand.u32 %v1036, 4294901760
        %1203 = vmatmul.mubr.f32.gmra.mxu0 %v1202
        %v1204 = vpop.f32.mrf.mxu0
        %v1205 = vadd.f32 %v1114, %v1204
        %v1206 = vpop.f32.mrf.mxu0
        %1207 = vdwg.mxu0
        %1208 = vmatprep.subr.mxu0 0.0
        %1209 = vmatpush1.msra.mxu0 0.0
        %1210 = vmatprep.subr.mxu0 0.0
        %1211 = vmatpush1.msra.mxu0 0.0
        %1212 = vmatprep.subr.mxu0 0.0
        %1213 = vmatpush1.msra.mxu0 0.0
        %1214 = vmatprep.subr.mxu0 0.0
        %1215 = vmatpush1.msra.mxu0 0.0
        %1216 = vmatprep.subr.mxu0 0.0
        %1217 = vmatpush1.msra.mxu0 0.0
        %1218 = vmatprep.subr.mxu0 0.0
        %1219 = vmatpush1.msra.mxu0 0.0
        %1220 = vmatprep.subr.mxu0 0.0
        %1221 = vmatpush1.msra.mxu0 0.0
        %1222 = vmatprep.subr.mxu0 0.0
        %1223 = vmatpush1.msra.mxu0 0.0
        %1224 = vmatprep.subr.mxu0 0.0
        %1225 = vmatpush1.msra.mxu0 0.0
        %1226 = vmatprep.subr.mxu0 0.0
        %1227 = vmatpush1.msra.mxu0 0.0
        %1228 = vmatprep.subr.mxu0 0.0
        %1229 = vmatpush1.msra.mxu0 0.0
        %1230 = vmatprep.subr.mxu0 0.0
        %1231 = vmatpush1.msra.mxu0 0.0
        %1232 = vmatprep.subr.mxu0 0.0
        %v1233 = vand.u32 %v1026, 4294901760
        %v1234 = vsub.f32 %v1026, %v1233
        %1235 = vmatpush1.msra.mxu0 %v1234
        %1236 = vmatprep.subr.mxu0 0.0
        %v1237 = vand.u32 %v1025, 4294901760
        %v1238 = vsub.f32 %v1025, %v1237
        %1239 = vmatpush1.msra.mxu0 %v1238
        %1240 = vmatprep.subr.mxu0 0.0
        %v1241 = vand.u32 %v1024, 4294901760
        %v1242 = vsub.f32 %v1024, %v1241
        %1243 = vmatpush1.msra.mxu0 %v1242
        %1244 = vmatprep.subr.mxu0 0.0
        %v1245 = vand.u32 %v1023, 4294901760
        %v1246 = vsub.f32 %v1023, %v1245
        %1247 = vmatpush1.msra.mxu0 %v1246
        %1248 = vmatprep.subr.mxu0 0.0
        %1249 = vmatpush2.msra.mxu0 0.0
        %1250 = vmatprep.subr.mxu0 0.0
        %1251 = vmatpush2.msra.mxu0 0.0
        %1252 = vmatprep.subr.mxu0 0.0
        %1253 = vmatpush2.msra.mxu0 0.0
        %1254 = vmatprep.subr.mxu0 0.0
        %1255 = vmatpush2.msra.mxu0 0.0
        %1256 = vmatprep.subr.mxu0 0.0
        %1257 = vmatpush2.msra.mxu0 0.0
        %1258 = vmatprep.subr.mxu0 0.0
        %1259 = vmatpush2.msra.mxu0 0.0
        %1260 = vmatprep.subr.mxu0 0.0
        %1261 = vmatpush2.msra.mxu0 0.0
        %1262 = vmatprep.subr.mxu0 0.0
        %1263 = vmatpush2.msra.mxu0 0.0
        %1264 = vmatprep.subr.mxu0 0.0
        %1265 = vmatpush2.msra.mxu0 0.0
        %1266 = vmatprep.subr.mxu0 0.0
        %1267 = vmatpush2.msra.mxu0 0.0
        %1268 = vmatprep.subr.mxu0 0.0
        %1269 = vmatpush2.msra.mxu0 0.0
        %1270 = vmatprep.subr.mxu0 0.0
        %1271 = vmatpush2.msra.mxu0 0.0
        %1272 = vmatprep.subr.mxu0 0.0
        %1273 = vmatpush2.msra.mxu0 0.0
        %1274 = vmatprep.subr.mxu0 0.0
        %1275 = vmatpush2.msra.mxu0 0.0
        %1276 = vmatprep.subr.mxu0 0.0
        %1277 = vmatpush2.msra.mxu0 0.0
        %1278 = vmatprep.subr.mxu0 0.0
        %1279 = vmatpush2.msra.mxu0 0.0
        %1280 = vmatprep.mubr.f32.mxu0 0.0
        %v1281 = vand.u32 %v1036, 4294901760
        %v1282 = vsub.f32 %v1036, %v1281
        %1283 = vmatmul.mubr.f32.gmra.mxu0 %v1282
        %v1284 = vpop.f32.mrf.mxu0
        %v1285 = vadd.f32 %v1205, %v1284
        %v1286 = vpop.f32.mrf.mxu0
        %1287 = vdwg.mxu0
        %1288 = vmatprep.subr.mxu0 0.0
        %1289 = vmatpush1.msra.mxu0 0.0
        %1290 = vmatprep.subr.mxu0 0.0
        %1291 = vmatpush1.msra.mxu0 0.0
        %1292 = vmatprep.subr.mxu0 0.0
        %1293 = vmatpush1.msra.mxu0 0.0
        %1294 = vmatprep.subr.mxu0 0.0
        %1295 = vmatpush1.msra.mxu0 0.0
        %1296 = vmatprep.subr.mxu0 0.0
        %1297 = vmatpush1.msra.mxu0 0.0
        %1298 = vmatprep.subr.mxu0 0.0
        %1299 = vmatpush1.msra.mxu0 0.0
        %1300 = vmatprep.subr.mxu0 0.0
        %1301 = vmatpush1.msra.mxu0 0.0
        %1302 = vmatprep.subr.mxu0 0.0
        %1303 = vmatpush1.msra.mxu0 0.0
        %1304 = vmatprep.subr.mxu0 0.0
        %1305 = vmatpush1.msra.mxu0 0.0
        %1306 = vmatprep.subr.mxu0 0.0
        %1307 = vmatpush1.msra.mxu0 0.0
        %1308 = vmatprep.subr.mxu0 0.0
        %1309 = vmatpush1.msra.mxu0 0.0
        %1310 = vmatprep.subr.mxu0 0.0
        %1311 = vmatpush1.msra.mxu0 0.0
        %1312 = vmatprep.subr.mxu0 0.0
        %v1313 = vand.u32 %v1026, 4294901760
        %1314 = vmatpush1.msra.mxu0 %v1313
        %1315 = vmatprep.subr.mxu0 0.0
        %v1316 = vand.u32 %v1025, 4294901760
        %1317 = vmatpush1.msra.mxu0 %v1316
        %1318 = vmatprep.subr.mxu0 0.0
        %v1319 = vand.u32 %v1024, 4294901760
        %1320 = vmatpush1.msra.mxu0 %v1319
        %1321 = vmatprep.subr.mxu0 0.0
        %v1322 = vand.u32 %v1023, 4294901760
        %1323 = vmatpush1.msra.mxu0 %v1322
        %1324 = vmatprep.subr.mxu0 0.0
        %1325 = vmatpush2.msra.mxu0 0.0
        %1326 = vmatprep.subr.mxu0 0.0
        %1327 = vmatpush2.msra.mxu0 0.0
        %1328 = vmatprep.subr.mxu0 0.0
        %1329 = vmatpush2.msra.mxu0 0.0
        %1330 = vmatprep.subr.mxu0 0.0
        %1331 = vmatpush2.msra.mxu0 0.0
        %1332 = vmatprep.subr.mxu0 0.0
        %1333 = vmatpush2.msra.mxu0 0.0
        %1334 = vmatprep.subr.mxu0 0.0
        %1335 = vmatpush2.msra.mxu0 0.0
        %1336 = vmatprep.subr.mxu0 0.0
        %1337 = vmatpush2.msra.mxu0 0.0
        %1338 = vmatprep.subr.mxu0 0.0
        %1339 = vmatpush2.msra.mxu0 0.0
        %1340 = vmatprep.subr.mxu0 0.0
        %1341 = vmatpush2.msra.mxu0 0.0
        %1342 = vmatprep.subr.mxu0 0.0
        %1343 = vmatpush2.msra.mxu0 0.0
        %1344 = vmatprep.subr.mxu0 0.0
        %1345 = vmatpush2.msra.mxu0 0.0
        %1346 = vmatprep.subr.mxu0 0.0
        %1347 = vmatpush2.msra.mxu0 0.0
        %1348 = vmatprep.subr.mxu0 0.0
        %1349 = vmatpush2.msra.mxu0 0.0
        %1350 = vmatprep.subr.mxu0 0.0
        %1351 = vmatpush2.msra.mxu0 0.0
        %1352 = vmatprep.subr.mxu0 0.0
        %1353 = vmatpush2.msra.mxu0 0.0
        %1354 = vmatprep.subr.mxu0 0.0
        %1355 = vmatpush2.msra.mxu0 0.0
        %1356 = vmatprep.mubr.f32.mxu0 0.0
        %v1357 = vand.u32 %v1036, 4294901760
        %v1358 = vsub.f32 %v1036, %v1357
        %v1359 = vand.u32 %v1358, 4294901760
        %1360 = vmatmul.mubr.f32.gmra.mxu0 %v1359
        %v1361 = vpop.f32.mrf.mxu0
        %v1362 = vadd.f32 %v1285, %v1361
        %v1363 = vpop.f32.mrf.mxu0
        %1364 = vdwg.mxu0
        %1365 = vmatprep.subr.mxu0 0.0
        %1366 = vmatpush1.msra.mxu0 0.0
        %1367 = vmatprep.subr.mxu0 0.0
        %1368 = vmatpush1.msra.mxu0 0.0
        %1369 = vmatprep.subr.mxu0 0.0
        %1370 = vmatpush1.msra.mxu0 0.0
        %1371 = vmatprep.subr.mxu0 0.0
        %1372 = vmatpush1.msra.mxu0 0.0
        %1373 = vmatprep.subr.mxu0 0.0
        %1374 = vmatpush1.msra.mxu0 0.0
        %1375 = vmatprep.subr.mxu0 0.0
        %1376 = vmatpush1.msra.mxu0 0.0
        %1377 = vmatprep.subr.mxu0 0.0
        %1378 = vmatpush1.msra.mxu0 0.0
        %1379 = vmatprep.subr.mxu0 0.0
        %1380 = vmatpush1.msra.mxu0 0.0
        %1381 = vmatprep.subr.mxu0 0.0
        %1382 = vmatpush1.msra.mxu0 0.0
        %1383 = vmatprep.subr.mxu0 0.0
        %1384 = vmatpush1.msra.mxu0 0.0
        %1385 = vmatprep.subr.mxu0 0.0
        %1386 = vmatpush1.msra.mxu0 0.0
        %1387 = vmatprep.subr.mxu0 0.0
        %1388 = vmatpush1.msra.mxu0 0.0
        %1389 = vmatprep.subr.mxu0 0.0
        %v1390 = vand.u32 %v1026, 4294901760
        %v1391 = vsub.f32 %v1026, %v1390
        %v1392 = vand.u32 %v1391, 4294901760
        %1393 = vmatpush1.msra.mxu0 %v1392
        %1394 = vmatprep.subr.mxu0 0.0
        %v1395 = vand.u32 %v1025, 4294901760
        %v1396 = vsub.f32 %v1025, %v1395
        %v1397 = vand.u32 %v1396, 4294901760
        %1398 = vmatpush1.msra.mxu0 %v1397
        %1399 = vmatprep.subr.mxu0 0.0
        %v1400 = vand.u32 %v1024, 4294901760
        %v1401 = vsub.f32 %v1024, %v1400
        %v1402 = vand.u32 %v1401, 4294901760
        %1403 = vmatpush1.msra.mxu0 %v1402
        %1404 = vmatprep.subr.mxu0 0.0
        %v1405 = vand.u32 %v1023, 4294901760
        %v1406 = vsub.f32 %v1023, %v1405
        %v1407 = vand.u32 %v1406, 4294901760
        %1408 = vmatpush1.msra.mxu0 %v1407
        %1409 = vmatprep.subr.mxu0 0.0
        %1410 = vmatpush2.msra.mxu0 0.0
        %1411 = vmatprep.subr.mxu0 0.0
        %1412 = vmatpush2.msra.mxu0 0.0
        %1413 = vmatprep.subr.mxu0 0.0
        %1414 = vmatpush2.msra.mxu0 0.0
        %1415 = vmatprep.subr.mxu0 0.0
        %1416 = vmatpush2.msra.mxu0 0.0
        %1417 = vmatprep.subr.mxu0 0.0
        %1418 = vmatpush2.msra.mxu0 0.0
        %1419 = vmatprep.subr.mxu0 0.0
        %1420 = vmatpush2.msra.mxu0 0.0
        %1421 = vmatprep.subr.mxu0 0.0
        %1422 = vmatpush2.msra.mxu0 0.0
        %1423 = vmatprep.subr.mxu0 0.0
        %1424 = vmatpush2.msra.mxu0 0.0
        %1425 = vmatprep.subr.mxu0 0.0
        %1426 = vmatpush2.msra.mxu0 0.0
        %1427 = vmatprep.subr.mxu0 0.0
        %1428 = vmatpush2.msra.mxu0 0.0
        %1429 = vmatprep.subr.mxu0 0.0
        %1430 = vmatpush2.msra.mxu0 0.0
        %1431 = vmatprep.subr.mxu0 0.0
        %1432 = vmatpush2.msra.mxu0 0.0
        %1433 = vmatprep.subr.mxu0 0.0
        %1434 = vmatpush2.msra.mxu0 0.0
        %1435 = vmatprep.subr.mxu0 0.0
        %1436 = vmatpush2.msra.mxu0 0.0
        %1437 = vmatprep.subr.mxu0 0.0
        %1438 = vmatpush2.msra.mxu0 0.0
        %1439 = vmatprep.subr.mxu0 0.0
        %1440 = vmatpush2.msra.mxu0 0.0
        %1441 = vmatprep.mubr.f32.mxu0 0.0
        %v1442 = vand.u32 %v1036, 4294901760
        %1443 = vmatmul.mubr.f32.gmra.mxu0 %v1442
        %v1444 = vpop.f32.mrf.mxu0
        %v1445 = vadd.f32 %v1362, %v1444
        %v1446 = vpop.f32.mrf.mxu0
        %1447 = vdwg.mxu0
        %1448 = vmatprep.subr.mxu0 0.0
        %1449 = vmatpush1.msra.mxu0 0.0
        %1450 = vmatprep.subr.mxu0 0.0
        %1451 = vmatpush1.msra.mxu0 0.0
        %1452 = vmatprep.subr.mxu0 0.0
        %1453 = vmatpush1.msra.mxu0 0.0
        %1454 = vmatprep.subr.mxu0 0.0
        %1455 = vmatpush1.msra.mxu0 0.0
        %1456 = vmatprep.subr.mxu0 0.0
        %1457 = vmatpush1.msra.mxu0 0.0
        %1458 = vmatprep.subr.mxu0 0.0
        %1459 = vmatpush1.msra.mxu0 0.0
        %1460 = vmatprep.subr.mxu0 0.0
        %1461 = vmatpush1.msra.mxu0 0.0
        %1462 = vmatprep.subr.mxu0 0.0
        %1463 = vmatpush1.msra.mxu0 0.0
        %1464 = vmatprep.subr.mxu0 0.0
        %1465 = vmatpush1.msra.mxu0 0.0
        %1466 = vmatprep.subr.mxu0 0.0
        %1467 = vmatpush1.msra.mxu0 0.0
        %1468 = vmatprep.subr.mxu0 0.0
        %1469 = vmatpush1.msra.mxu0 0.0
        %1470 = vmatprep.subr.mxu0 0.0
        %1471 = vmatpush1.msra.mxu0 0.0
        %1472 = vmatprep.subr.mxu0 0.0
        %v1473 = vand.u32 %v1026, 4294901760
        %1474 = vmatpush1.msra.mxu0 %v1473
        %1475 = vmatprep.subr.mxu0 0.0
        %v1476 = vand.u32 %v1025, 4294901760
        %1477 = vmatpush1.msra.mxu0 %v1476
        %1478 = vmatprep.subr.mxu0 0.0
        %v1479 = vand.u32 %v1024, 4294901760
        %1480 = vmatpush1.msra.mxu0 %v1479
        %1481 = vmatprep.subr.mxu0 0.0
        %v1482 = vand.u32 %v1023, 4294901760
        %1483 = vmatpush1.msra.mxu0 %v1482
        %1484 = vmatprep.subr.mxu0 0.0
        %1485 = vmatpush2.msra.mxu0 0.0
        %1486 = vmatprep.subr.mxu0 0.0
        %1487 = vmatpush2.msra.mxu0 0.0
        %1488 = vmatprep.subr.mxu0 0.0
        %1489 = vmatpush2.msra.mxu0 0.0
        %1490 = vmatprep.subr.mxu0 0.0
        %1491 = vmatpush2.msra.mxu0 0.0
        %1492 = vmatprep.subr.mxu0 0.0
        %1493 = vmatpush2.msra.mxu0 0.0
        %1494 = vmatprep.subr.mxu0 0.0
        %1495 = vmatpush2.msra.mxu0 0.0
        %1496 = vmatprep.subr.mxu0 0.0
        %1497 = vmatpush2.msra.mxu0 0.0
        %1498 = vmatprep.subr.mxu0 0.0
        %1499 = vmatpush2.msra.mxu0 0.0
        %1500 = vmatprep.subr.mxu0 0.0
        %1501 = vmatpush2.msra.mxu0 0.0
        %1502 = vmatprep.subr.mxu0 0.0
        %1503 = vmatpush2.msra.mxu0 0.0
        %1504 = vmatprep.subr.mxu0 0.0
        %1505 = vmatpush2.msra.mxu0 0.0
        %1506 = vmatprep.subr.mxu0 0.0
        %1507 = vmatpush2.msra.mxu0 0.0
        %1508 = vmatprep.subr.mxu0 0.0
        %1509 = vmatpush2.msra.mxu0 0.0
        %1510 = vmatprep.subr.mxu0 0.0
        %1511 = vmatpush2.msra.mxu0 0.0
        %1512 = vmatprep.subr.mxu0 0.0
        %1513 = vmatpush2.msra.mxu0 0.0
        %1514 = vmatprep.subr.mxu0 0.0
        %1515 = vmatpush2.msra.mxu0 0.0
        %1516 = vmatprep.mubr.f32.mxu0 0.0
        %v1517 = vand.u32 %v1036, 4294901760
        %1518 = vmatmul.mubr.f32.gmra.mxu0 %v1517
        %v1519 = vpop.f32.mrf.mxu0
        %v1520 = vadd.f32 %v1445, %v1519
        %v1521 = vpop.f32.mrf.mxu0
        %1522 = vdwg.mxu0
        %v1523 = vld [vmem:[#allocation5] sm:$0xff]
        %v1524 = vld [vmem:[#allocation5 + $0x8] sm:$0xff]
        %v1525 = vld [vmem:[#allocation5 + $0x10] sm:$0xff]
        %v1526 = vld [vmem:[#allocation5 + $0x18] sm:$0xff]
        %1531 = vrot.lane.b32.xlu0 %v1523, 32
        %v1532 = vpop.permute.xlu0 %1531
        %1533 = vrot.lane.b32.xlu0 %v1524, 32
        %v1534 = vpop.permute.xlu0 %1533
        %1535 = vrot.lane.b32.xlu0 %v1525, 32
        %v1536 = vpop.permute.xlu0 %1535
        %1537 = vrot.lane.b32.xlu0 %v1526, 32
        %v1538 = vpop.permute.xlu0 %1537
        %v1543 = vmul.f32 %v1520, %v1532
        %v1544 = vmul.f32 %v1520, %v1534
        %v1545 = vmul.f32 %v1520, %v1536
        %v1546 = vmul.f32 %v1520, %v1538
        %1547 = vrot.lane.b32.xlu0 %v1523, 64
        %v1548 = vpop.permute.xlu0 %1547
        %1549 = vrot.lane.b32.xlu0 %v1524, 64
        %v1550 = vpop.permute.xlu0 %1549
        %1551 = vrot.lane.b32.xlu0 %v1525, 64
        %v1552 = vpop.permute.xlu0 %1551
        %1553 = vrot.lane.b32.xlu0 %v1526, 64
        %v1554 = vpop.permute.xlu0 %1553
        %v1559 = vmul.f32 %v1520, %v1548
        %v1560 = vmul.f32 %v1520, %v1550
        %v1561 = vmul.f32 %v1520, %v1552
        %v1562 = vmul.f32 %v1520, %v1554
        %1567 = vrot.lane.b32.xlu0 %v1543, 96
        %v1568 = vpop.permute.xlu0 %1567
        %1569 = vrot.lane.b32.xlu0 %v1544, 96
        %v1570 = vpop.permute.xlu0 %1569
        %1571 = vrot.lane.b32.xlu0 %v1545, 96
        %v1572 = vpop.permute.xlu0 %1571
        %1573 = vrot.lane.b32.xlu0 %v1546, 96
        %v1574 = vpop.permute.xlu0 %1573
        %v1576 = vsel %vm1034, %v1520, 0
        %v1578 = vsel %vm1034, %v1568, 0
        %v1580 = vsel %vm1034, %v1570, 0
        %v1582 = vsel %vm1034, %v1572, 0
        %v1584 = vsel %vm1034, %v1574, 0
        %1586 = vmatprep.subr.mxu0 0.0
        %1587 = vmatpush1.xpose.msra.mxu0 0.0
        %1588 = vmatprep.subr.mxu0 0.0
        %1589 = vmatpush1.xpose.msra.mxu0 0.0
        %1590 = vmatprep.subr.mxu0 0.0
        %1591 = vmatpush1.xpose.msra.mxu0 0.0
        %1592 = vmatprep.subr.mxu0 0.0
        %1593 = vmatpush1.xpose.msra.mxu0 0.0
        %1594 = vmatprep.subr.mxu0 0.0
        %1595 = vmatpush1.xpose.msra.mxu0 0.0
        %1596 = vmatprep.subr.mxu0 0.0
        %1597 = vmatpush1.xpose.msra.mxu0 0.0
        %1598 = vmatprep.subr.mxu0 0.0
        %1599 = vmatpush1.xpose.msra.mxu0 0.0
        %1600 = vmatprep.subr.mxu0 0.0
        %1601 = vmatpush1.xpose.msra.mxu0 0.0
        %1602 = vmatprep.subr.mxu0 0.0
        %1603 = vmatpush1.xpose.msra.mxu0 0.0
        %1604 = vmatprep.subr.mxu0 0.0
        %1605 = vmatpush1.xpose.msra.mxu0 0.0
        %1606 = vmatprep.subr.mxu0 0.0
        %1607 = vmatpush1.xpose.msra.mxu0 0.0
        %1608 = vmatprep.subr.mxu0 0.0
        %1609 = vmatpush1.xpose.msra.mxu0 0.0
        %1610 = vmatprep.subr.mxu0 0.0
        %v1611 = vand.u32 %v1584, 4294901760
        %1612 = vmatpush1.xpose.msra.mxu0 %v1611
        %1613 = vmatprep.subr.mxu0 0.0
        %v1614 = vand.u32 %v1582, 4294901760
        %1615 = vmatpush1.xpose.msra.mxu0 %v1614
        %1616 = vmatprep.subr.mxu0 0.0
        %v1617 = vand.u32 %v1580, 4294901760
        %1618 = vmatpush1.xpose.msra.mxu0 %v1617
        %1619 = vmatprep.subr.mxu0 0.0
        %v1620 = vand.u32 %v1578, 4294901760
        %1621 = vmatpush1.xpose.msra.mxu0 %v1620
        %1622 = vmatprep.subr.mxu0 0.0
        %1623 = vmatpush2.xpose.msra.mxu0 0.0
        %1624 = vmatprep.subr.mxu0 0.0
        %1625 = vmatpush2.xpose.msra.mxu0 0.0
        %1626 = vmatprep.subr.mxu0 0.0
        %1627 = vmatpush2.xpose.msra.mxu0 0.0
        %1628 = vmatprep.subr.mxu0 0.0
        %1629 = vmatpush2.xpose.msra.mxu0 0.0
        %1630 = vmatprep.subr.mxu0 0.0
        %1631 = vmatpush2.xpose.msra.mxu0 0.0
        %1632 = vmatprep.subr.mxu0 0.0
        %1633 = vmatpush2.xpose.msra.mxu0 0.0
        %1634 = vmatprep.subr.mxu0 0.0
        %1635 = vmatpush2.xpose.msra.mxu0 0.0
        %1636 = vmatprep.subr.mxu0 0.0
        %1637 = vmatpush2.xpose.msra.mxu0 0.0
        %1638 = vmatprep.subr.mxu0 0.0
        %1639 = vmatpush2.xpose.msra.mxu0 0.0
        %1640 = vmatprep.subr.mxu0 0.0
        %1641 = vmatpush2.xpose.msra.mxu0 0.0
        %1642 = vmatprep.subr.mxu0 0.0
        %1643 = vmatpush2.xpose.msra.mxu0 0.0
        %1644 = vmatprep.subr.mxu0 0.0
        %1645 = vmatpush2.xpose.msra.mxu0 0.0
        %1646 = vmatprep.subr.mxu0 0.0
        %1647 = vmatpush2.xpose.msra.mxu0 0.0
        %1648 = vmatprep.subr.mxu0 0.0
        %1649 = vmatpush2.xpose.msra.mxu0 0.0
        %1650 = vmatprep.subr.mxu0 0.0
        %1651 = vmatpush2.xpose.msra.mxu0 0.0
        %1652 = vmatprep.subr.mxu0 0.0
        %1653 = vmatpush2.xpose.msra.mxu0 0.0
        %1654 = vmatprep.mubr.f32.mxu0 0.0
        %v1655 = vand.u32 %v1576, 4294901760
        %v1656 = vsub.f32 %v1576, %v1655
        %v1657 = vand.u32 %v1656, 4294901760
        %v1658 = vsub.f32 %v1656, %v1657
        %v1659 = vand.u32 %v1658, 4294901760
        %1660 = vmatmul.mubr.f32.gmra.mxu0 %v1659
        %v1661 = vpop.f32.mrf.mxu0
        %v1662 = vadd.f32 0.0, %v1661
        %v1663 = vpop.f32.mrf.mxu0
        %1664 = vdwg.mxu0
        %1665 = vmatprep.subr.mxu0 0.0
        %1666 = vmatpush1.xpose.msra.mxu0 0.0
        %1667 = vmatprep.subr.mxu0 0.0
        %1668 = vmatpush1.xpose.msra.mxu0 0.0
        %1669 = vmatprep.subr.mxu0 0.0
        %1670 = vmatpush1.xpose.msra.mxu0 0.0
        %1671 = vmatprep.subr.mxu0 0.0
        %1672 = vmatpush1.xpose.msra.mxu0 0.0
        %1673 = vmatprep.subr.mxu0 0.0
        %1674 = vmatpush1.xpose.msra.mxu0 0.0
        %1675 = vmatprep.subr.mxu0 0.0
        %1676 = vmatpush1.xpose.msra.mxu0 0.0
        %1677 = vmatprep.subr.mxu0 0.0
        %1678 = vmatpush1.xpose.msra.mxu0 0.0
        %1679 = vmatprep.subr.mxu0 0.0
        %1680 = vmatpush1.xpose.msra.mxu0 0.0
        %1681 = vmatprep.subr.mxu0 0.0
        %1682 = vmatpush1.xpose.msra.mxu0 0.0
        %1683 = vmatprep.subr.mxu0 0.0
        %1684 = vmatpush1.xpose.msra.mxu0 0.0
        %1685 = vmatprep.subr.mxu0 0.0
        %1686 = vmatpush1.xpose.msra.mxu0 0.0
        %1687 = vmatprep.subr.mxu0 0.0
        %1688 = vmatpush1.xpose.msra.mxu0 0.0
        %1689 = vmatprep.subr.mxu0 0.0
        %v1690 = vand.u32 %v1584, 4294901760
        %v1691 = vsub.f32 %v1584, %v1690
        %v1692 = vand.u32 %v1691, 4294901760
        %v1693 = vsub.f32 %v1691, %v1692
        %v1694 = vand.u32 %v1693, 4294901760
        %1695 = vmatpush1.xpose.msra.mxu0 %v1694
        %1696 = vmatprep.subr.mxu0 0.0
        %v1697 = vand.u32 %v1582, 4294901760
        %v1698 = vsub.f32 %v1582, %v1697
        %v1699 = vand.u32 %v1698, 4294901760
        %v1700 = vsub.f32 %v1698, %v1699
        %v1701 = vand.u32 %v1700, 4294901760
        %1702 = vmatpush1.xpose.msra.mxu0 %v1701
        %1703 = vmatprep.subr.mxu0 0.0
        %v1704 = vand.u32 %v1580, 4294901760
        %v1705 = vsub.f32 %v1580, %v1704
        %v1706 = vand.u32 %v1705, 4294901760
        %v1707 = vsub.f32 %v1705, %v1706
        %v1708 = vand.u32 %v1707, 4294901760
        %1709 = vmatpush1.xpose.msra.mxu0 %v1708
        %1710 = vmatprep.subr.mxu0 0.0
        %v1711 = vand.u32 %v1578, 4294901760
        %v1712 = vsub.f32 %v1578, %v1711
        %v1713 = vand.u32 %v1712, 4294901760
        %v1714 = vsub.f32 %v1712, %v1713
        %v1715 = vand.u32 %v1714, 4294901760
        %1716 = vmatpush1.xpose.msra.mxu0 %v1715
        %1717 = vmatprep.subr.mxu0 0.0
        %1718 = vmatpush2.xpose.msra.mxu0 0.0
        %1719 = vmatprep.subr.mxu0 0.0
        %1720 = vmatpush2.xpose.msra.mxu0 0.0
        %1721 = vmatprep.subr.mxu0 0.0
        %1722 = vmatpush2.xpose.msra.mxu0 0.0
        %1723 = vmatprep.subr.mxu0 0.0
        %1724 = vmatpush2.xpose.msra.mxu0 0.0
        %1725 = vmatprep.subr.mxu0 0.0
        %1726 = vmatpush2.xpose.msra.mxu0 0.0
        %1727 = vmatprep.subr.mxu0 0.0
        %1728 = vmatpush2.xpose.msra.mxu0 0.0
        %1729 = vmatprep.subr.mxu0 0.0
        %1730 = vmatpush2.xpose.msra.mxu0 0.0
        %1731 = vmatprep.subr.mxu0 0.0
        %1732 = vmatpush2.xpose.msra.mxu0 0.0
        %1733 = vmatprep.subr.mxu0 0.0
        %1734 = vmatpush2.xpose.msra.mxu0 0.0
        %1735 = vmatprep.subr.mxu0 0.0
        %1736 = vmatpush2.xpose.msra.mxu0 0.0
        %1737 = vmatprep.subr.mxu0 0.0
        %1738 = vmatpush2.xpose.msra.mxu0 0.0
        %1739 = vmatprep.subr.mxu0 0.0
        %1740 = vmatpush2.xpose.msra.mxu0 0.0
        %1741 = vmatprep.subr.mxu0 0.0
        %1742 = vmatpush2.xpose.msra.mxu0 0.0
        %1743 = vmatprep.subr.mxu0 0.0
        %1744 = vmatpush2.xpose.msra.mxu0 0.0
        %1745 = vmatprep.subr.mxu0 0.0
        %1746 = vmatpush2.xpose.msra.mxu0 0.0
        %1747 = vmatprep.subr.mxu0 0.0
        %1748 = vmatpush2.xpose.msra.mxu0 0.0
        %1749 = vmatprep.mubr.f32.mxu0 0.0
        %v1750 = vand.u32 %v1576, 4294901760
        %1751 = vmatmul.mubr.f32.gmra.mxu0 %v1750
        %v1752 = vpop.f32.mrf.mxu0
        %v1753 = vadd.f32 %v1662, %v1752
        %v1754 = vpop.f32.mrf.mxu0
        %1755 = vdwg.mxu0
        %1756 = vmatprep.subr.mxu0 0.0
        %1757 = vmatpush1.xpose.msra.mxu0 0.0
        %1758 = vmatprep.subr.mxu0 0.0
        %1759 = vmatpush1.xpose.msra.mxu0 0.0
        %1760 = vmatprep.subr.mxu0 0.0
        %1761 = vmatpush1.xpose.msra.mxu0 0.0
        %1762 = vmatprep.subr.mxu0 0.0
        %1763 = vmatpush1.xpose.msra.mxu0 0.0
        %1764 = vmatprep.subr.mxu0 0.0
        %1765 = vmatpush1.xpose.msra.mxu0 0.0
        %1766 = vmatprep.subr.mxu0 0.0
        %1767 = vmatpush1.xpose.msra.mxu0 0.0
        %1768 = vmatprep.subr.mxu0 0.0
        %1769 = vmatpush1.xpose.msra.mxu0 0.0
        %1770 = vmatprep.subr.mxu0 0.0
        %1771 = vmatpush1.xpose.msra.mxu0 0.0
        %1772 = vmatprep.subr.mxu0 0.0
        %1773 = vmatpush1.xpose.msra.mxu0 0.0
        %1774 = vmatprep.subr.mxu0 0.0
        %1775 = vmatpush1.xpose.msra.mxu0 0.0
        %1776 = vmatprep.subr.mxu0 0.0
        %1777 = vmatpush1.xpose.msra.mxu0 0.0
        %1778 = vmatprep.subr.mxu0 0.0
        %1779 = vmatpush1.xpose.msra.mxu0 0.0
        %1780 = vmatprep.subr.mxu0 0.0
        %v1781 = vand.u32 %v1584, 4294901760
        %v1782 = vsub.f32 %v1584, %v1781
        %1783 = vmatpush1.xpose.msra.mxu0 %v1782
        %1784 = vmatprep.subr.mxu0 0.0
        %v1785 = vand.u32 %v1582, 4294901760
        %v1786 = vsub.f32 %v1582, %v1785
        %1787 = vmatpush1.xpose.msra.mxu0 %v1786
        %1788 = vmatprep.subr.mxu0 0.0
        %v1789 = vand.u32 %v1580, 4294901760
        %v1790 = vsub.f32 %v1580, %v1789
        %1791 = vmatpush1.xpose.msra.mxu0 %v1790
        %1792 = vmatprep.subr.mxu0 0.0
        %v1793 = vand.u32 %v1578, 4294901760
        %v1794 = vsub.f32 %v1578, %v1793
        %1795 = vmatpush1.xpose.msra.mxu0 %v1794
        %1796 = vmatprep.subr.mxu0 0.0
        %1797 = vmatpush2.xpose.msra.mxu0 0.0
        %1798 = vmatprep.subr.mxu0 0.0
        %1799 = vmatpush2.xpose.msra.mxu0 0.0
        %1800 = vmatprep.subr.mxu0 0.0
        %1801 = vmatpush2.xpose.msra.mxu0 0.0
        %1802 = vmatprep.subr.mxu0 0.0
        %1803 = vmatpush2.xpose.msra.mxu0 0.0
        %1804 = vmatprep.subr.mxu0 0.0
        %1805 = vmatpush2.xpose.msra.mxu0 0.0
        %1806 = vmatprep.subr.mxu0 0.0
        %1807 = vmatpush2.xpose.msra.mxu0 0.0
        %1808 = vmatprep.subr.mxu0 0.0
        %1809 = vmatpush2.xpose.msra.mxu0 0.0
        %1810 = vmatprep.subr.mxu0 0.0
        %1811 = vmatpush2.xpose.msra.mxu0 0.0
        %1812 = vmatprep.subr.mxu0 0.0
        %1813 = vmatpush2.xpose.msra.mxu0 0.0
        %1814 = vmatprep.subr.mxu0 0.0
        %1815 = vmatpush2.xpose.msra.mxu0 0.0
        %1816 = vmatprep.subr.mxu0 0.0
        %1817 = vmatpush2.xpose.msra.mxu0 0.0
        %1818 = vmatprep.subr.mxu0 0.0
        %1819 = vmatpush2.xpose.msra.mxu0 0.0
        %1820 = vmatprep.subr.mxu0 0.0
        %1821 = vmatpush2.xpose.msra.mxu0 0.0
        %1822 = vmatprep.subr.mxu0 0.0
        %1823 = vmatpush2.xpose.msra.mxu0 0.0
        %1824 = vmatprep.subr.mxu0 0.0
        %1825 = vmatpush2.xpose.msra.mxu0 0.0
        %1826 = vmatprep.subr.mxu0 0.0
        %1827 = vmatpush2.xpose.msra.mxu0 0.0
        %1828 = vmatprep.mubr.f32.mxu0 0.0
        %v1829 = vand.u32 %v1576, 4294901760
        %v1830 = vsub.f32 %v1576, %v1829
        %1831 = vmatmul.mubr.f32.gmra.mxu0 %v1830
        %v1832 = vpop.f32.mrf.mxu0
        %v1833 = vadd.f32 %v1753, %v1832
        %v1834 = vpop.f32.mrf.mxu0
        %1835 = vdwg.mxu0
        %1836 = vmatprep.subr.mxu0 0.0
        %1837 = vmatpush1.xpose.msra.mxu0 0.0
        %1838 = vmatprep.subr.mxu0 0.0
        %1839 = vmatpush1.xpose.msra.mxu0 0.0
        %1840 = vmatprep.subr.mxu0 0.0
        %1841 = vmatpush1.xpose.msra.mxu0 0.0
        %1842 = vmatprep.subr.mxu0 0.0
        %1843 = vmatpush1.xpose.msra.mxu0 0.0
        %1844 = vmatprep.subr.mxu0 0.0
        %1845 = vmatpush1.xpose.msra.mxu0 0.0
        %1846 = vmatprep.subr.mxu0 0.0
        %1847 = vmatpush1.xpose.msra.mxu0 0.0
        %1848 = vmatprep.subr.mxu0 0.0
        %1849 = vmatpush1.xpose.msra.mxu0 0.0
        %1850 = vmatprep.subr.mxu0 0.0
        %1851 = vmatpush1.xpose.msra.mxu0 0.0
        %1852 = vmatprep.subr.mxu0 0.0
        %1853 = vmatpush1.xpose.msra.mxu0 0.0
        %1854 = vmatprep.subr.mxu0 0.0
        %1855 = vmatpush1.xpose.msra.mxu0 0.0
        %1856 = vmatprep.subr.mxu0 0.0
        %1857 = vmatpush1.xpose.msra.mxu0 0.0
        %1858 = vmatprep.subr.mxu0 0.0
        %1859 = vmatpush1.xpose.msra.mxu0 0.0
        %1860 = vmatprep.subr.mxu0 0.0
        %v1861 = vand.u32 %v1584, 4294901760
        %1862 = vmatpush1.xpose.msra.mxu0 %v1861
        %1863 = vmatprep.subr.mxu0 0.0
        %v1864 = vand.u32 %v1582, 4294901760
        %1865 = vmatpush1.xpose.msra.mxu0 %v1864
        %1866 = vmatprep.subr.mxu0 0.0
        %v1867 = vand.u32 %v1580, 4294901760
        %1868 = vmatpush1.xpose.msra.mxu0 %v1867
        %1869 = vmatprep.subr.mxu0 0.0
        %v1870 = vand.u32 %v1578, 4294901760
        %1871 = vmatpush1.xpose.msra.mxu0 %v1870
        %1872 = vmatprep.subr.mxu0 0.0
        %1873 = vmatpush2.xpose.msra.mxu0 0.0
        %1874 = vmatprep.subr.mxu0 0.0
        %1875 = vmatpush2.xpose.msra.mxu0 0.0
        %1876 = vmatprep.subr.mxu0 0.0
        %1877 = vmatpush2.xpose.msra.mxu0 0.0
        %1878 = vmatprep.subr.mxu0 0.0
        %1879 = vmatpush2.xpose.msra.mxu0 0.0
        %1880 = vmatprep.subr.mxu0 0.0
        %1881 = vmatpush2.xpose.msra.mxu0 0.0
        %1882 = vmatprep.subr.mxu0 0.0
        %1883 = vmatpush2.xpose.msra.mxu0 0.0
        %1884 = vmatprep.subr.mxu0 0.0
        %1885 = vmatpush2.xpose.msra.mxu0 0.0
        %1886 = vmatprep.subr.mxu0 0.0
        %1887 = vmatpush2.xpose.msra.mxu0 0.0
        %1888 = vmatprep.subr.mxu0 0.0
        %1889 = vmatpush2.xpose.msra.mxu0 0.0
        %1890 = vmatprep.subr.mxu0 0.0
        %1891 = vmatpush2.xpose.msra.mxu0 0.0
        %1892 = vmatprep.subr.mxu0 0.0
        %1893 = vmatpush2.xpose.msra.mxu0 0.0
        %1894 = vmatprep.subr.mxu0 0.0
        %1895 = vmatpush2.xpose.msra.mxu0 0.0
        %1896 = vmatprep.subr.mxu0 0.0
        %1897 = vmatpush2.xpose.msra.mxu0 0.0
        %1898 = vmatprep.subr.mxu0 0.0
        %1899 = vmatpush2.xpose.msra.mxu0 0.0
        %1900 = vmatprep.subr.mxu0 0.0
        %1901 = vmatpush2.xpose.msra.mxu0 0.0
        %1902 = vmatprep.subr.mxu0 0.0
        %1903 = vmatpush2.xpose.msra.mxu0 0.0
        %1904 = vmatprep.mubr.f32.mxu0 0.0
        %v1905 = vand.u32 %v1576, 4294901760
        %v1906 = vsub.f32 %v1576, %v1905
        %v1907 = vand.u32 %v1906, 4294901760
        %1908 = vmatmul.mubr.f32.gmra.mxu0 %v1907
        %v1909 = vpop.f32.mrf.mxu0
        %v1910 = vadd.f32 %v1833, %v1909
        %v1911 = vpop.f32.mrf.mxu0
        %1912 = vdwg.mxu0
        %1913 = vmatprep.subr.mxu0 0.0
        %1914 = vmatpush1.xpose.msra.mxu0 0.0
        %1915 = vmatprep.subr.mxu0 0.0
        %1916 = vmatpush1.xpose.msra.mxu0 0.0
        %1917 = vmatprep.subr.mxu0 0.0
        %1918 = vmatpush1.xpose.msra.mxu0 0.0
        %1919 = vmatprep.subr.mxu0 0.0
        %1920 = vmatpush1.xpose.msra.mxu0 0.0
        %1921 = vmatprep.subr.mxu0 0.0
        %1922 = vmatpush1.xpose.msra.mxu0 0.0
        %1923 = vmatprep.subr.mxu0 0.0
        %1924 = vmatpush1.xpose.msra.mxu0 0.0
        %1925 = vmatprep.subr.mxu0 0.0
        %1926 = vmatpush1.xpose.msra.mxu0 0.0
        %1927 = vmatprep.subr.mxu0 0.0
        %1928 = vmatpush1.xpose.msra.mxu0 0.0
        %1929 = vmatprep.subr.mxu0 0.0
        %1930 = vmatpush1.xpose.msra.mxu0 0.0
        %1931 = vmatprep.subr.mxu0 0.0
        %1932 = vmatpush1.xpose.msra.mxu0 0.0
        %1933 = vmatprep.subr.mxu0 0.0
        %1934 = vmatpush1.xpose.msra.mxu0 0.0
        %1935 = vmatprep.subr.mxu0 0.0
        %1936 = vmatpush1.xpose.msra.mxu0 0.0
        %1937 = vmatprep.subr.mxu0 0.0
        %v1938 = vand.u32 %v1584, 4294901760
        %v1939 = vsub.f32 %v1584, %v1938
        %v1940 = vand.u32 %v1939, 4294901760
        %1941 = vmatpush1.xpose.msra.mxu0 %v1940
        %1942 = vmatprep.subr.mxu0 0.0
        %v1943 = vand.u32 %v1582, 4294901760
        %v1944 = vsub.f32 %v1582, %v1943
        %v1945 = vand.u32 %v1944, 4294901760
        %1946 = vmatpush1.xpose.msra.mxu0 %v1945
        %1947 = vmatprep.subr.mxu0 0.0
        %v1948 = vand.u32 %v1580, 4294901760
        %v1949 = vsub.f32 %v1580, %v1948
        %v1950 = vand.u32 %v1949, 4294901760
        %1951 = vmatpush1.xpose.msra.mxu0 %v1950
        %1952 = vmatprep.subr.mxu0 0.0
        %v1953 = vand.u32 %v1578, 4294901760
        %v1954 = vsub.f32 %v1578, %v1953
        %v1955 = vand.u32 %v1954, 4294901760
        %1956 = vmatpush1.xpose.msra.mxu0 %v1955
        %1957 = vmatprep.subr.mxu0 0.0
        %1958 = vmatpush2.xpose.msra.mxu0 0.0
        %1959 = vmatprep.subr.mxu0 0.0
        %1960 = vmatpush2.xpose.msra.mxu0 0.0
        %1961 = vmatprep.subr.mxu0 0.0
        %1962 = vmatpush2.xpose.msra.mxu0 0.0
        %1963 = vmatprep.subr.mxu0 0.0
        %1964 = vmatpush2.xpose.msra.mxu0 0.0
        %1965 = vmatprep.subr.mxu0 0.0
        %1966 = vmatpush2.xpose.msra.mxu0 0.0
        %1967 = vmatprep.subr.mxu0 0.0
        %1968 = vmatpush2.xpose.msra.mxu0 0.0
        %1969 = vmatprep.subr.mxu0 0.0
        %1970 = vmatpush2.xpose.msra.mxu0 0.0
        %1971 = vmatprep.subr.mxu0 0.0
        %1972 = vmatpush2.xpose.msra.mxu0 0.0
        %1973 = vmatprep.subr.mxu0 0.0
        %1974 = vmatpush2.xpose.msra.mxu0 0.0
        %1975 = vmatprep.subr.mxu0 0.0
        %1976 = vmatpush2.xpose.msra.mxu0 0.0
        %1977 = vmatprep.subr.mxu0 0.0
        %1978 = vmatpush2.xpose.msra.mxu0 0.0
        %1979 = vmatprep.subr.mxu0 0.0
        %1980 = vmatpush2.xpose.msra.mxu0 0.0
        %1981 = vmatprep.subr.mxu0 0.0
        %1982 = vmatpush2.xpose.msra.mxu0 0.0
        %1983 = vmatprep.subr.mxu0 0.0
        %1984 = vmatpush2.xpose.msra.mxu0 0.0
        %1985 = vmatprep.subr.mxu0 0.0
        %1986 = vmatpush2.xpose.msra.mxu0 0.0
        %1987 = vmatprep.subr.mxu0 0.0
        %1988 = vmatpush2.xpose.msra.mxu0 0.0
        %1989 = vmatprep.mubr.f32.mxu0 0.0
        %v1990 = vand.u32 %v1576, 4294901760
        %1991 = vmatmul.mubr.f32.gmra.mxu0 %v1990
        %v1992 = vpop.f32.mrf.mxu0
        %v1993 = vadd.f32 %v1910, %v1992
        %v1994 = vpop.f32.mrf.mxu0
        %1995 = vdwg.mxu0
        %1996 = vmatprep.subr.mxu0 0.0
        %1997 = vmatpush1.xpose.msra.mxu0 0.0
        %1998 = vmatprep.subr.mxu0 0.0
        %1999 = vmatpush1.xpose.msra.mxu0 0.0
        %2000 = vmatprep.subr.mxu0 0.0
        %2001 = vmatpush1.xpose.msra.mxu0 0.0
        %2002 = vmatprep.subr.mxu0 0.0
        %2003 = vmatpush1.xpose.msra.mxu0 0.0
        %2004 = vmatprep.subr.mxu0 0.0
        %2005 = vmatpush1.xpose.msra.mxu0 0.0
        %2006 = vmatprep.subr.mxu0 0.0
        %2007 = vmatpush1.xpose.msra.mxu0 0.0
        %2008 = vmatprep.subr.mxu0 0.0
        %2009 = vmatpush1.xpose.msra.mxu0 0.0
        %2010 = vmatprep.subr.mxu0 0.0
        %2011 = vmatpush1.xpose.msra.mxu0 0.0
        %2012 = vmatprep.subr.mxu0 0.0
        %2013 = vmatpush1.xpose.msra.mxu0 0.0
        %2014 = vmatprep.subr.mxu0 0.0
        %2015 = vmatpush1.xpose.msra.mxu0 0.0
        %2016 = vmatprep.subr.mxu0 0.0
        %2017 = vmatpush1.xpose.msra.mxu0 0.0
        %2018 = vmatprep.subr.mxu0 0.0
        %2019 = vmatpush1.xpose.msra.mxu0 0.0
        %2020 = vmatprep.subr.mxu0 0.0
        %v2021 = vand.u32 %v1584, 4294901760
        %2022 = vmatpush1.xpose.msra.mxu0 %v2021
        %2023 = vmatprep.subr.mxu0 0.0
        %v2024 = vand.u32 %v1582, 4294901760
        %2025 = vmatpush1.xpose.msra.mxu0 %v2024
        %2026 = vmatprep.subr.mxu0 0.0
        %v2027 = vand.u32 %v1580, 4294901760
        %2028 = vmatpush1.xpose.msra.mxu0 %v2027
        %2029 = vmatprep.subr.mxu0 0.0
        %v2030 = vand.u32 %v1578, 4294901760
        %2031 = vmatpush1.xpose.msra.mxu0 %v2030
        %2032 = vmatprep.subr.mxu0 0.0
        %2033 = vmatpush2.xpose.msra.mxu0 0.0
        %2034 = vmatprep.subr.mxu0 0.0
        %2035 = vmatpush2.xpose.msra.mxu0 0.0
        %2036 = vmatprep.subr.mxu0 0.0
        %2037 = vmatpush2.xpose.msra.mxu0 0.0
        %2038 = vmatprep.subr.mxu0 0.0
        %2039 = vmatpush2.xpose.msra.mxu0 0.0
        %2040 = vmatprep.subr.mxu0 0.0
        %2041 = vmatpush2.xpose.msra.mxu0 0.0
        %2042 = vmatprep.subr.mxu0 0.0
        %2043 = vmatpush2.xpose.msra.mxu0 0.0
        %2044 = vmatprep.subr.mxu0 0.0
        %2045 = vmatpush2.xpose.msra.mxu0 0.0
        %2046 = vmatprep.subr.mxu0 0.0
        %2047 = vmatpush2.xpose.msra.mxu0 0.0
        %2048 = vmatprep.subr.mxu0 0.0
        %2049 = vmatpush2.xpose.msra.mxu0 0.0
        %2050 = vmatprep.subr.mxu0 0.0
        %2051 = vmatpush2.xpose.msra.mxu0 0.0
        %2052 = vmatprep.subr.mxu0 0.0
        %2053 = vmatpush2.xpose.msra.mxu0 0.0
        %2054 = vmatprep.subr.mxu0 0.0
        %2055 = vmatpush2.xpose.msra.mxu0 0.0
        %2056 = vmatprep.subr.mxu0 0.0
        %2057 = vmatpush2.xpose.msra.mxu0 0.0
        %2058 = vmatprep.subr.mxu0 0.0
        %2059 = vmatpush2.xpose.msra.mxu0 0.0
        %2060 = vmatprep.subr.mxu0 0.0
        %2061 = vmatpush2.xpose.msra.mxu0 0.0
        %2062 = vmatprep.subr.mxu0 0.0
        %2063 = vmatpush2.xpose.msra.mxu0 0.0
        %2064 = vmatprep.mubr.f32.mxu0 0.0
        %v2065 = vand.u32 %v1576, 4294901760
        %2066 = vmatmul.mubr.f32.gmra.mxu0 %v2065
        %v2067 = vpop.f32.mrf.mxu0
        %v2068 = vadd.f32 %v1993, %v2067
        %v2069 = vpop.f32.mrf.mxu0
        %2070 = vdwg.mxu0
        %v2071 = vsel %vm1034, %v2068, -inf
        %2072 = vmax.xlane.f32.xlu0 %v2071
        %v2073 = vpop.xlane.xlu0 %2072
        %v2074 = vsub.f32 %v2068, %v2073
        %v2075 = vmul.f32 %v2074, 1.442695
        %v2076 = vpow.pop %v2075
        %v2077 = vld [vmem:[#allocation7] sm:$0xff]
        %v2078 = vld [vmem:[#allocation7 + $0x8] sm:$0xff]
        %v2079 = vld [vmem:[#allocation7 + $0x10] sm:$0xff]
        %v2080 = vld [vmem:[#allocation7 + $0x18] sm:$0xff]
        %v2082 = vsel %vm1034, %v2076, 0
        %2084 = vmatprep.subr.mxu0 0.0
        %2085 = vmatpush1.msra.mxu0 0.0
        %2086 = vmatprep.subr.mxu0 0.0
        %2087 = vmatpush1.msra.mxu0 0.0
        %2088 = vmatprep.subr.mxu0 0.0
        %2089 = vmatpush1.msra.mxu0 0.0
        %2090 = vmatprep.subr.mxu0 0.0
        %2091 = vmatpush1.msra.mxu0 0.0
        %2092 = vmatprep.subr.mxu0 0.0
        %2093 = vmatpush1.msra.mxu0 0.0
        %2094 = vmatprep.subr.mxu0 0.0
        %2095 = vmatpush1.msra.mxu0 0.0
        %2096 = vmatprep.subr.mxu0 0.0
        %2097 = vmatpush1.msra.mxu0 0.0
        %2098 = vmatprep.subr.mxu0 0.0
        %2099 = vmatpush1.msra.mxu0 0.0
        %2100 = vmatprep.subr.mxu0 0.0
        %2101 = vmatpush1.msra.mxu0 0.0
        %2102 = vmatprep.subr.mxu0 0.0
        %2103 = vmatpush1.msra.mxu0 0.0
        %2104 = vmatprep.subr.mxu0 0.0
        %2105 = vmatpush1.msra.mxu0 0.0
        %2106 = vmatprep.subr.mxu0 0.0
        %2107 = vmatpush1.msra.mxu0 0.0
        %2108 = vmatprep.subr.mxu0 0.0
        %v2109 = vand.u32 %v2080, 4294901760
        %2110 = vmatpush1.msra.mxu0 %v2109
        %2111 = vmatprep.subr.mxu0 0.0
        %v2112 = vand.u32 %v2079, 4294901760
        %2113 = vmatpush1.msra.mxu0 %v2112
        %2114 = vmatprep.subr.mxu0 0.0
        %v2115 = vand.u32 %v2078, 4294901760
        %2116 = vmatpush1.msra.mxu0 %v2115
        %2117 = vmatprep.subr.mxu0 0.0
        %v2118 = vand.u32 %v2077, 4294901760
        %2119 = vmatpush1.msra.mxu0 %v2118
        %2120 = vmatprep.subr.mxu0 0.0
        %2121 = vmatpush2.msra.mxu0 0.0
        %2122 = vmatprep.subr.mxu0 0.0
        %2123 = vmatpush2.msra.mxu0 0.0
        %2124 = vmatprep.subr.mxu0 0.0
        %2125 = vmatpush2.msra.mxu0 0.0
        %2126 = vmatprep.subr.mxu0 0.0
        %2127 = vmatpush2.msra.mxu0 0.0
        %2128 = vmatprep.subr.mxu0 0.0
        %2129 = vmatpush2.msra.mxu0 0.0
        %2130 = vmatprep.subr.mxu0 0.0
        %2131 = vmatpush2.msra.mxu0 0.0
        %2132 = vmatprep.subr.mxu0 0.0
        %2133 = vmatpush2.msra.mxu0 0.0
        %2134 = vmatprep.subr.mxu0 0.0
        %2135 = vmatpush2.msra.mxu0 0.0
        %2136 = vmatprep.subr.mxu0 0.0
        %2137 = vmatpush2.msra.mxu0 0.0
        %2138 = vmatprep.subr.mxu0 0.0
        %2139 = vmatpush2.msra.mxu0 0.0
        %2140 = vmatprep.subr.mxu0 0.0
        %2141 = vmatpush2.msra.mxu0 0.0
        %2142 = vmatprep.subr.mxu0 0.0
        %2143 = vmatpush2.msra.mxu0 0.0
        %2144 = vmatprep.subr.mxu0 0.0
        %2145 = vmatpush2.msra.mxu0 0.0
        %2146 = vmatprep.subr.mxu0 0.0
        %2147 = vmatpush2.msra.mxu0 0.0
        %2148 = vmatprep.subr.mxu0 0.0
        %2149 = vmatpush2.msra.mxu0 0.0
        %2150 = vmatprep.subr.mxu0 0.0
        %2151 = vmatpush2.msra.mxu0 0.0
        %2152 = vmatprep.mubr.f32.mxu0 0.0
        %v2153 = vand.u32 %v2082, 4294901760
        %v2154 = vsub.f32 %v2082, %v2153
        %v2155 = vand.u32 %v2154, 4294901760
        %v2156 = vsub.f32 %v2154, %v2155
        %v2157 = vand.u32 %v2156, 4294901760
        %2158 = vmatmul.mubr.f32.gmra.mxu0 %v2157
        %v2159 = vpop.f32.mrf.mxu0
        %v2160 = vadd.f32 0.0, %v2159
        %v2161 = vpop.f32.mrf.mxu0
        %2162 = vdwg.mxu0
        %2163 = vmatprep.subr.mxu0 0.0
        %2164 = vmatpush1.msra.mxu0 0.0
        %2165 = vmatprep.subr.mxu0 0.0
        %2166 = vmatpush1.msra.mxu0 0.0
        %2167 = vmatprep.subr.mxu0 0.0
        %2168 = vmatpush1.msra.mxu0 0.0
        %2169 = vmatprep.subr.mxu0 0.0
        %2170 = vmatpush1.msra.mxu0 0.0
        %2171 = vmatprep.subr.mxu0 0.0
        %2172 = vmatpush1.msra.mxu0 0.0
        %2173 = vmatprep.subr.mxu0 0.0
        %2174 = vmatpush1.msra.mxu0 0.0
        %2175 = vmatprep.subr.mxu0 0.0
        %2176 = vmatpush1.msra.mxu0 0.0
        %2177 = vmatprep.subr.mxu0 0.0
        %2178 = vmatpush1.msra.mxu0 0.0
        %2179 = vmatprep.subr.mxu0 0.0
        %2180 = vmatpush1.msra.mxu0 0.0
        %2181 = vmatprep.subr.mxu0 0.0
        %2182 = vmatpush1.msra.mxu0 0.0
        %2183 = vmatprep.subr.mxu0 0.0
        %2184 = vmatpush1.msra.mxu0 0.0
        %2185 = vmatprep.subr.mxu0 0.0
        %2186 = vmatpush1.msra.mxu0 0.0
        %2187 = vmatprep.subr.mxu0 0.0
        %v2188 = vand.u32 %v2080, 4294901760
        %v2189 = vsub.f32 %v2080, %v2188
        %v2190 = vand.u32 %v2189, 4294901760
        %v2191 = vsub.f32 %v2189, %v2190
        %v2192 = vand.u32 %v2191, 4294901760
        %2193 = vmatpush1.msra.mxu0 %v2192
        %2194 = vmatprep.subr.mxu0 0.0
        %v2195 = vand.u32 %v2079, 4294901760
        %v2196 = vsub.f32 %v2079, %v2195
        %v2197 = vand.u32 %v2196, 4294901760
        %v2198 = vsub.f32 %v2196, %v2197
        %v2199 = vand.u32 %v2198, 4294901760
        %2200 = vmatpush1.msra.mxu0 %v2199
        %2201 = vmatprep.subr.mxu0 0.0
        %v2202 = vand.u32 %v2078, 4294901760
        %v2203 = vsub.f32 %v2078, %v2202
        %v2204 = vand.u32 %v2203, 4294901760
        %v2205 = vsub.f32 %v2203, %v2204
        %v2206 = vand.u32 %v2205, 4294901760
        %2207 = vmatpush1.msra.mxu0 %v2206
        %2208 = vmatprep.subr.mxu0 0.0
        %v2209 = vand.u32 %v2077, 4294901760
        %v2210 = vsub.f32 %v2077, %v2209
        %v2211 = vand.u32 %v2210, 4294901760
        %v2212 = vsub.f32 %v2210, %v2211
        %v2213 = vand.u32 %v2212, 4294901760
        %2214 = vmatpush1.msra.mxu0 %v2213
        %2215 = vmatprep.subr.mxu0 0.0
        %2216 = vmatpush2.msra.mxu0 0.0
        %2217 = vmatprep.subr.mxu0 0.0
        %2218 = vmatpush2.msra.mxu0 0.0
        %2219 = vmatprep.subr.mxu0 0.0
        %2220 = vmatpush2.msra.mxu0 0.0
        %2221 = vmatprep.subr.mxu0 0.0
        %2222 = vmatpush2.msra.mxu0 0.0
        %2223 = vmatprep.subr.mxu0 0.0
        %2224 = vmatpush2.msra.mxu0 0.0
        %2225 = vmatprep.subr.mxu0 0.0
        %2226 = vmatpush2.msra.mxu0 0.0
        %2227 = vmatprep.subr.mxu0 0.0
        %2228 = vmatpush2.msra.mxu0 0.0
        %2229 = vmatprep.subr.mxu0 0.0
        %2230 = vmatpush2.msra.mxu0 0.0
        %2231 = vmatprep.subr.mxu0 0.0
        %2232 = vmatpush2.msra.mxu0 0.0
        %2233 = vmatprep.subr.mxu0 0.0
        %2234 = vmatpush2.msra.mxu0 0.0
        %2235 = vmatprep.subr.mxu0 0.0
        %2236 = vmatpush2.msra.mxu0 0.0
        %2237 = vmatprep.subr.mxu0 0.0
        %2238 = vmatpush2.msra.mxu0 0.0
        %2239 = vmatprep.subr.mxu0 0.0
        %2240 = vmatpush2.msra.mxu0 0.0
        %2241 = vmatprep.subr.mxu0 0.0
        %2242 = vmatpush2.msra.mxu0 0.0
        %2243 = vmatprep.subr.mxu0 0.0
        %2244 = vmatpush2.msra.mxu0 0.0
        %2245 = vmatprep.subr.mxu0 0.0
        %2246 = vmatpush2.msra.mxu0 0.0
        %2247 = vmatprep.mubr.f32.mxu0 0.0
        %v2248 = vand.u32 %v2082, 4294901760
        %2249 = vmatmul.mubr.f32.gmra.mxu0 %v2248
        %v2250 = vpop.f32.mrf.mxu0
        %v2251 = vadd.f32 %v2160, %v2250
        %v2252 = vpop.f32.mrf.mxu0
        %2253 = vdwg.mxu0
        %2254 = vmatprep.subr.mxu0 0.0
        %2255 = vmatpush1.msra.mxu0 0.0
        %2256 = vmatprep.subr.mxu0 0.0
        %2257 = vmatpush1.msra.mxu0 0.0
        %2258 = vmatprep.subr.mxu0 0.0
        %2259 = vmatpush1.msra.mxu0 0.0
        %2260 = vmatprep.subr.mxu0 0.0
        %2261 = vmatpush1.msra.mxu0 0.0
        %2262 = vmatprep.subr.mxu0 0.0
        %2263 = vmatpush1.msra.mxu0 0.0
        %2264 = vmatprep.subr.mxu0 0.0
        %2265 = vmatpush1.msra.mxu0 0.0
        %2266 = vmatprep.subr.mxu0 0.0
        %2267 = vmatpush1.msra.mxu0 0.0
        %2268 = vmatprep.subr.mxu0 0.0
        %2269 = vmatpush1.msra.mxu0 0.0
        %2270 = vmatprep.subr.mxu0 0.0
        %2271 = vmatpush1.msra.mxu0 0.0
        %2272 = vmatprep.subr.mxu0 0.0
        %2273 = vmatpush1.msra.mxu0 0.0
        %2274 = vmatprep.subr.mxu0 0.0
        %2275 = vmatpush1.msra.mxu0 0.0
        %2276 = vmatprep.subr.mxu0 0.0
        %2277 = vmatpush1.msra.mxu0 0.0
        %2278 = vmatprep.subr.mxu0 0.0
        %v2279 = vand.u32 %v2080, 4294901760
        %v2280 = vsub.f32 %v2080, %v2279
        %2281 = vmatpush1.msra.mxu0 %v2280
        %2282 = vmatprep.subr.mxu0 0.0
        %v2283 = vand.u32 %v2079, 4294901760
        %v2284 = vsub.f32 %v2079, %v2283
        %2285 = vmatpush1.msra.mxu0 %v2284
        %2286 = vmatprep.subr.mxu0 0.0
        %v2287 = vand.u32 %v2078, 4294901760
        %v2288 = vsub.f32 %v2078, %v2287
        %2289 = vmatpush1.msra.mxu0 %v2288
        %2290 = vmatprep.subr.mxu0 0.0
        %v2291 = vand.u32 %v2077, 4294901760
        %v2292 = vsub.f32 %v2077, %v2291
        %2293 = vmatpush1.msra.mxu0 %v2292
        %2294 = vmatprep.subr.mxu0 0.0
        %2295 = vmatpush2.msra.mxu0 0.0
        %2296 = vmatprep.subr.mxu0 0.0
        %2297 = vmatpush2.msra.mxu0 0.0
        %2298 = vmatprep.subr.mxu0 0.0
        %2299 = vmatpush2.msra.mxu0 0.0
        %2300 = vmatprep.subr.mxu0 0.0
        %2301 = vmatpush2.msra.mxu0 0.0
        %2302 = vmatprep.subr.mxu0 0.0
        %2303 = vmatpush2.msra.mxu0 0.0
        %2304 = vmatprep.subr.mxu0 0.0
        %2305 = vmatpush2.msra.mxu0 0.0
        %2306 = vmatprep.subr.mxu0 0.0
        %2307 = vmatpush2.msra.mxu0 0.0
        %2308 = vmatprep.subr.mxu0 0.0
        %2309 = vmatpush2.msra.mxu0 0.0
        %2310 = vmatprep.subr.mxu0 0.0
        %2311 = vmatpush2.msra.mxu0 0.0
        %2312 = vmatprep.subr.mxu0 0.0
        %2313 = vmatpush2.msra.mxu0 0.0
        %2314 = vmatprep.subr.mxu0 0.0
        %2315 = vmatpush2.msra.mxu0 0.0
        %2316 = vmatprep.subr.mxu0 0.0
        %2317 = vmatpush2.msra.mxu0 0.0
        %2318 = vmatprep.subr.mxu0 0.0
        %2319 = vmatpush2.msra.mxu0 0.0
        %2320 = vmatprep.subr.mxu0 0.0
        %2321 = vmatpush2.msra.mxu0 0.0
        %2322 = vmatprep.subr.mxu0 0.0
        %2323 = vmatpush2.msra.mxu0 0.0
        %2324 = vmatprep.subr.mxu0 0.0
        %2325 = vmatpush2.msra.mxu0 0.0
        %2326 = vmatprep.mubr.f32.mxu0 0.0
        %v2327 = vand.u32 %v2082, 4294901760
        %v2328 = vsub.f32 %v2082, %v2327
        %2329 = vmatmul.mubr.f32.gmra.mxu0 %v2328
        %v2330 = vpop.f32.mrf.mxu0
        %v2331 = vadd.f32 %v2251, %v2330
        %v2332 = vpop.f32.mrf.mxu0
        %2333 = vdwg.mxu0
        %2334 = vmatprep.subr.mxu0 0.0
        %2335 = vmatpush1.msra.mxu0 0.0
        %2336 = vmatprep.subr.mxu0 0.0
        %2337 = vmatpush1.msra.mxu0 0.0
        %2338 = vmatprep.subr.mxu0 0.0
        %2339 = vmatpush1.msra.mxu0 0.0
        %2340 = vmatprep.subr.mxu0 0.0
        %2341 = vmatpush1.msra.mxu0 0.0
        %2342 = vmatprep.subr.mxu0 0.0
        %2343 = vmatpush1.msra.mxu0 0.0
        %2344 = vmatprep.subr.mxu0 0.0
        %2345 = vmatpush1.msra.mxu0 0.0
        %2346 = vmatprep.subr.mxu0 0.0
        %2347 = vmatpush1.msra.mxu0 0.0
        %2348 = vmatprep.subr.mxu0 0.0
        %2349 = vmatpush1.msra.mxu0 0.0
        %2350 = vmatprep.subr.mxu0 0.0
        %2351 = vmatpush1.msra.mxu0 0.0
        %2352 = vmatprep.subr.mxu0 0.0
        %2353 = vmatpush1.msra.mxu0 0.0
        %2354 = vmatprep.subr.mxu0 0.0
        %2355 = vmatpush1.msra.mxu0 0.0
        %2356 = vmatprep.subr.mxu0 0.0
        %2357 = vmatpush1.msra.mxu0 0.0
        %2358 = vmatprep.subr.mxu0 0.0
        %v2359 = vand.u32 %v2080, 4294901760
        %2360 = vmatpush1.msra.mxu0 %v2359
        %2361 = vmatprep.subr.mxu0 0.0
        %v2362 = vand.u32 %v2079, 4294901760
        %2363 = vmatpush1.msra.mxu0 %v2362
        %2364 = vmatprep.subr.mxu0 0.0
        %v2365 = vand.u32 %v2078, 4294901760
        %2366 = vmatpush1.msra.mxu0 %v2365
        %2367 = vmatprep.subr.mxu0 0.0
        %v2368 = vand.u32 %v2077, 4294901760
        %2369 = vmatpush1.msra.mxu0 %v2368
        %2370 = vmatprep.subr.mxu0 0.0
        %2371 = vmatpush2.msra.mxu0 0.0
        %2372 = vmatprep.subr.mxu0 0.0
        %2373 = vmatpush2.msra.mxu0 0.0
        %2374 = vmatprep.subr.mxu0 0.0
        %2375 = vmatpush2.msra.mxu0 0.0
        %2376 = vmatprep.subr.mxu0 0.0
        %2377 = vmatpush2.msra.mxu0 0.0
        %2378 = vmatprep.subr.mxu0 0.0
        %2379 = vmatpush2.msra.mxu0 0.0
        %2380 = vmatprep.subr.mxu0 0.0
        %2381 = vmatpush2.msra.mxu0 0.0
        %2382 = vmatprep.subr.mxu0 0.0
        %2383 = vmatpush2.msra.mxu0 0.0
        %2384 = vmatprep.subr.mxu0 0.0
        %2385 = vmatpush2.msra.mxu0 0.0
        %2386 = vmatprep.subr.mxu0 0.0
        %2387 = vmatpush2.msra.mxu0 0.0
        %2388 = vmatprep.subr.mxu0 0.0
        %2389 = vmatpush2.msra.mxu0 0.0
        %2390 = vmatprep.subr.mxu0 0.0
        %2391 = vmatpush2.msra.mxu0 0.0
        %2392 = vmatprep.subr.mxu0 0.0
        %2393 = vmatpush2.msra.mxu0 0.0
        %2394 = vmatprep.subr.mxu0 0.0
        %2395 = vmatpush2.msra.mxu0 0.0
        %2396 = vmatprep.subr.mxu0 0.0
        %2397 = vmatpush2.msra.mxu0 0.0
        %2398 = vmatprep.subr.mxu0 0.0
        %2399 = vmatpush2.msra.mxu0 0.0
        %2400 = vmatprep.subr.mxu0 0.0
        %2401 = vmatpush2.msra.mxu0 0.0
        %2402 = vmatprep.mubr.f32.mxu0 0.0
        %v2403 = vand.u32 %v2082, 4294901760
        %v2404 = vsub.f32 %v2082, %v2403
        %v2405 = vand.u32 %v2404, 4294901760
        %2406 = vmatmul.mubr.f32.gmra.mxu0 %v2405
        %v2407 = vpop.f32.mrf.mxu0
        %v2408 = vadd.f32 %v2331, %v2407
        %v2409 = vpop.f32.mrf.mxu0
        %2410 = vdwg.mxu0
        %2411 = vmatprep.subr.mxu0 0.0
        %2412 = vmatpush1.msra.mxu0 0.0
        %2413 = vmatprep.subr.mxu0 0.0
        %2414 = vmatpush1.msra.mxu0 0.0
        %2415 = vmatprep.subr.mxu0 0.0
        %2416 = vmatpush1.msra.mxu0 0.0
        %2417 = vmatprep.subr.mxu0 0.0
        %2418 = vmatpush1.msra.mxu0 0.0
        %2419 = vmatprep.subr.mxu0 0.0
        %2420 = vmatpush1.msra.mxu0 0.0
        %2421 = vmatprep.subr.mxu0 0.0
        %2422 = vmatpush1.msra.mxu0 0.0
        %2423 = vmatprep.subr.mxu0 0.0
        %2424 = vmatpush1.msra.mxu0 0.0
        %2425 = vmatprep.subr.mxu0 0.0
        %2426 = vmatpush1.msra.mxu0 0.0
        %2427 = vmatprep.subr.mxu0 0.0
        %2428 = vmatpush1.msra.mxu0 0.0
        %2429 = vmatprep.subr.mxu0 0.0
        %2430 = vmatpush1.msra.mxu0 0.0
        %2431 = vmatprep.subr.mxu0 0.0
        %2432 = vmatpush1.msra.mxu0 0.0
        %2433 = vmatprep.subr.mxu0 0.0
        %2434 = vmatpush1.msra.mxu0 0.0
        %2435 = vmatprep.subr.mxu0 0.0
        %v2436 = vand.u32 %v2080, 4294901760
        %v2437 = vsub.f32 %v2080, %v2436
        %v2438 = vand.u32 %v2437, 4294901760
        %2439 = vmatpush1.msra.mxu0 %v2438
        %2440 = vmatprep.subr.mxu0 0.0
        %v2441 = vand.u32 %v2079, 4294901760
        %v2442 = vsub.f32 %v2079, %v2441
        %v2443 = vand.u32 %v2442, 4294901760
        %2444 = vmatpush1.msra.mxu0 %v2443
        %2445 = vmatprep.subr.mxu0 0.0
        %v2446 = vand.u32 %v2078, 4294901760
        %v2447 = vsub.f32 %v2078, %v2446
        %v2448 = vand.u32 %v2447, 4294901760
        %2449 = vmatpush1.msra.mxu0 %v2448
        %2450 = vmatprep.subr.mxu0 0.0
        %v2451 = vand.u32 %v2077, 4294901760
        %v2452 = vsub.f32 %v2077, %v2451
        %v2453 = vand.u32 %v2452, 4294901760
        %2454 = vmatpush1.msra.mxu0 %v2453
        %2455 = vmatprep.subr.mxu0 0.0
        %2456 = vmatpush2.msra.mxu0 0.0
        %2457 = vmatprep.subr.mxu0 0.0
        %2458 = vmatpush2.msra.mxu0 0.0
        %2459 = vmatprep.subr.mxu0 0.0
        %2460 = vmatpush2.msra.mxu0 0.0
        %2461 = vmatprep.subr.mxu0 0.0
        %2462 = vmatpush2.msra.mxu0 0.0
        %2463 = vmatprep.subr.mxu0 0.0
        %2464 = vmatpush2.msra.mxu0 0.0
        %2465 = vmatprep.subr.mxu0 0.0
        %2466 = vmatpush2.msra.mxu0 0.0
        %2467 = vmatprep.subr.mxu0 0.0
        %2468 = vmatpush2.msra.mxu0 0.0
        %2469 = vmatprep.subr.mxu0 0.0
        %2470 = vmatpush2.msra.mxu0 0.0
        %2471 = vmatprep.subr.mxu0 0.0
        %2472 = vmatpush2.msra.mxu0 0.0
        %2473 = vmatprep.subr.mxu0 0.0
        %2474 = vmatpush2.msra.mxu0 0.0
        %2475 = vmatprep.subr.mxu0 0.0
        %2476 = vmatpush2.msra.mxu0 0.0
        %2477 = vmatprep.subr.mxu0 0.0
        %2478 = vmatpush2.msra.mxu0 0.0
        %2479 = vmatprep.subr.mxu0 0.0
        %2480 = vmatpush2.msra.mxu0 0.0
        %2481 = vmatprep.subr.mxu0 0.0
        %2482 = vmatpush2.msra.mxu0 0.0
        %2483 = vmatprep.subr.mxu0 0.0
        %2484 = vmatpush2.msra.mxu0 0.0
        %2485 = vmatprep.subr.mxu0 0.0
        %2486 = vmatpush2.msra.mxu0 0.0
        %2487 = vmatprep.mubr.f32.mxu0 0.0
        %v2488 = vand.u32 %v2082, 4294901760
        %2489 = vmatmul.mubr.f32.gmra.mxu0 %v2488
        %v2490 = vpop.f32.mrf.mxu0
        %v2491 = vadd.f32 %v2408, %v2490
        %v2492 = vpop.f32.mrf.mxu0
        %2493 = vdwg.mxu0
        %2494 = vmatprep.subr.mxu0 0.0
        %2495 = vmatpush1.msra.mxu0 0.0
        %2496 = vmatprep.subr.mxu0 0.0
        %2497 = vmatpush1.msra.mxu0 0.0
        %2498 = vmatprep.subr.mxu0 0.0
        %2499 = vmatpush1.msra.mxu0 0.0
        %2500 = vmatprep.subr.mxu0 0.0
        %2501 = vmatpush1.msra.mxu0 0.0
        %2502 = vmatprep.subr.mxu0 0.0
        %2503 = vmatpush1.msra.mxu0 0.0
        %2504 = vmatprep.subr.mxu0 0.0
        %2505 = vmatpush1.msra.mxu0 0.0
        %2506 = vmatprep.subr.mxu0 0.0
        %2507 = vmatpush1.msra.mxu0 0.0
        %2508 = vmatprep.subr.mxu0 0.0
        %2509 = vmatpush1.msra.mxu0 0.0
        %2510 = vmatprep.subr.mxu0 0.0
        %2511 = vmatpush1.msra.mxu0 0.0
        %2512 = vmatprep.subr.mxu0 0.0
        %2513 = vmatpush1.msra.mxu0 0.0
        %2514 = vmatprep.subr.mxu0 0.0
        %2515 = vmatpush1.msra.mxu0 0.0
        %2516 = vmatprep.subr.mxu0 0.0
        %2517 = vmatpush1.msra.mxu0 0.0
        %2518 = vmatprep.subr.mxu0 0.0
        %v2519 = vand.u32 %v2080, 4294901760
        %2520 = vmatpush1.msra.mxu0 %v2519
        %2521 = vmatprep.subr.mxu0 0.0
        %v2522 = vand.u32 %v2079, 4294901760
        %2523 = vmatpush1.msra.mxu0 %v2522
        %2524 = vmatprep.subr.mxu0 0.0
        %v2525 = vand.u32 %v2078, 4294901760
        %2526 = vmatpush1.msra.mxu0 %v2525
        %2527 = vmatprep.subr.mxu0 0.0
        %v2528 = vand.u32 %v2077, 4294901760
        %2529 = vmatpush1.msra.mxu0 %v2528
        %2530 = vmatprep.subr.mxu0 0.0
        %2531 = vmatpush2.msra.mxu0 0.0
        %2532 = vmatprep.subr.mxu0 0.0
        %2533 = vmatpush2.msra.mxu0 0.0
        %2534 = vmatprep.subr.mxu0 0.0
        %2535 = vmatpush2.msra.mxu0 0.0
        %2536 = vmatprep.subr.mxu0 0.0
        %2537 = vmatpush2.msra.mxu0 0.0
        %2538 = vmatprep.subr.mxu0 0.0
        %2539 = vmatpush2.msra.mxu0 0.0
        %2540 = vmatprep.subr.mxu0 0.0
        %2541 = vmatpush2.msra.mxu0 0.0
        %2542 = vmatprep.subr.mxu0 0.0
        %2543 = vmatpush2.msra.mxu0 0.0
        %2544 = vmatprep.subr.mxu0 0.0
        %2545 = vmatpush2.msra.mxu0 0.0
        %2546 = vmatprep.subr.mxu0 0.0
        %2547 = vmatpush2.msra.mxu0 0.0
        %2548 = vmatprep.subr.mxu0 0.0
        %2549 = vmatpush2.msra.mxu0 0.0
        %2550 = vmatprep.subr.mxu0 0.0
        %2551 = vmatpush2.msra.mxu0 0.0
        %2552 = vmatprep.subr.mxu0 0.0
        %2553 = vmatpush2.msra.mxu0 0.0
        %2554 = vmatprep.subr.mxu0 0.0
        %2555 = vmatpush2.msra.mxu0 0.0
        %2556 = vmatprep.subr.mxu0 0.0
        %2557 = vmatpush2.msra.mxu0 0.0
        %2558 = vmatprep.subr.mxu0 0.0
        %2559 = vmatpush2.msra.mxu0 0.0
        %2560 = vmatprep.subr.mxu0 0.0
        %2561 = vmatpush2.msra.mxu0 0.0
        %2562 = vmatprep.mubr.f32.mxu0 0.0
        %v2563 = vand.u32 %v2082, 4294901760
        %2564 = vmatmul.mubr.f32.gmra.mxu0 %v2563
        %v2565 = vpop.f32.mrf.mxu0
        %v2566 = vadd.f32 %v2491, %v2565
        %v2567 = vpop.f32.mrf.mxu0
        %2568 = vdwg.mxu0
        %v2569 = vrcp.pop %v2566
        %v2570 = vmul.f32 %v2076, %v2569
        %2575 = vrot.lane.b32.xlu0 %v1559, 64
        %v2576 = vpop.permute.xlu0 %2575
        %2577 = vrot.lane.b32.xlu0 %v1560, 64
        %v2578 = vpop.permute.xlu0 %2577
        %2579 = vrot.lane.b32.xlu0 %v1561, 64
        %v2580 = vpop.permute.xlu0 %2579
        %2581 = vrot.lane.b32.xlu0 %v1562, 64
        %v2582 = vpop.permute.xlu0 %2581
        %v2588 = vsel %vm1034, %v2570, 0
        %2590 = vmatprep.subr.mxu0 0.0
        %2591 = vmatpush1.msra.mxu0 0.0
        %2592 = vmatprep.subr.mxu0 0.0
        %2593 = vmatpush1.msra.mxu0 0.0
        %2594 = vmatprep.subr.mxu0 0.0
        %2595 = vmatpush1.msra.mxu0 0.0
        %2596 = vmatprep.subr.mxu0 0.0
        %2597 = vmatpush1.msra.mxu0 0.0
        %2598 = vmatprep.subr.mxu0 0.0
        %2599 = vmatpush1.msra.mxu0 0.0
        %2600 = vmatprep.subr.mxu0 0.0
        %2601 = vmatpush1.msra.mxu0 0.0
        %2602 = vmatprep.subr.mxu0 0.0
        %2603 = vmatpush1.msra.mxu0 0.0
        %2604 = vmatprep.subr.mxu0 0.0
        %2605 = vmatpush1.msra.mxu0 0.0
        %2606 = vmatprep.subr.mxu0 0.0
        %2607 = vmatpush1.msra.mxu0 0.0
        %2608 = vmatprep.subr.mxu0 0.0
        %2609 = vmatpush1.msra.mxu0 0.0
        %2610 = vmatprep.subr.mxu0 0.0
        %2611 = vmatpush1.msra.mxu0 0.0
        %2612 = vmatprep.subr.mxu0 0.0
        %2613 = vmatpush1.msra.mxu0 0.0
        %2614 = vmatprep.subr.mxu0 0.0
        %v2615 = vand.u32 %v2582, 4294901760
        %2616 = vmatpush1.msra.mxu0 %v2615
        %2617 = vmatprep.subr.mxu0 0.0
        %v2618 = vand.u32 %v2580, 4294901760
        %2619 = vmatpush1.msra.mxu0 %v2618
        %2620 = vmatprep.subr.mxu0 0.0
        %v2621 = vand.u32 %v2578, 4294901760
        %2622 = vmatpush1.msra.mxu0 %v2621
        %2623 = vmatprep.subr.mxu0 0.0
        %v2624 = vand.u32 %v2576, 4294901760
        %2625 = vmatpush1.msra.mxu0 %v2624
        %2626 = vmatprep.subr.mxu0 0.0
        %2627 = vmatpush2.msra.mxu0 0.0
        %2628 = vmatprep.subr.mxu0 0.0
        %2629 = vmatpush2.msra.mxu0 0.0
        %2630 = vmatprep.subr.mxu0 0.0
        %2631 = vmatpush2.msra.mxu0 0.0
        %2632 = vmatprep.subr.mxu0 0.0
        %2633 = vmatpush2.msra.mxu0 0.0
        %2634 = vmatprep.subr.mxu0 0.0
        %2635 = vmatpush2.msra.mxu0 0.0
        %2636 = vmatprep.subr.mxu0 0.0
        %2637 = vmatpush2.msra.mxu0 0.0
        %2638 = vmatprep.subr.mxu0 0.0
        %2639 = vmatpush2.msra.mxu0 0.0
        %2640 = vmatprep.subr.mxu0 0.0
        %2641 = vmatpush2.msra.mxu0 0.0
        %2642 = vmatprep.subr.mxu0 0.0
        %2643 = vmatpush2.msra.mxu0 0.0
        %2644 = vmatprep.subr.mxu0 0.0
        %2645 = vmatpush2.msra.mxu0 0.0
        %2646 = vmatprep.subr.mxu0 0.0
        %2647 = vmatpush2.msra.mxu0 0.0
        %2648 = vmatprep.subr.mxu0 0.0
        %2649 = vmatpush2.msra.mxu0 0.0
        %2650 = vmatprep.subr.mxu0 0.0
        %2651 = vmatpush2.msra.mxu0 0.0
        %2652 = vmatprep.subr.mxu0 0.0
        %2653 = vmatpush2.msra.mxu0 0.0
        %2654 = vmatprep.subr.mxu0 0.0
        %2655 = vmatpush2.msra.mxu0 0.0
        %2656 = vmatprep.subr.mxu0 0.0
        %2657 = vmatpush2.msra.mxu0 0.0
        %2658 = vmatprep.mubr.f32.mxu0 0.0
        %v2659 = vand.u32 %v2588, 4294901760
        %v2660 = vsub.f32 %v2588, %v2659
        %v2661 = vand.u32 %v2660, 4294901760
        %v2662 = vsub.f32 %v2660, %v2661
        %v2663 = vand.u32 %v2662, 4294901760
        %2664 = vmatmul.mubr.f32.gmra.mxu0 %v2663
        %v2665 = vpop.f32.mrf.mxu0
        %v2666 = vadd.f32 0.0, %v2665
        %v2667 = vpop.f32.mrf.mxu0
        %2668 = vdwg.mxu0
        %2669 = vmatprep.subr.mxu0 0.0
        %2670 = vmatpush1.msra.mxu0 0.0
        %2671 = vmatprep.subr.mxu0 0.0
        %2672 = vmatpush1.msra.mxu0 0.0
        %2673 = vmatprep.subr.mxu0 0.0
        %2674 = vmatpush1.msra.mxu0 0.0
        %2675 = vmatprep.subr.mxu0 0.0
        %2676 = vmatpush1.msra.mxu0 0.0
        %2677 = vmatprep.subr.mxu0 0.0
        %2678 = vmatpush1.msra.mxu0 0.0
        %2679 = vmatprep.subr.mxu0 0.0
        %2680 = vmatpush1.msra.mxu0 0.0
        %2681 = vmatprep.subr.mxu0 0.0
        %2682 = vmatpush1.msra.mxu0 0.0
        %2683 = vmatprep.subr.mxu0 0.0
        %2684 = vmatpush1.msra.mxu0 0.0
        %2685 = vmatprep.subr.mxu0 0.0
        %2686 = vmatpush1.msra.mxu0 0.0
        %2687 = vmatprep.subr.mxu0 0.0
        %2688 = vmatpush1.msra.mxu0 0.0
        %2689 = vmatprep.subr.mxu0 0.0
        %2690 = vmatpush1.msra.mxu0 0.0
        %2691 = vmatprep.subr.mxu0 0.0
        %2692 = vmatpush1.msra.mxu0 0.0
        %2693 = vmatprep.subr.mxu0 0.0
        %v2694 = vand.u32 %v2582, 4294901760
        %v2695 = vsub.f32 %v2582, %v2694
        %v2696 = vand.u32 %v2695, 4294901760
        %v2697 = vsub.f32 %v2695, %v2696
        %v2698 = vand.u32 %v2697, 4294901760
        %2699 = vmatpush1.msra.mxu0 %v2698
        %2700 = vmatprep.subr.mxu0 0.0
        %v2701 = vand.u32 %v2580, 4294901760
        %v2702 = vsub.f32 %v2580, %v2701
        %v2703 = vand.u32 %v2702, 4294901760
        %v2704 = vsub.f32 %v2702, %v2703
        %v2705 = vand.u32 %v2704, 4294901760
        %2706 = vmatpush1.msra.mxu0 %v2705
        %2707 = vmatprep.subr.mxu0 0.0
        %v2708 = vand.u32 %v2578, 4294901760
        %v2709 = vsub.f32 %v2578, %v2708
        %v2710 = vand.u32 %v2709, 4294901760
        %v2711 = vsub.f32 %v2709, %v2710
        %v2712 = vand.u32 %v2711, 4294901760
        %2713 = vmatpush1.msra.mxu0 %v2712
        %2714 = vmatprep.subr.mxu0 0.0
        %v2715 = vand.u32 %v2576, 4294901760
        %v2716 = vsub.f32 %v2576, %v2715
        %v2717 = vand.u32 %v2716, 4294901760
        %v2718 = vsub.f32 %v2716, %v2717
        %v2719 = vand.u32 %v2718, 4294901760
        %2720 = vmatpush1.msra.mxu0 %v2719
        %2721 = vmatprep.subr.mxu0 0.0
        %2722 = vmatpush2.msra.mxu0 0.0
        %2723 = vmatprep.subr.mxu0 0.0
        %2724 = vmatpush2.msra.mxu0 0.0
        %2725 = vmatprep.subr.mxu0 0.0
        %2726 = vmatpush2.msra.mxu0 0.0
        %2727 = vmatprep.subr.mxu0 0.0
        %2728 = vmatpush2.msra.mxu0 0.0
        %2729 = vmatprep.subr.mxu0 0.0
        %2730 = vmatpush2.msra.mxu0 0.0
        %2731 = vmatprep.subr.mxu0 0.0
        %2732 = vmatpush2.msra.mxu0 0.0
        %2733 = vmatprep.subr.mxu0 0.0
        %2734 = vmatpush2.msra.mxu0 0.0
        %2735 = vmatprep.subr.mxu0 0.0
        %2736 = vmatpush2.msra.mxu0 0.0
        %2737 = vmatprep.subr.mxu0 0.0
        %2738 = vmatpush2.msra.mxu0 0.0
        %2739 = vmatprep.subr.mxu0 0.0
        %2740 = vmatpush2.msra.mxu0 0.0
        %2741 = vmatprep.subr.mxu0 0.0
        %2742 = vmatpush2.msra.mxu0 0.0
        %2743 = vmatprep.subr.mxu0 0.0
        %2744 = vmatpush2.msra.mxu0 0.0
        %2745 = vmatprep.subr.mxu0 0.0
        %2746 = vmatpush2.msra.mxu0 0.0
        %2747 = vmatprep.subr.mxu0 0.0
        %2748 = vmatpush2.msra.mxu0 0.0
        %2749 = vmatprep.subr.mxu0 0.0
        %2750 = vmatpush2.msra.mxu0 0.0
        %2751 = vmatprep.subr.mxu0 0.0
        %2752 = vmatpush2.msra.mxu0 0.0
        %2753 = vmatprep.mubr.f32.mxu0 0.0
        %v2754 = vand.u32 %v2588, 4294901760
        %2755 = vmatmul.mubr.f32.gmra.mxu0 %v2754
        %v2756 = vpop.f32.mrf.mxu0
        %v2757 = vadd.f32 %v2666, %v2756
        %v2758 = vpop.f32.mrf.mxu0
        %2759 = vdwg.mxu0
        %2760 = vmatprep.subr.mxu0 0.0
        %2761 = vmatpush1.msra.mxu0 0.0
        %2762 = vmatprep.subr.mxu0 0.0
        %2763 = vmatpush1.msra.mxu0 0.0
        %2764 = vmatprep.subr.mxu0 0.0
        %2765 = vmatpush1.msra.mxu0 0.0
        %2766 = vmatprep.subr.mxu0 0.0
        %2767 = vmatpush1.msra.mxu0 0.0
        %2768 = vmatprep.subr.mxu0 0.0
        %2769 = vmatpush1.msra.mxu0 0.0
        %2770 = vmatprep.subr.mxu0 0.0
        %2771 = vmatpush1.msra.mxu0 0.0
        %2772 = vmatprep.subr.mxu0 0.0
        %2773 = vmatpush1.msra.mxu0 0.0
        %2774 = vmatprep.subr.mxu0 0.0
        %2775 = vmatpush1.msra.mxu0 0.0
        %2776 = vmatprep.subr.mxu0 0.0
        %2777 = vmatpush1.msra.mxu0 0.0
        %2778 = vmatprep.subr.mxu0 0.0
        %2779 = vmatpush1.msra.mxu0 0.0
        %2780 = vmatprep.subr.mxu0 0.0
        %2781 = vmatpush1.msra.mxu0 0.0
        %2782 = vmatprep.subr.mxu0 0.0
        %2783 = vmatpush1.msra.mxu0 0.0
        %2784 = vmatprep.subr.mxu0 0.0
        %v2785 = vand.u32 %v2582, 4294901760
        %v2786 = vsub.f32 %v2582, %v2785
        %2787 = vmatpush1.msra.mxu0 %v2786
        %2788 = vmatprep.subr.mxu0 0.0
        %v2789 = vand.u32 %v2580, 4294901760
        %v2790 = vsub.f32 %v2580, %v2789
        %2791 = vmatpush1.msra.mxu0 %v2790
        %2792 = vmatprep.subr.mxu0 0.0
        %v2793 = vand.u32 %v2578, 4294901760
        %v2794 = vsub.f32 %v2578, %v2793
        %2795 = vmatpush1.msra.mxu0 %v2794
        %2796 = vmatprep.subr.mxu0 0.0
        %v2797 = vand.u32 %v2576, 4294901760
        %v2798 = vsub.f32 %v2576, %v2797
        %2799 = vmatpush1.msra.mxu0 %v2798
        %2800 = vmatprep.subr.mxu0 0.0
        %2801 = vmatpush2.msra.mxu0 0.0
        %2802 = vmatprep.subr.mxu0 0.0
        %2803 = vmatpush2.msra.mxu0 0.0
        %2804 = vmatprep.subr.mxu0 0.0
        %2805 = vmatpush2.msra.mxu0 0.0
        %2806 = vmatprep.subr.mxu0 0.0
        %2807 = vmatpush2.msra.mxu0 0.0
        %2808 = vmatprep.subr.mxu0 0.0
        %2809 = vmatpush2.msra.mxu0 0.0
        %2810 = vmatprep.subr.mxu0 0.0
        %2811 = vmatpush2.msra.mxu0 0.0
        %2812 = vmatprep.subr.mxu0 0.0
        %2813 = vmatpush2.msra.mxu0 0.0
        %2814 = vmatprep.subr.mxu0 0.0
        %2815 = vmatpush2.msra.mxu0 0.0
        %2816 = vmatprep.subr.mxu0 0.0
        %2817 = vmatpush2.msra.mxu0 0.0
        %2818 = vmatprep.subr.mxu0 0.0
        %2819 = vmatpush2.msra.mxu0 0.0
        %2820 = vmatprep.subr.mxu0 0.0
        %2821 = vmatpush2.msra.mxu0 0.0
        %2822 = vmatprep.subr.mxu0 0.0
        %2823 = vmatpush2.msra.mxu0 0.0
        %2824 = vmatprep.subr.mxu0 0.0
        %2825 = vmatpush2.msra.mxu0 0.0
        %2826 = vmatprep.subr.mxu0 0.0
        %2827 = vmatpush2.msra.mxu0 0.0
        %2828 = vmatprep.subr.mxu0 0.0
        %2829 = vmatpush2.msra.mxu0 0.0
        %2830 = vmatprep.subr.mxu0 0.0
        %2831 = vmatpush2.msra.mxu0 0.0
        %2832 = vmatprep.mubr.f32.mxu0 0.0
        %v2833 = vand.u32 %v2588, 4294901760
        %v2834 = vsub.f32 %v2588, %v2833
        %2835 = vmatmul.mubr.f32.gmra.mxu0 %v2834
        %v2836 = vpop.f32.mrf.mxu0
        %v2837 = vadd.f32 %v2757, %v2836
        %v2838 = vpop.f32.mrf.mxu0
        %2839 = vdwg.mxu0
        %2840 = vmatprep.subr.mxu0 0.0
        %2841 = vmatpush1.msra.mxu0 0.0
        %2842 = vmatprep.subr.mxu0 0.0
        %2843 = vmatpush1.msra.mxu0 0.0
        %2844 = vmatprep.subr.mxu0 0.0
        %2845 = vmatpush1.msra.mxu0 0.0
        %2846 = vmatprep.subr.mxu0 0.0
        %2847 = vmatpush1.msra.mxu0 0.0
        %2848 = vmatprep.subr.mxu0 0.0
        %2849 = vmatpush1.msra.mxu0 0.0
        %2850 = vmatprep.subr.mxu0 0.0
        %2851 = vmatpush1.msra.mxu0 0.0
        %2852 = vmatprep.subr.mxu0 0.0
        %2853 = vmatpush1.msra.mxu0 0.0
        %2854 = vmatprep.subr.mxu0 0.0
        %2855 = vmatpush1.msra.mxu0 0.0
        %2856 = vmatprep.subr.mxu0 0.0
        %2857 = vmatpush1.msra.mxu0 0.0
        %2858 = vmatprep.subr.mxu0 0.0
        %2859 = vmatpush1.msra.mxu0 0.0
        %2860 = vmatprep.subr.mxu0 0.0
        %2861 = vmatpush1.msra.mxu0 0.0
        %2862 = vmatprep.subr.mxu0 0.0
        %2863 = vmatpush1.msra.mxu0 0.0
        %2864 = vmatprep.subr.mxu0 0.0
        %v2865 = vand.u32 %v2582, 4294901760
        %2866 = vmatpush1.msra.mxu0 %v2865
        %2867 = vmatprep.subr.mxu0 0.0
        %v2868 = vand.u32 %v2580, 4294901760
        %2869 = vmatpush1.msra.mxu0 %v2868
        %2870 = vmatprep.subr.mxu0 0.0
        %v2871 = vand.u32 %v2578, 4294901760
        %2872 = vmatpush1.msra.mxu0 %v2871
        %2873 = vmatprep.subr.mxu0 0.0
        %v2874 = vand.u32 %v2576, 4294901760
        %2875 = vmatpush1.msra.mxu0 %v2874
        %2876 = vmatprep.subr.mxu0 0.0
        %2877 = vmatpush2.msra.mxu0 0.0
        %2878 = vmatprep.subr.mxu0 0.0
        %2879 = vmatpush2.msra.mxu0 0.0
        %2880 = vmatprep.subr.mxu0 0.0
        %2881 = vmatpush2.msra.mxu0 0.0
        %2882 = vmatprep.subr.mxu0 0.0
        %2883 = vmatpush2.msra.mxu0 0.0
        %2884 = vmatprep.subr.mxu0 0.0
        %2885 = vmatpush2.msra.mxu0 0.0
        %2886 = vmatprep.subr.mxu0 0.0
        %2887 = vmatpush2.msra.mxu0 0.0
        %2888 = vmatprep.subr.mxu0 0.0
        %2889 = vmatpush2.msra.mxu0 0.0
        %2890 = vmatprep.subr.mxu0 0.0
        %2891 = vmatpush2.msra.mxu0 0.0
        %2892 = vmatprep.subr.mxu0 0.0
        %2893 = vmatpush2.msra.mxu0 0.0
        %2894 = vmatprep.subr.mxu0 0.0
        %2895 = vmatpush2.msra.mxu0 0.0
        %2896 = vmatprep.subr.mxu0 0.0
        %2897 = vmatpush2.msra.mxu0 0.0
        %2898 = vmatprep.subr.mxu0 0.0
        %2899 = vmatpush2.msra.mxu0 0.0
        %2900 = vmatprep.subr.mxu0 0.0
        %2901 = vmatpush2.msra.mxu0 0.0
        %2902 = vmatprep.subr.mxu0 0.0
        %2903 = vmatpush2.msra.mxu0 0.0
        %2904 = vmatprep.subr.mxu0 0.0
        %2905 = vmatpush2.msra.mxu0 0.0
        %2906 = vmatprep.subr.mxu0 0.0
        %2907 = vmatpush2.msra.mxu0 0.0
        %2908 = vmatprep.mubr.f32.mxu0 0.0
        %v2909 = vand.u32 %v2588, 4294901760
        %v2910 = vsub.f32 %v2588, %v2909
        %v2911 = vand.u32 %v2910, 4294901760
        %2912 = vmatmul.mubr.f32.gmra.mxu0 %v2911
        %v2913 = vpop.f32.mrf.mxu0
        %v2914 = vadd.f32 %v2837, %v2913
        %v2915 = vpop.f32.mrf.mxu0
        %2916 = vdwg.mxu0
        %2917 = vmatprep.subr.mxu0 0.0
        %2918 = vmatpush1.msra.mxu0 0.0
        %2919 = vmatprep.subr.mxu0 0.0
        %2920 = vmatpush1.msra.mxu0 0.0
        %2921 = vmatprep.subr.mxu0 0.0
        %2922 = vmatpush1.msra.mxu0 0.0
        %2923 = vmatprep.subr.mxu0 0.0
        %2924 = vmatpush1.msra.mxu0 0.0
        %2925 = vmatprep.subr.mxu0 0.0
        %2926 = vmatpush1.msra.mxu0 0.0
        %2927 = vmatprep.subr.mxu0 0.0
        %2928 = vmatpush1.msra.mxu0 0.0
        %2929 = vmatprep.subr.mxu0 0.0
        %2930 = vmatpush1.msra.mxu0 0.0
        %2931 = vmatprep.subr.mxu0 0.0
        %2932 = vmatpush1.msra.mxu0 0.0
        %2933 = vmatprep.subr.mxu0 0.0
        %2934 = vmatpush1.msra.mxu0 0.0
        %2935 = vmatprep.subr.mxu0 0.0
        %2936 = vmatpush1.msra.mxu0 0.0
        %2937 = vmatprep.subr.mxu0 0.0
        %2938 = vmatpush1.msra.mxu0 0.0
        %2939 = vmatprep.subr.mxu0 0.0
        %2940 = vmatpush1.msra.mxu0 0.0
        %2941 = vmatprep.subr.mxu0 0.0
        %v2942 = vand.u32 %v2582, 4294901760
        %v2943 = vsub.f32 %v2582, %v2942
        %v2944 = vand.u32 %v2943, 4294901760
        %2945 = vmatpush1.msra.mxu0 %v2944
        %2946 = vmatprep.subr.mxu0 0.0
        %v2947 = vand.u32 %v2580, 4294901760
        %v2948 = vsub.f32 %v2580, %v2947
        %v2949 = vand.u32 %v2948, 4294901760
        %2950 = vmatpush1.msra.mxu0 %v2949
        %2951 = vmatprep.subr.mxu0 0.0
        %v2952 = vand.u32 %v2578, 4294901760
        %v2953 = vsub.f32 %v2578, %v2952
        %v2954 = vand.u32 %v2953, 4294901760
        %2955 = vmatpush1.msra.mxu0 %v2954
        %2956 = vmatprep.subr.mxu0 0.0
        %v2957 = vand.u32 %v2576, 4294901760
        %v2958 = vsub.f32 %v2576, %v2957
        %v2959 = vand.u32 %v2958, 4294901760
        %2960 = vmatpush1.msra.mxu0 %v2959
        %2961 = vmatprep.subr.mxu0 0.0
        %2962 = vmatpush2.msra.mxu0 0.0
        %2963 = vmatprep.subr.mxu0 0.0
        %2964 = vmatpush2.msra.mxu0 0.0
        %2965 = vmatprep.subr.mxu0 0.0
        %2966 = vmatpush2.msra.mxu0 0.0
        %2967 = vmatprep.subr.mxu0 0.0
        %2968 = vmatpush2.msra.mxu0 0.0
        %2969 = vmatprep.subr.mxu0 0.0
        %2970 = vmatpush2.msra.mxu0 0.0
        %2971 = vmatprep.subr.mxu0 0.0
        %2972 = vmatpush2.msra.mxu0 0.0
        %2973 = vmatprep.subr.mxu0 0.0
        %2974 = vmatpush2.msra.mxu0 0.0
        %2975 = vmatprep.subr.mxu0 0.0
        %2976 = vmatpush2.msra.mxu0 0.0
        %2977 = vmatprep.subr.mxu0 0.0
        %2978 = vmatpush2.msra.mxu0 0.0
        %2979 = vmatprep.subr.mxu0 0.0
        %2980 = vmatpush2.msra.mxu0 0.0
        %2981 = vmatprep.subr.mxu0 0.0
        %2982 = vmatpush2.msra.mxu0 0.0
        %2983 = vmatprep.subr.mxu0 0.0
        %2984 = vmatpush2.msra.mxu0 0.0
        %2985 = vmatprep.subr.mxu0 0.0
        %2986 = vmatpush2.msra.mxu0 0.0
        %2987 = vmatprep.subr.mxu0 0.0
        %2988 = vmatpush2.msra.mxu0 0.0
        %2989 = vmatprep.subr.mxu0 0.0
        %2990 = vmatpush2.msra.mxu0 0.0
        %2991 = vmatprep.subr.mxu0 0.0
        %2992 = vmatpush2.msra.mxu0 0.0
        %2993 = vmatprep.mubr.f32.mxu0 0.0
        %v2994 = vand.u32 %v2588, 4294901760
        %2995 = vmatmul.mubr.f32.gmra.mxu0 %v2994
        %v2996 = vpop.f32.mrf.mxu0
        %v2997 = vadd.f32 %v2914, %v2996
        %v2998 = vpop.f32.mrf.mxu0
        %2999 = vdwg.mxu0
        %3000 = vmatprep.subr.mxu0 0.0
        %3001 = vmatpush1.msra.mxu0 0.0
        %3002 = vmatprep.subr.mxu0 0.0
        %3003 = vmatpush1.msra.mxu0 0.0
        %3004 = vmatprep.subr.mxu0 0.0
        %3005 = vmatpush1.msra.mxu0 0.0
        %3006 = vmatprep.subr.mxu0 0.0
        %3007 = vmatpush1.msra.mxu0 0.0
        %3008 = vmatprep.subr.mxu0 0.0
        %3009 = vmatpush1.msra.mxu0 0.0
        %3010 = vmatprep.subr.mxu0 0.0
        %3011 = vmatpush1.msra.mxu0 0.0
        %3012 = vmatprep.subr.mxu0 0.0
        %3013 = vmatpush1.msra.mxu0 0.0
        %3014 = vmatprep.subr.mxu0 0.0
        %3015 = vmatpush1.msra.mxu0 0.0
        %3016 = vmatprep.subr.mxu0 0.0
        %3017 = vmatpush1.msra.mxu0 0.0
        %3018 = vmatprep.subr.mxu0 0.0
        %3019 = vmatpush1.msra.mxu0 0.0
        %3020 = vmatprep.subr.mxu0 0.0
        %3021 = vmatpush1.msra.mxu0 0.0
        %3022 = vmatprep.subr.mxu0 0.0
        %3023 = vmatpush1.msra.mxu0 0.0
        %3024 = vmatprep.subr.mxu0 0.0
        %v3025 = vand.u32 %v2582, 4294901760
        %3026 = vmatpush1.msra.mxu0 %v3025
        %3027 = vmatprep.subr.mxu0 0.0
        %v3028 = vand.u32 %v2580, 4294901760
        %3029 = vmatpush1.msra.mxu0 %v3028
        %3030 = vmatprep.subr.mxu0 0.0
        %v3031 = vand.u32 %v2578, 4294901760
        %3032 = vmatpush1.msra.mxu0 %v3031
        %3033 = vmatprep.subr.mxu0 0.0
        %v3034 = vand.u32 %v2576, 4294901760
        %3035 = vmatpush1.msra.mxu0 %v3034
        %3036 = vmatprep.subr.mxu0 0.0
        %3037 = vmatpush2.msra.mxu0 0.0
        %3038 = vmatprep.subr.mxu0 0.0
        %3039 = vmatpush2.msra.mxu0 0.0
        %3040 = vmatprep.subr.mxu0 0.0
        %3041 = vmatpush2.msra.mxu0 0.0
        %3042 = vmatprep.subr.mxu0 0.0
        %3043 = vmatpush2.msra.mxu0 0.0
        %3044 = vmatprep.subr.mxu0 0.0
        %3045 = vmatpush2.msra.mxu0 0.0
        %3046 = vmatprep.subr.mxu0 0.0
        %3047 = vmatpush2.msra.mxu0 0.0
        %3048 = vmatprep.subr.mxu0 0.0
        %3049 = vmatpush2.msra.mxu0 0.0
        %3050 = vmatprep.subr.mxu0 0.0
        %3051 = vmatpush2.msra.mxu0 0.0
        %3052 = vmatprep.subr.mxu0 0.0
        %3053 = vmatpush2.msra.mxu0 0.0
        %3054 = vmatprep.subr.mxu0 0.0
        %3055 = vmatpush2.msra.mxu0 0.0
        %3056 = vmatprep.subr.mxu0 0.0
        %3057 = vmatpush2.msra.mxu0 0.0
        %3058 = vmatprep.subr.mxu0 0.0
        %3059 = vmatpush2.msra.mxu0 0.0
        %3060 = vmatprep.subr.mxu0 0.0
        %3061 = vmatpush2.msra.mxu0 0.0
        %3062 = vmatprep.subr.mxu0 0.0
        %3063 = vmatpush2.msra.mxu0 0.0
        %3064 = vmatprep.subr.mxu0 0.0
        %3065 = vmatpush2.msra.mxu0 0.0
        %3066 = vmatprep.subr.mxu0 0.0
        %3067 = vmatpush2.msra.mxu0 0.0
        %3068 = vmatprep.mubr.f32.mxu0 0.0
        %v3069 = vand.u32 %v2588, 4294901760
        %3070 = vmatmul.mubr.f32.gmra.mxu0 %v3069
        %v3071 = vpop.f32.mrf.mxu0
        %v3072 = vadd.f32 %v2997, %v3071
        %v3073 = vpop.f32.mrf.mxu0
        %3074 = vdwg.mxu0
        %v3075 = vld [vmem:[%s6] sm:$0xff]
        %v3076 = vld [vmem:[%s6 + $0x8] sm:$0xff]
        %v3077 = vld [vmem:[%s6 + $0x10] sm:$0xff]
        %v3078 = vld [vmem:[%s6 + $0x18] sm:$0xff]
        %v3079 = vlaneseq
        %v3080 = vshrl.u32 %v3079, 7
        %v3081 = vsub.s32 1, %v3080
        %v3082 = vrot.slane %v551, %v3081
        %v3084 = vsel %vm1034, %v3072, 0
        %3086 = vmatprep.subr.mxu0 0.0
        %3087 = vmatpush1.msra.mxu0 0.0
        %3088 = vmatprep.subr.mxu0 0.0
        %3089 = vmatpush1.msra.mxu0 0.0
        %3090 = vmatprep.subr.mxu0 0.0
        %3091 = vmatpush1.msra.mxu0 0.0
        %3092 = vmatprep.subr.mxu0 0.0
        %3093 = vmatpush1.msra.mxu0 0.0
        %3094 = vmatprep.subr.mxu0 0.0
        %3095 = vmatpush1.msra.mxu0 0.0
        %3096 = vmatprep.subr.mxu0 0.0
        %3097 = vmatpush1.msra.mxu0 0.0
        %3098 = vmatprep.subr.mxu0 0.0
        %3099 = vmatpush1.msra.mxu0 0.0
        %3100 = vmatprep.subr.mxu0 0.0
        %3101 = vmatpush1.msra.mxu0 0.0
        %3102 = vmatprep.subr.mxu0 0.0
        %3103 = vmatpush1.msra.mxu0 0.0
        %3104 = vmatprep.subr.mxu0 0.0
        %3105 = vmatpush1.msra.mxu0 0.0
        %3106 = vmatprep.subr.mxu0 0.0
        %3107 = vmatpush1.msra.mxu0 0.0
        %3108 = vmatprep.subr.mxu0 0.0
        %3109 = vmatpush1.msra.mxu0 0.0
        %3110 = vmatprep.subr.mxu0 0.0
        %v3111 = vand.u32 %v3078, 4294901760
        %3112 = vmatpush1.msra.mxu0 %v3111
        %3113 = vmatprep.subr.mxu0 0.0
        %v3114 = vand.u32 %v3077, 4294901760
        %3115 = vmatpush1.msra.mxu0 %v3114
        %3116 = vmatprep.subr.mxu0 0.0
        %v3117 = vand.u32 %v3076, 4294901760
        %3118 = vmatpush1.msra.mxu0 %v3117
        %3119 = vmatprep.subr.mxu0 0.0
        %v3120 = vand.u32 %v3075, 4294901760
        %3121 = vmatpush1.msra.mxu0 %v3120
        %3122 = vmatprep.subr.mxu0 0.0
        %3123 = vmatpush2.msra.mxu0 0.0
        %3124 = vmatprep.subr.mxu0 0.0
        %3125 = vmatpush2.msra.mxu0 0.0
        %3126 = vmatprep.subr.mxu0 0.0
        %3127 = vmatpush2.msra.mxu0 0.0
        %3128 = vmatprep.subr.mxu0 0.0
        %3129 = vmatpush2.msra.mxu0 0.0
        %3130 = vmatprep.subr.mxu0 0.0
        %3131 = vmatpush2.msra.mxu0 0.0
        %3132 = vmatprep.subr.mxu0 0.0
        %3133 = vmatpush2.msra.mxu0 0.0
        %3134 = vmatprep.subr.mxu0 0.0
        %3135 = vmatpush2.msra.mxu0 0.0
        %3136 = vmatprep.subr.mxu0 0.0
        %3137 = vmatpush2.msra.mxu0 0.0
        %3138 = vmatprep.subr.mxu0 0.0
        %3139 = vmatpush2.msra.mxu0 0.0
        %3140 = vmatprep.subr.mxu0 0.0
        %3141 = vmatpush2.msra.mxu0 0.0
        %3142 = vmatprep.subr.mxu0 0.0
        %3143 = vmatpush2.msra.mxu0 0.0
        %3144 = vmatprep.subr.mxu0 0.0
        %3145 = vmatpush2.msra.mxu0 0.0
        %3146 = vmatprep.subr.mxu0 0.0
        %3147 = vmatpush2.msra.mxu0 0.0
        %3148 = vmatprep.subr.mxu0 0.0
        %3149 = vmatpush2.msra.mxu0 0.0
        %3150 = vmatprep.subr.mxu0 0.0
        %3151 = vmatpush2.msra.mxu0 0.0
        %3152 = vmatprep.subr.mxu0 0.0
        %3153 = vmatpush2.msra.mxu0 0.0
        %3154 = vmatprep.mubr.f32.mxu0 0.0
        %v3155 = vand.u32 %v3084, 4294901760
        %v3156 = vsub.f32 %v3084, %v3155
        %v3157 = vand.u32 %v3156, 4294901760
        %v3158 = vsub.f32 %v3156, %v3157
        %v3159 = vand.u32 %v3158, 4294901760
        %3160 = vmatmul.mubr.f32.gmra.mxu0 %v3159
        %v3161 = vpop.f32.mrf.mxu0
        %v3162 = vadd.f32 %v3082, %v3161
        %v3163 = vpop.f32.mrf.mxu0
        %3164 = vdwg.mxu0
        %3165 = vmatprep.subr.mxu0 0.0
        %3166 = vmatpush1.msra.mxu0 0.0
        %3167 = vmatprep.subr.mxu0 0.0
        %3168 = vmatpush1.msra.mxu0 0.0
        %3169 = vmatprep.subr.mxu0 0.0
        %3170 = vmatpush1.msra.mxu0 0.0
        %3171 = vmatprep.subr.mxu0 0.0
        %3172 = vmatpush1.msra.mxu0 0.0
        %3173 = vmatprep.subr.mxu0 0.0
        %3174 = vmatpush1.msra.mxu0 0.0
        %3175 = vmatprep.subr.mxu0 0.0
        %3176 = vmatpush1.msra.mxu0 0.0
        %3177 = vmatprep.subr.mxu0 0.0
        %3178 = vmatpush1.msra.mxu0 0.0
        %3179 = vmatprep.subr.mxu0 0.0
        %3180 = vmatpush1.msra.mxu0 0.0
        %3181 = vmatprep.subr.mxu0 0.0
        %3182 = vmatpush1.msra.mxu0 0.0
        %3183 = vmatprep.subr.mxu0 0.0
        %3184 = vmatpush1.msra.mxu0 0.0
        %3185 = vmatprep.subr.mxu0 0.0
        %3186 = vmatpush1.msra.mxu0 0.0
        %3187 = vmatprep.subr.mxu0 0.0
        %3188 = vmatpush1.msra.mxu0 0.0
        %3189 = vmatprep.subr.mxu0 0.0
        %v3190 = vand.u32 %v3078, 4294901760
        %v3191 = vsub.f32 %v3078, %v3190
        %v3192 = vand.u32 %v3191, 4294901760
        %v3193 = vsub.f32 %v3191, %v3192
        %v3194 = vand.u32 %v3193, 4294901760
        %3195 = vmatpush1.msra.mxu0 %v3194
        %3196 = vmatprep.subr.mxu0 0.0
        %v3197 = vand.u32 %v3077, 4294901760
        %v3198 = vsub.f32 %v3077, %v3197
        %v3199 = vand.u32 %v3198, 4294901760
        %v3200 = vsub.f32 %v3198, %v3199
        %v3201 = vand.u32 %v3200, 4294901760
        %3202 = vmatpush1.msra.mxu0 %v3201
        %3203 = vmatprep.subr.mxu0 0.0
        %v3204 = vand.u32 %v3076, 4294901760
        %v3205 = vsub.f32 %v3076, %v3204
        %v3206 = vand.u32 %v3205, 4294901760
        %v3207 = vsub.f32 %v3205, %v3206
        %v3208 = vand.u32 %v3207, 4294901760
        %3209 = vmatpush1.msra.mxu0 %v3208
        %3210 = vmatprep.subr.mxu0 0.0
        %v3211 = vand.u32 %v3075, 4294901760
        %v3212 = vsub.f32 %v3075, %v3211
        %v3213 = vand.u32 %v3212, 4294901760
        %v3214 = vsub.f32 %v3212, %v3213
        %v3215 = vand.u32 %v3214, 4294901760
        %3216 = vmatpush1.msra.mxu0 %v3215
        %3217 = vmatprep.subr.mxu0 0.0
        %3218 = vmatpush2.msra.mxu0 0.0
        %3219 = vmatprep.subr.mxu0 0.0
        %3220 = vmatpush2.msra.mxu0 0.0
        %3221 = vmatprep.subr.mxu0 0.0
        %3222 = vmatpush2.msra.mxu0 0.0
        %3223 = vmatprep.subr.mxu0 0.0
        %3224 = vmatpush2.msra.mxu0 0.0
        %3225 = vmatprep.subr.mxu0 0.0
        %3226 = vmatpush2.msra.mxu0 0.0
        %3227 = vmatprep.subr.mxu0 0.0
        %3228 = vmatpush2.msra.mxu0 0.0
        %3229 = vmatprep.subr.mxu0 0.0
        %3230 = vmatpush2.msra.mxu0 0.0
        %3231 = vmatprep.subr.mxu0 0.0
        %3232 = vmatpush2.msra.mxu0 0.0
        %3233 = vmatprep.subr.mxu0 0.0
        %3234 = vmatpush2.msra.mxu0 0.0
        %3235 = vmatprep.subr.mxu0 0.0
        %3236 = vmatpush2.msra.mxu0 0.0
        %3237 = vmatprep.subr.mxu0 0.0
        %3238 = vmatpush2.msra.mxu0 0.0
        %3239 = vmatprep.subr.mxu0 0.0
        %3240 = vmatpush2.msra.mxu0 0.0
        %3241 = vmatprep.subr.mxu0 0.0
        %3242 = vmatpush2.msra.mxu0 0.0
        %3243 = vmatprep.subr.mxu0 0.0
        %3244 = vmatpush2.msra.mxu0 0.0
        %3245 = vmatprep.subr.mxu0 0.0
        %3246 = vmatpush2.msra.mxu0 0.0
        %3247 = vmatprep.subr.mxu0 0.0
        %3248 = vmatpush2.msra.mxu0 0.0
        %3249 = vmatprep.mubr.f32.mxu0 0.0
        %v3250 = vand.u32 %v3084, 4294901760
        %3251 = vmatmul.mubr.f32.gmra.mxu0 %v3250
        %v3252 = vpop.f32.mrf.mxu0
        %v3253 = vadd.f32 %v3162, %v3252
        %v3254 = vpop.f32.mrf.mxu0
        %3255 = vdwg.mxu0
        %3256 = vmatprep.subr.mxu0 0.0
        %3257 = vmatpush1.msra.mxu0 0.0
        %3258 = vmatprep.subr.mxu0 0.0
        %3259 = vmatpush1.msra.mxu0 0.0
        %3260 = vmatprep.subr.mxu0 0.0
        %3261 = vmatpush1.msra.mxu0 0.0
        %3262 = vmatprep.subr.mxu0 0.0
        %3263 = vmatpush1.msra.mxu0 0.0
        %3264 = vmatprep.subr.mxu0 0.0
        %3265 = vmatpush1.msra.mxu0 0.0
        %3266 = vmatprep.subr.mxu0 0.0
        %3267 = vmatpush1.msra.mxu0 0.0
        %3268 = vmatprep.subr.mxu0 0.0
        %3269 = vmatpush1.msra.mxu0 0.0
        %3270 = vmatprep.subr.mxu0 0.0
        %3271 = vmatpush1.msra.mxu0 0.0
        %3272 = vmatprep.subr.mxu0 0.0
        %3273 = vmatpush1.msra.mxu0 0.0
        %3274 = vmatprep.subr.mxu0 0.0
        %3275 = vmatpush1.msra.mxu0 0.0
        %3276 = vmatprep.subr.mxu0 0.0
        %3277 = vmatpush1.msra.mxu0 0.0
        %3278 = vmatprep.subr.mxu0 0.0
        %3279 = vmatpush1.msra.mxu0 0.0
        %3280 = vmatprep.subr.mxu0 0.0
        %v3281 = vand.u32 %v3078, 4294901760
        %v3282 = vsub.f32 %v3078, %v3281
        %3283 = vmatpush1.msra.mxu0 %v3282
        %3284 = vmatprep.subr.mxu0 0.0
        %v3285 = vand.u32 %v3077, 4294901760
        %v3286 = vsub.f32 %v3077, %v3285
        %3287 = vmatpush1.msra.mxu0 %v3286
        %3288 = vmatprep.subr.mxu0 0.0
        %v3289 = vand.u32 %v3076, 4294901760
        %v3290 = vsub.f32 %v3076, %v3289
        %3291 = vmatpush1.msra.mxu0 %v3290
        %3292 = vmatprep.subr.mxu0 0.0
        %v3293 = vand.u32 %v3075, 4294901760
        %v3294 = vsub.f32 %v3075, %v3293
        %3295 = vmatpush1.msra.mxu0 %v3294
        %3296 = vmatprep.subr.mxu0 0.0
        %3297 = vmatpush2.msra.mxu0 0.0
        %3298 = vmatprep.subr.mxu0 0.0
        %3299 = vmatpush2.msra.mxu0 0.0
        %3300 = vmatprep.subr.mxu0 0.0
        %3301 = vmatpush2.msra.mxu0 0.0
        %3302 = vmatprep.subr.mxu0 0.0
        %3303 = vmatpush2.msra.mxu0 0.0
        %3304 = vmatprep.subr.mxu0 0.0
        %3305 = vmatpush2.msra.mxu0 0.0
        %3306 = vmatprep.subr.mxu0 0.0
        %3307 = vmatpush2.msra.mxu0 0.0
        %3308 = vmatprep.subr.mxu0 0.0
        %3309 = vmatpush2.msra.mxu0 0.0
        %3310 = vmatprep.subr.mxu0 0.0
        %3311 = vmatpush2.msra.mxu0 0.0
        %3312 = vmatprep.subr.mxu0 0.0
        %3313 = vmatpush2.msra.mxu0 0.0
        %3314 = vmatprep.subr.mxu0 0.0
        %3315 = vmatpush2.msra.mxu0 0.0
        %3316 = vmatprep.subr.mxu0 0.0
        %3317 = vmatpush2.msra.mxu0 0.0
        %3318 = vmatprep.subr.mxu0 0.0
        %3319 = vmatpush2.msra.mxu0 0.0
        %3320 = vmatprep.subr.mxu0 0.0
        %3321 = vmatpush2.msra.mxu0 0.0
        %3322 = vmatprep.subr.mxu0 0.0
        %3323 = vmatpush2.msra.mxu0 0.0
        %3324 = vmatprep.subr.mxu0 0.0
        %3325 = vmatpush2.msra.mxu0 0.0
        %3326 = vmatprep.subr.mxu0 0.0
        %3327 = vmatpush2.msra.mxu0 0.0
        %3328 = vmatprep.mubr.f32.mxu0 0.0
        %v3329 = vand.u32 %v3084, 4294901760
        %v3330 = vsub.f32 %v3084, %v3329
        %3331 = vmatmul.mubr.f32.gmra.mxu0 %v3330
        %v3332 = vpop.f32.mrf.mxu0
        %v3333 = vadd.f32 %v3253, %v3332
        %v3334 = vpop.f32.mrf.mxu0
        %3335 = vdwg.mxu0
        %3336 = vmatprep.subr.mxu0 0.0
        %3337 = vmatpush1.msra.mxu0 0.0
        %3338 = vmatprep.subr.mxu0 0.0
        %3339 = vmatpush1.msra.mxu0 0.0
        %3340 = vmatprep.subr.mxu0 0.0
        %3341 = vmatpush1.msra.mxu0 0.0
        %3342 = vmatprep.subr.mxu0 0.0
        %3343 = vmatpush1.msra.mxu0 0.0
        %3344 = vmatprep.subr.mxu0 0.0
        %3345 = vmatpush1.msra.mxu0 0.0
        %3346 = vmatprep.subr.mxu0 0.0
        %3347 = vmatpush1.msra.mxu0 0.0
        %3348 = vmatprep.subr.mxu0 0.0
        %3349 = vmatpush1.msra.mxu0 0.0
        %3350 = vmatprep.subr.mxu0 0.0
        %3351 = vmatpush1.msra.mxu0 0.0
        %3352 = vmatprep.subr.mxu0 0.0
        %3353 = vmatpush1.msra.mxu0 0.0
        %3354 = vmatprep.subr.mxu0 0.0
        %3355 = vmatpush1.msra.mxu0 0.0
        %3356 = vmatprep.subr.mxu0 0.0
        %3357 = vmatpush1.msra.mxu0 0.0
        %3358 = vmatprep.subr.mxu0 0.0
        %3359 = vmatpush1.msra.mxu0 0.0
        %3360 = vmatprep.subr.mxu0 0.0
        %v3361 = vand.u32 %v3078, 4294901760
        %3362 = vmatpush1.msra.mxu0 %v3361
        %3363 = vmatprep.subr.mxu0 0.0
        %v3364 = vand.u32 %v3077, 4294901760
        %3365 = vmatpush1.msra.mxu0 %v3364
        %3366 = vmatprep.subr.mxu0 0.0
        %v3367 = vand.u32 %v3076, 4294901760
        %3368 = vmatpush1.msra.mxu0 %v3367
        %3369 = vmatprep.subr.mxu0 0.0
        %v3370 = vand.u32 %v3075, 4294901760
        %3371 = vmatpush1.msra.mxu0 %v3370
        %3372 = vmatprep.subr.mxu0 0.0
        %3373 = vmatpush2.msra.mxu0 0.0
        %3374 = vmatprep.subr.mxu0 0.0
        %3375 = vmatpush2.msra.mxu0 0.0
        %3376 = vmatprep.subr.mxu0 0.0
        %3377 = vmatpush2.msra.mxu0 0.0
        %3378 = vmatprep.subr.mxu0 0.0
        %3379 = vmatpush2.msra.mxu0 0.0
        %3380 = vmatprep.subr.mxu0 0.0
        %3381 = vmatpush2.msra.mxu0 0.0
        %3382 = vmatprep.subr.mxu0 0.0
        %3383 = vmatpush2.msra.mxu0 0.0
        %3384 = vmatprep.subr.mxu0 0.0
        %3385 = vmatpush2.msra.mxu0 0.0
        %3386 = vmatprep.subr.mxu0 0.0
        %3387 = vmatpush2.msra.mxu0 0.0
        %3388 = vmatprep.subr.mxu0 0.0
        %3389 = vmatpush2.msra.mxu0 0.0
        %3390 = vmatprep.subr.mxu0 0.0
        %3391 = vmatpush2.msra.mxu0 0.0
        %3392 = vmatprep.subr.mxu0 0.0
        %3393 = vmatpush2.msra.mxu0 0.0
        %3394 = vmatprep.subr.mxu0 0.0
        %3395 = vmatpush2.msra.mxu0 0.0
        %3396 = vmatprep.subr.mxu0 0.0
        %3397 = vmatpush2.msra.mxu0 0.0
        %3398 = vmatprep.subr.mxu0 0.0
        %3399 = vmatpush2.msra.mxu0 0.0
        %3400 = vmatprep.subr.mxu0 0.0
        %3401 = vmatpush2.msra.mxu0 0.0
        %3402 = vmatprep.subr.mxu0 0.0
        %3403 = vmatpush2.msra.mxu0 0.0
        %3404 = vmatprep.mubr.f32.mxu0 0.0
        %v3405 = vand.u32 %v3084, 4294901760
        %v3406 = vsub.f32 %v3084, %v3405
        %v3407 = vand.u32 %v3406, 4294901760
        %3408 = vmatmul.mubr.f32.gmra.mxu0 %v3407
        %v3409 = vpop.f32.mrf.mxu0
        %v3410 = vadd.f32 %v3333, %v3409
        %v3411 = vpop.f32.mrf.mxu0
        %3412 = vdwg.mxu0
        %3413 = vmatprep.subr.mxu0 0.0
        %3414 = vmatpush1.msra.mxu0 0.0
        %3415 = vmatprep.subr.mxu0 0.0
        %3416 = vmatpush1.msra.mxu0 0.0
        %3417 = vmatprep.subr.mxu0 0.0
        %3418 = vmatpush1.msra.mxu0 0.0
        %3419 = vmatprep.subr.mxu0 0.0
        %3420 = vmatpush1.msra.mxu0 0.0
        %3421 = vmatprep.subr.mxu0 0.0
        %3422 = vmatpush1.msra.mxu0 0.0
        %3423 = vmatprep.subr.mxu0 0.0
        %3424 = vmatpush1.msra.mxu0 0.0
        %3425 = vmatprep.subr.mxu0 0.0
        %3426 = vmatpush1.msra.mxu0 0.0
        %3427 = vmatprep.subr.mxu0 0.0
        %3428 = vmatpush1.msra.mxu0 0.0
        %3429 = vmatprep.subr.mxu0 0.0
        %3430 = vmatpush1.msra.mxu0 0.0
        %3431 = vmatprep.subr.mxu0 0.0
        %3432 = vmatpush1.msra.mxu0 0.0
        %3433 = vmatprep.subr.mxu0 0.0
        %3434 = vmatpush1.msra.mxu0 0.0
        %3435 = vmatprep.subr.mxu0 0.0
        %3436 = vmatpush1.msra.mxu0 0.0
        %3437 = vmatprep.subr.mxu0 0.0
        %v3438 = vand.u32 %v3078, 4294901760
        %v3439 = vsub.f32 %v3078, %v3438
        %v3440 = vand.u32 %v3439, 4294901760
        %3441 = vmatpush1.msra.mxu0 %v3440
        %3442 = vmatprep.subr.mxu0 0.0
        %v3443 = vand.u32 %v3077, 4294901760
        %v3444 = vsub.f32 %v3077, %v3443
        %v3445 = vand.u32 %v3444, 4294901760
        %3446 = vmatpush1.msra.mxu0 %v3445
        %3447 = vmatprep.subr.mxu0 0.0
        %v3448 = vand.u32 %v3076, 4294901760
        %v3449 = vsub.f32 %v3076, %v3448
        %v3450 = vand.u32 %v3449, 4294901760
        %3451 = vmatpush1.msra.mxu0 %v3450
        %3452 = vmatprep.subr.mxu0 0.0
        %v3453 = vand.u32 %v3075, 4294901760
        %v3454 = vsub.f32 %v3075, %v3453
        %v3455 = vand.u32 %v3454, 4294901760
        %3456 = vmatpush1.msra.mxu0 %v3455
        %3457 = vmatprep.subr.mxu0 0.0
        %3458 = vmatpush2.msra.mxu0 0.0
        %3459 = vmatprep.subr.mxu0 0.0
        %3460 = vmatpush2.msra.mxu0 0.0
        %3461 = vmatprep.subr.mxu0 0.0
        %3462 = vmatpush2.msra.mxu0 0.0
        %3463 = vmatprep.subr.mxu0 0.0
        %3464 = vmatpush2.msra.mxu0 0.0
        %3465 = vmatprep.subr.mxu0 0.0
        %3466 = vmatpush2.msra.mxu0 0.0
        %3467 = vmatprep.subr.mxu0 0.0
        %3468 = vmatpush2.msra.mxu0 0.0
        %3469 = vmatprep.subr.mxu0 0.0
        %3470 = vmatpush2.msra.mxu0 0.0
        %3471 = vmatprep.subr.mxu0 0.0
        %3472 = vmatpush2.msra.mxu0 0.0
        %3473 = vmatprep.subr.mxu0 0.0
        %3474 = vmatpush2.msra.mxu0 0.0
        %3475 = vmatprep.subr.mxu0 0.0
        %3476 = vmatpush2.msra.mxu0 0.0
        %3477 = vmatprep.subr.mxu0 0.0
        %3478 = vmatpush2.msra.mxu0 0.0
        %3479 = vmatprep.subr.mxu0 0.0
        %3480 = vmatpush2.msra.mxu0 0.0
        %3481 = vmatprep.subr.mxu0 0.0
        %3482 = vmatpush2.msra.mxu0 0.0
        %3483 = vmatprep.subr.mxu0 0.0
        %3484 = vmatpush2.msra.mxu0 0.0
        %3485 = vmatprep.subr.mxu0 0.0
        %3486 = vmatpush2.msra.mxu0 0.0
        %3487 = vmatprep.subr.mxu0 0.0
        %3488 = vmatpush2.msra.mxu0 0.0
        %3489 = vmatprep.mubr.f32.mxu0 0.0
        %v3490 = vand.u32 %v3084, 4294901760
        %3491 = vmatmul.mubr.f32.gmra.mxu0 %v3490
        %v3492 = vpop.f32.mrf.mxu0
        %v3493 = vadd.f32 %v3410, %v3492
        %v3494 = vpop.f32.mrf.mxu0
        %3495 = vdwg.mxu0
        %3496 = vmatprep.subr.mxu0 0.0
        %3497 = vmatpush1.msra.mxu0 0.0
        %3498 = vmatprep.subr.mxu0 0.0
        %3499 = vmatpush1.msra.mxu0 0.0
        %3500 = vmatprep.subr.mxu0 0.0
        %3501 = vmatpush1.msra.mxu0 0.0
        %3502 = vmatprep.subr.mxu0 0.0
        %3503 = vmatpush1.msra.mxu0 0.0
        %3504 = vmatprep.subr.mxu0 0.0
        %3505 = vmatpush1.msra.mxu0 0.0
        %3506 = vmatprep.subr.mxu0 0.0
        %3507 = vmatpush1.msra.mxu0 0.0
        %3508 = vmatprep.subr.mxu0 0.0
        %3509 = vmatpush1.msra.mxu0 0.0
        %3510 = vmatprep.subr.mxu0 0.0
        %3511 = vmatpush1.msra.mxu0 0.0
        %3512 = vmatprep.subr.mxu0 0.0
        %3513 = vmatpush1.msra.mxu0 0.0
        %3514 = vmatprep.subr.mxu0 0.0
        %3515 = vmatpush1.msra.mxu0 0.0
        %3516 = vmatprep.subr.mxu0 0.0
        %3517 = vmatpush1.msra.mxu0 0.0
        %3518 = vmatprep.subr.mxu0 0.0
        %3519 = vmatpush1.msra.mxu0 0.0
        %3520 = vmatprep.subr.mxu0 0.0
        %v3521 = vand.u32 %v3078, 4294901760
        %3522 = vmatpush1.msra.mxu0 %v3521
        %3523 = vmatprep.subr.mxu0 0.0
        %v3524 = vand.u32 %v3077, 4294901760
        %3525 = vmatpush1.msra.mxu0 %v3524
        %3526 = vmatprep.subr.mxu0 0.0
        %v3527 = vand.u32 %v3076, 4294901760
        %3528 = vmatpush1.msra.mxu0 %v3527
        %3529 = vmatprep.subr.mxu0 0.0
        %v3530 = vand.u32 %v3075, 4294901760
        %3531 = vmatpush1.msra.mxu0 %v3530
        %3532 = vmatprep.subr.mxu0 0.0
        %3533 = vmatpush2.msra.mxu0 0.0
        %3534 = vmatprep.subr.mxu0 0.0
        %3535 = vmatpush2.msra.mxu0 0.0
        %3536 = vmatprep.subr.mxu0 0.0
        %3537 = vmatpush2.msra.mxu0 0.0
        %3538 = vmatprep.subr.mxu0 0.0
        %3539 = vmatpush2.msra.mxu0 0.0
        %3540 = vmatprep.subr.mxu0 0.0
        %3541 = vmatpush2.msra.mxu0 0.0
        %3542 = vmatprep.subr.mxu0 0.0
        %3543 = vmatpush2.msra.mxu0 0.0
        %3544 = vmatprep.subr.mxu0 0.0
        %3545 = vmatpush2.msra.mxu0 0.0
        %3546 = vmatprep.subr.mxu0 0.0
        %3547 = vmatpush2.msra.mxu0 0.0
        %3548 = vmatprep.subr.mxu0 0.0
        %3549 = vmatpush2.msra.mxu0 0.0
        %3550 = vmatprep.subr.mxu0 0.0
        %3551 = vmatpush2.msra.mxu0 0.0
        %3552 = vmatprep.subr.mxu0 0.0
        %3553 = vmatpush2.msra.mxu0 0.0
        %3554 = vmatprep.subr.mxu0 0.0
        %3555 = vmatpush2.msra.mxu0 0.0
        %3556 = vmatprep.subr.mxu0 0.0
        %3557 = vmatpush2.msra.mxu0 0.0
        %3558 = vmatprep.subr.mxu0 0.0
        %3559 = vmatpush2.msra.mxu0 0.0
        %3560 = vmatprep.subr.mxu0 0.0
        %3561 = vmatpush2.msra.mxu0 0.0
        %3562 = vmatprep.subr.mxu0 0.0
        %3563 = vmatpush2.msra.mxu0 0.0
        %3564 = vmatprep.mubr.f32.mxu0 0.0
        %v3565 = vand.u32 %v3084, 4294901760
        %3566 = vmatmul.mubr.f32.gmra.mxu0 %v3565
        %v3567 = vpop.f32.mrf.mxu0
        %v3568 = vadd.f32 %v3493, %v3567
        %v3569 = vpop.f32.mrf.mxu0
        %3570 = vdwg.mxu0
        %v3571 = vadd.f32 %v1022, %v3568
        %v3572 = vsel %vm1034, %v3571, 0.0
        %3573 = vadd.xlane.f32.xlu0 %v3572
        %v3574 = vpop.xlane.xlu0 %3573
        %v3575 = vrcp.pop 32.0
        %v3576 = vmul.f32 %v3574, %v3575
        %v3577 = vsub.f32 %v3571, %v3576
        %v3578 = vmul.f32 %v3577, %v3577
        %v3579 = vsel %vm1034, %v3578, 0.0
        %3580 = vadd.xlane.f32.xlu0 %v3579
        %v3581 = vpop.xlane.xlu0 %3580
        %v3582 = vmul.f32 %v3581, %v3575
        %v3583 = vadd.f32 %v3582, 1e-05
        %v3584 = vrsqrt.pop %v3583
        %v3585 = vmul.f32 %v3577, %v3584
        %v3586 = vlaneseq
        %v3587 = vshrl.u32 %v3586, 7
        %v3588 = vsub.s32 2, %v3587
        %v3589 = vrot.slane %v551, %v3588
        %v3590 = vmul.f32 %v3585, %v3589
        %v3591 = vlaneseq
        %v3592 = vshrl.u32 %v3591, 7
        %v3593 = vsub.s32 3, %v3592
        %v3594 = vrot.slane %v551, %v3593
        %v3595 = vadd.f32 %v3590, %v3594
        %v3596 = vld [vmem:[%s8] sm:$0xff]
        %v3597 = vld [vmem:[%s8 + $0x8] sm:$0xff]
        %v3598 = vld [vmem:[%s8 + $0x10] sm:$0xff]
        %v3599 = vld [vmem:[%s8 + $0x18] sm:$0xff]
        %v3600 = vld [vmem:[%s9] sm:$0x1]
        %v3602 = vlaneseq
        %v3603 = vshrl.u32 %v3602, 7
        %v3604 = vsub.s32 0, %v3603
        %v3605 = vrot.slane %v3600, %v3604
        %v3608 = vsel %vm1034, %v3595, 0
        %3610 = vmatprep.subr.mxu0 0.0
        %3611 = vmatpush1.msra.mxu0 0.0
        %3612 = vmatprep.subr.mxu0 0.0
        %3613 = vmatpush1.msra.mxu0 0.0
        %3614 = vmatprep.subr.mxu0 0.0
        %3615 = vmatpush1.msra.mxu0 0.0
        %3616 = vmatprep.subr.mxu0 0.0
        %3617 = vmatpush1.msra.mxu0 0.0
        %3618 = vmatprep.subr.mxu0 0.0
        %3619 = vmatpush1.msra.mxu0 0.0
        %3620 = vmatprep.subr.mxu0 0.0
        %3621 = vmatpush1.msra.mxu0 0.0
        %3622 = vmatprep.subr.mxu0 0.0
        %3623 = vmatpush1.msra.mxu0 0.0
        %3624 = vmatprep.subr.mxu0 0.0
        %3625 = vmatpush1.msra.mxu0 0.0
        %3626 = vmatprep.subr.mxu0 0.0
        %3627 = vmatpush1.msra.mxu0 0.0
        %3628 = vmatprep.subr.mxu0 0.0
        %3629 = vmatpush1.msra.mxu0 0.0
        %3630 = vmatprep.subr.mxu0 0.0
        %3631 = vmatpush1.msra.mxu0 0.0
        %3632 = vmatprep.subr.mxu0 0.0
        %3633 = vmatpush1.msra.mxu0 0.0
        %3634 = vmatprep.subr.mxu0 0.0
        %v3635 = vand.u32 %v3599, 4294901760
        %3636 = vmatpush1.msra.mxu0 %v3635
        %3637 = vmatprep.subr.mxu0 0.0
        %v3638 = vand.u32 %v3598, 4294901760
        %3639 = vmatpush1.msra.mxu0 %v3638
        %3640 = vmatprep.subr.mxu0 0.0
        %v3641 = vand.u32 %v3597, 4294901760
        %3642 = vmatpush1.msra.mxu0 %v3641
        %3643 = vmatprep.subr.mxu0 0.0
        %v3644 = vand.u32 %v3596, 4294901760
        %3645 = vmatpush1.msra.mxu0 %v3644
        %3646 = vmatprep.subr.mxu0 0.0
        %3647 = vmatpush2.msra.mxu0 0.0
        %3648 = vmatprep.subr.mxu0 0.0
        %3649 = vmatpush2.msra.mxu0 0.0
        %3650 = vmatprep.subr.mxu0 0.0
        %3651 = vmatpush2.msra.mxu0 0.0
        %3652 = vmatprep.subr.mxu0 0.0
        %3653 = vmatpush2.msra.mxu0 0.0
        %3654 = vmatprep.subr.mxu0 0.0
        %3655 = vmatpush2.msra.mxu0 0.0
        %3656 = vmatprep.subr.mxu0 0.0
        %3657 = vmatpush2.msra.mxu0 0.0
        %3658 = vmatprep.subr.mxu0 0.0
        %3659 = vmatpush2.msra.mxu0 0.0
        %3660 = vmatprep.subr.mxu0 0.0
        %3661 = vmatpush2.msra.mxu0 0.0
        %3662 = vmatprep.subr.mxu0 0.0
        %3663 = vmatpush2.msra.mxu0 0.0
        %3664 = vmatprep.subr.mxu0 0.0
        %3665 = vmatpush2.msra.mxu0 0.0
        %3666 = vmatprep.subr.mxu0 0.0
        %3667 = vmatpush2.msra.mxu0 0.0
        %3668 = vmatprep.subr.mxu0 0.0
        %3669 = vmatpush2.msra.mxu0 0.0
        %3670 = vmatprep.subr.mxu0 0.0
        %3671 = vmatpush2.msra.mxu0 0.0
        %3672 = vmatprep.subr.mxu0 0.0
        %3673 = vmatpush2.msra.mxu0 0.0
        %3674 = vmatprep.subr.mxu0 0.0
        %3675 = vmatpush2.msra.mxu0 0.0
        %3676 = vmatprep.subr.mxu0 0.0
        %3677 = vmatpush2.msra.mxu0 0.0
        %3678 = vmatprep.mubr.f32.mxu0 0.0
        %v3679 = vand.u32 %v3608, 4294901760
        %v3680 = vsub.f32 %v3608, %v3679
        %v3681 = vand.u32 %v3680, 4294901760
        %v3682 = vsub.f32 %v3680, %v3681
        %v3683 = vand.u32 %v3682, 4294901760
        %3684 = vmatmul.mubr.f32.gmra.mxu0 %v3683
        %v3685 = vpop.f32.mrf.mxu0
        %v3686 = vadd.f32 %v3605, %v3685
        %v3687 = vpop.f32.mrf.mxu0
        %3688 = vdwg.mxu0
        %3689 = vmatprep.subr.mxu0 0.0
        %3690 = vmatpush1.msra.mxu0 0.0
        %3691 = vmatprep.subr.mxu0 0.0
        %3692 = vmatpush1.msra.mxu0 0.0
        %3693 = vmatprep.subr.mxu0 0.0
        %3694 = vmatpush1.msra.mxu0 0.0
        %3695 = vmatprep.subr.mxu0 0.0
        %3696 = vmatpush1.msra.mxu0 0.0
        %3697 = vmatprep.subr.mxu0 0.0
        %3698 = vmatpush1.msra.mxu0 0.0
        %3699 = vmatprep.subr.mxu0 0.0
        %3700 = vmatpush1.msra.mxu0 0.0
        %3701 = vmatprep.subr.mxu0 0.0
        %3702 = vmatpush1.msra.mxu0 0.0
        %3703 = vmatprep.subr.mxu0 0.0
        %3704 = vmatpush1.msra.mxu0 0.0
        %3705 = vmatprep.subr.mxu0 0.0
        %3706 = vmatpush1.msra.mxu0 0.0
        %3707 = vmatprep.subr.mxu0 0.0
        %3708 = vmatpush1.msra.mxu0 0.0
        %3709 = vmatprep.subr.mxu0 0.0
        %3710 = vmatpush1.msra.mxu0 0.0
        %3711 = vmatprep.subr.mxu0 0.0
        %3712 = vmatpush1.msra.mxu0 0.0
        %3713 = vmatprep.subr.mxu0 0.0
        %v3714 = vand.u32 %v3599, 4294901760
        %v3715 = vsub.f32 %v3599, %v3714
        %v3716 = vand.u32 %v3715, 4294901760
        %v3717 = vsub.f32 %v3715, %v3716
        %v3718 = vand.u32 %v3717, 4294901760
        %3719 = vmatpush1.msra.mxu0 %v3718
        %3720 = vmatprep.subr.mxu0 0.0
        %v3721 = vand.u32 %v3598, 4294901760
        %v3722 = vsub.f32 %v3598, %v3721
        %v3723 = vand.u32 %v3722, 4294901760
        %v3724 = vsub.f32 %v3722, %v3723
        %v3725 = vand.u32 %v3724, 4294901760
        %3726 = vmatpush1.msra.mxu0 %v3725
        %3727 = vmatprep.subr.mxu0 0.0
        %v3728 = vand.u32 %v3597, 4294901760
        %v3729 = vsub.f32 %v3597, %v3728
        %v3730 = vand.u32 %v3729, 4294901760
        %v3731 = vsub.f32 %v3729, %v3730
        %v3732 = vand.u32 %v3731, 4294901760
        %3733 = vmatpush1.msra.mxu0 %v3732
        %3734 = vmatprep.subr.mxu0 0.0
        %v3735 = vand.u32 %v3596, 4294901760
        %v3736 = vsub.f32 %v3596, %v3735
        %v3737 = vand.u32 %v3736, 4294901760
        %v3738 = vsub.f32 %v3736, %v3737
        %v3739 = vand.u32 %v3738, 4294901760
        %3740 = vmatpush1.msra.mxu0 %v3739
        %3741 = vmatprep.subr.mxu0 0.0
        %3742 = vmatpush2.msra.mxu0 0.0
        %3743 = vmatprep.subr.mxu0 0.0
        %3744 = vmatpush2.msra.mxu0 0.0
        %3745 = vmatprep.subr.mxu0 0.0
        %3746 = vmatpush2.msra.mxu0 0.0
        %3747 = vmatprep.subr.mxu0 0.0
        %3748 = vmatpush2.msra.mxu0 0.0
        %3749 = vmatprep.subr.mxu0 0.0
        %3750 = vmatpush2.msra.mxu0 0.0
        %3751 = vmatprep.subr.mxu0 0.0
        %3752 = vmatpush2.msra.mxu0 0.0
        %3753 = vmatprep.subr.mxu0 0.0
        %3754 = vmatpush2.msra.mxu0 0.0
        %3755 = vmatprep.subr.mxu0 0.0
        %3756 = vmatpush2.msra.mxu0 0.0
        %3757 = vmatprep.subr.mxu0 0.0
        %3758 = vmatpush2.msra.mxu0 0.0
        %3759 = vmatprep.subr.mxu0 0.0
        %3760 = vmatpush2.msra.mxu0 0.0
        %3761 = vmatprep.subr.mxu0 0.0
        %3762 = vmatpush2.msra.mxu0 0.0
        %3763 = vmatprep.subr.mxu0 0.0
        %3764 = vmatpush2.msra.mxu0 0.0
        %3765 = vmatprep.subr.mxu0 0.0
        %3766 = vmatpush2.msra.mxu0 0.0
        %3767 = vmatprep.subr.mxu0 0.0
        %3768 = vmatpush2.msra.mxu0 0.0
        %3769 = vmatprep.subr.mxu0 0.0
        %3770 = vmatpush2.msra.mxu0 0.0
        %3771 = vmatprep.subr.mxu0 0.0
        %3772 = vmatpush2.msra.mxu0 0.0
        %3773 = vmatprep.mubr.f32.mxu0 0.0
        %v3774 = vand.u32 %v3608, 4294901760
        %3775 = vmatmul.mubr.f32.gmra.mxu0 %v3774
        %v3776 = vpop.f32.mrf.mxu0
        %v3777 = vadd.f32 %v3686, %v3776
        %v3778 = vpop.f32.mrf.mxu0
        %3779 = vdwg.mxu0
        %3780 = vmatprep.subr.mxu0 0.0
        %3781 = vmatpush1.msra.mxu0 0.0
        %3782 = vmatprep.subr.mxu0 0.0
        %3783 = vmatpush1.msra.mxu0 0.0
        %3784 = vmatprep.subr.mxu0 0.0
        %3785 = vmatpush1.msra.mxu0 0.0
        %3786 = vmatprep.subr.mxu0 0.0
        %3787 = vmatpush1.msra.mxu0 0.0
        %3788 = vmatprep.subr.mxu0 0.0
        %3789 = vmatpush1.msra.mxu0 0.0
        %3790 = vmatprep.subr.mxu0 0.0
        %3791 = vmatpush1.msra.mxu0 0.0
        %3792 = vmatprep.subr.mxu0 0.0
        %3793 = vmatpush1.msra.mxu0 0.0
        %3794 = vmatprep.subr.mxu0 0.0
        %3795 = vmatpush1.msra.mxu0 0.0
        %3796 = vmatprep.subr.mxu0 0.0
        %3797 = vmatpush1.msra.mxu0 0.0
        %3798 = vmatprep.subr.mxu0 0.0
        %3799 = vmatpush1.msra.mxu0 0.0
        %3800 = vmatprep.subr.mxu0 0.0
        %3801 = vmatpush1.msra.mxu0 0.0
        %3802 = vmatprep.subr.mxu0 0.0
        %3803 = vmatpush1.msra.mxu0 0.0
        %3804 = vmatprep.subr.mxu0 0.0
        %v3805 = vand.u32 %v3599, 4294901760
        %v3806 = vsub.f32 %v3599, %v3805
        %3807 = vmatpush1.msra.mxu0 %v3806
        %3808 = vmatprep.subr.mxu0 0.0
        %v3809 = vand.u32 %v3598, 4294901760
        %v3810 = vsub.f32 %v3598, %v3809
        %3811 = vmatpush1.msra.mxu0 %v3810
        %3812 = vmatprep.subr.mxu0 0.0
        %v3813 = vand.u32 %v3597, 4294901760
        %v3814 = vsub.f32 %v3597, %v3813
        %3815 = vmatpush1.msra.mxu0 %v3814
        %3816 = vmatprep.subr.mxu0 0.0
        %v3817 = vand.u32 %v3596, 4294901760
        %v3818 = vsub.f32 %v3596, %v3817
        %3819 = vmatpush1.msra.mxu0 %v3818
        %3820 = vmatprep.subr.mxu0 0.0
        %3821 = vmatpush2.msra.mxu0 0.0
        %3822 = vmatprep.subr.mxu0 0.0
        %3823 = vmatpush2.msra.mxu0 0.0
        %3824 = vmatprep.subr.mxu0 0.0
        %3825 = vmatpush2.msra.mxu0 0.0
        %3826 = vmatprep.subr.mxu0 0.0
        %3827 = vmatpush2.msra.mxu0 0.0
        %3828 = vmatprep.subr.mxu0 0.0
        %3829 = vmatpush2.msra.mxu0 0.0
        %3830 = vmatprep.subr.mxu0 0.0
        %3831 = vmatpush2.msra.mxu0 0.0
        %3832 = vmatprep.subr.mxu0 0.0
        %3833 = vmatpush2.msra.mxu0 0.0
        %3834 = vmatprep.subr.mxu0 0.0
        %3835 = vmatpush2.msra.mxu0 0.0
        %3836 = vmatprep.subr.mxu0 0.0
        %3837 = vmatpush2.msra.mxu0 0.0
        %3838 = vmatprep.subr.mxu0 0.0
        %3839 = vmatpush2.msra.mxu0 0.0
        %3840 = vmatprep.subr.mxu0 0.0
        %3841 = vmatpush2.msra.mxu0 0.0
        %3842 = vmatprep.subr.mxu0 0.0
        %3843 = vmatpush2.msra.mxu0 0.0
        %3844 = vmatprep.subr.mxu0 0.0
        %3845 = vmatpush2.msra.mxu0 0.0
        %3846 = vmatprep.subr.mxu0 0.0
        %3847 = vmatpush2.msra.mxu0 0.0
        %3848 = vmatprep.subr.mxu0 0.0
        %3849 = vmatpush2.msra.mxu0 0.0
        %3850 = vmatprep.subr.mxu0 0.0
        %3851 = vmatpush2.msra.mxu0 0.0
        %3852 = vmatprep.mubr.f32.mxu0 0.0
        %v3853 = vand.u32 %v3608, 4294901760
        %v3854 = vsub.f32 %v3608, %v3853
        %3855 = vmatmul.mubr.f32.gmra.mxu0 %v3854
        %v3856 = vpop.f32.mrf.mxu0
        %v3857 = vadd.f32 %v3777, %v3856
        %v3858 = vpop.f32.mrf.mxu0
        %3859 = vdwg.mxu0
        %3860 = vmatprep.subr.mxu0 0.0
        %3861 = vmatpush1.msra.mxu0 0.0
        %3862 = vmatprep.subr.mxu0 0.0
        %3863 = vmatpush1.msra.mxu0 0.0
        %3864 = vmatprep.subr.mxu0 0.0
        %3865 = vmatpush1.msra.mxu0 0.0
        %3866 = vmatprep.subr.mxu0 0.0
        %3867 = vmatpush1.msra.mxu0 0.0
        %3868 = vmatprep.subr.mxu0 0.0
        %3869 = vmatpush1.msra.mxu0 0.0
        %3870 = vmatprep.subr.mxu0 0.0
        %3871 = vmatpush1.msra.mxu0 0.0
        %3872 = vmatprep.subr.mxu0 0.0
        %3873 = vmatpush1.msra.mxu0 0.0
        %3874 = vmatprep.subr.mxu0 0.0
        %3875 = vmatpush1.msra.mxu0 0.0
        %3876 = vmatprep.subr.mxu0 0.0
        %3877 = vmatpush1.msra.mxu0 0.0
        %3878 = vmatprep.subr.mxu0 0.0
        %3879 = vmatpush1.msra.mxu0 0.0
        %3880 = vmatprep.subr.mxu0 0.0
        %3881 = vmatpush1.msra.mxu0 0.0
        %3882 = vmatprep.subr.mxu0 0.0
        %3883 = vmatpush1.msra.mxu0 0.0
        %3884 = vmatprep.subr.mxu0 0.0
        %v3885 = vand.u32 %v3599, 4294901760
        %3886 = vmatpush1.msra.mxu0 %v3885
        %3887 = vmatprep.subr.mxu0 0.0
        %v3888 = vand.u32 %v3598, 4294901760
        %3889 = vmatpush1.msra.mxu0 %v3888
        %3890 = vmatprep.subr.mxu0 0.0
        %v3891 = vand.u32 %v3597, 4294901760
        %3892 = vmatpush1.msra.mxu0 %v3891
        %3893 = vmatprep.subr.mxu0 0.0
        %v3894 = vand.u32 %v3596, 4294901760
        %3895 = vmatpush1.msra.mxu0 %v3894
        %3896 = vmatprep.subr.mxu0 0.0
        %3897 = vmatpush2.msra.mxu0 0.0
        %3898 = vmatprep.subr.mxu0 0.0
        %3899 = vmatpush2.msra.mxu0 0.0
        %3900 = vmatprep.subr.mxu0 0.0
        %3901 = vmatpush2.msra.mxu0 0.0
        %3902 = vmatprep.subr.mxu0 0.0
        %3903 = vmatpush2.msra.mxu0 0.0
        %3904 = vmatprep.subr.mxu0 0.0
        %3905 = vmatpush2.msra.mxu0 0.0
        %3906 = vmatprep.subr.mxu0 0.0
        %3907 = vmatpush2.msra.mxu0 0.0
        %3908 = vmatprep.subr.mxu0 0.0
        %3909 = vmatpush2.msra.mxu0 0.0
        %3910 = vmatprep.subr.mxu0 0.0
        %3911 = vmatpush2.msra.mxu0 0.0
        %3912 = vmatprep.subr.mxu0 0.0
        %3913 = vmatpush2.msra.mxu0 0.0
        %3914 = vmatprep.subr.mxu0 0.0
        %3915 = vmatpush2.msra.mxu0 0.0
        %3916 = vmatprep.subr.mxu0 0.0
        %3917 = vmatpush2.msra.mxu0 0.0
        %3918 = vmatprep.subr.mxu0 0.0
        %3919 = vmatpush2.msra.mxu0 0.0
        %3920 = vmatprep.subr.mxu0 0.0
        %3921 = vmatpush2.msra.mxu0 0.0
        %3922 = vmatprep.subr.mxu0 0.0
        %3923 = vmatpush2.msra.mxu0 0.0
        %3924 = vmatprep.subr.mxu0 0.0
        %3925 = vmatpush2.msra.mxu0 0.0
        %3926 = vmatprep.subr.mxu0 0.0
        %3927 = vmatpush2.msra.mxu0 0.0
        %3928 = vmatprep.mubr.f32.mxu0 0.0
        %v3929 = vand.u32 %v3608, 4294901760
        %v3930 = vsub.f32 %v3608, %v3929
        %v3931 = vand.u32 %v3930, 4294901760
        %3932 = vmatmul.mubr.f32.gmra.mxu0 %v3931
        %v3933 = vpop.f32.mrf.mxu0
        %v3934 = vadd.f32 %v3857, %v3933
        %v3935 = vpop.f32.mrf.mxu0
        %3936 = vdwg.mxu0
        %3937 = vmatprep.subr.mxu0 0.0
        %3938 = vmatpush1.msra.mxu0 0.0
        %3939 = vmatprep.subr.mxu0 0.0
        %3940 = vmatpush1.msra.mxu0 0.0
        %3941 = vmatprep.subr.mxu0 0.0
        %3942 = vmatpush1.msra.mxu0 0.0
        %3943 = vmatprep.subr.mxu0 0.0
        %3944 = vmatpush1.msra.mxu0 0.0
        %3945 = vmatprep.subr.mxu0 0.0
        %3946 = vmatpush1.msra.mxu0 0.0
        %3947 = vmatprep.subr.mxu0 0.0
        %3948 = vmatpush1.msra.mxu0 0.0
        %3949 = vmatprep.subr.mxu0 0.0
        %3950 = vmatpush1.msra.mxu0 0.0
        %3951 = vmatprep.subr.mxu0 0.0
        %3952 = vmatpush1.msra.mxu0 0.0
        %3953 = vmatprep.subr.mxu0 0.0
        %3954 = vmatpush1.msra.mxu0 0.0
        %3955 = vmatprep.subr.mxu0 0.0
        %3956 = vmatpush1.msra.mxu0 0.0
        %3957 = vmatprep.subr.mxu0 0.0
        %3958 = vmatpush1.msra.mxu0 0.0
        %3959 = vmatprep.subr.mxu0 0.0
        %3960 = vmatpush1.msra.mxu0 0.0
        %3961 = vmatprep.subr.mxu0 0.0
        %v3962 = vand.u32 %v3599, 4294901760
        %v3963 = vsub.f32 %v3599, %v3962
        %v3964 = vand.u32 %v3963, 4294901760
        %3965 = vmatpush1.msra.mxu0 %v3964
        %3966 = vmatprep.subr.mxu0 0.0
        %v3967 = vand.u32 %v3598, 4294901760
        %v3968 = vsub.f32 %v3598, %v3967
        %v3969 = vand.u32 %v3968, 4294901760
        %3970 = vmatpush1.msra.mxu0 %v3969
        %3971 = vmatprep.subr.mxu0 0.0
        %v3972 = vand.u32 %v3597, 4294901760
        %v3973 = vsub.f32 %v3597, %v3972
        %v3974 = vand.u32 %v3973, 4294901760
        %3975 = vmatpush1.msra.mxu0 %v3974
        %3976 = vmatprep.subr.mxu0 0.0
        %v3977 = vand.u32 %v3596, 4294901760
        %v3978 = vsub.f32 %v3596, %v3977
        %v3979 = vand.u32 %v3978, 4294901760
        %3980 = vmatpush1.msra.mxu0 %v3979
        %3981 = vmatprep.subr.mxu0 0.0
        %3982 = vmatpush2.msra.mxu0 0.0
        %3983 = vmatprep.subr.mxu0 0.0
        %3984 = vmatpush2.msra.mxu0 0.0
        %3985 = vmatprep.subr.mxu0 0.0
        %3986 = vmatpush2.msra.mxu0 0.0
        %3987 = vmatprep.subr.mxu0 0.0
        %3988 = vmatpush2.msra.mxu0 0.0
        %3989 = vmatprep.subr.mxu0 0.0
        %3990 = vmatpush2.msra.mxu0 0.0
        %3991 = vmatprep.subr.mxu0 0.0
        %3992 = vmatpush2.msra.mxu0 0.0
        %3993 = vmatprep.subr.mxu0 0.0
        %3994 = vmatpush2.msra.mxu0 0.0
        %3995 = vmatprep.subr.mxu0 0.0
        %3996 = vmatpush2.msra.mxu0 0.0
        %3997 = vmatprep.subr.mxu0 0.0
        %3998 = vmatpush2.msra.mxu0 0.0
        %3999 = vmatprep.subr.mxu0 0.0
        %4000 = vmatpush2.msra.mxu0 0.0
        %4001 = vmatprep.subr.mxu0 0.0
        %4002 = vmatpush2.msra.mxu0 0.0
        %4003 = vmatprep.subr.mxu0 0.0
        %4004 = vmatpush2.msra.mxu0 0.0
        %4005 = vmatprep.subr.mxu0 0.0
        %4006 = vmatpush2.msra.mxu0 0.0
        %4007 = vmatprep.subr.mxu0 0.0
        %4008 = vmatpush2.msra.mxu0 0.0
        %4009 = vmatprep.subr.mxu0 0.0
        %4010 = vmatpush2.msra.mxu0 0.0
        %4011 = vmatprep.subr.mxu0 0.0
        %4012 = vmatpush2.msra.mxu0 0.0
        %4013 = vmatprep.mubr.f32.mxu0 0.0
        %v4014 = vand.u32 %v3608, 4294901760
        %4015 = vmatmul.mubr.f32.gmra.mxu0 %v4014
        %v4016 = vpop.f32.mrf.mxu0
        %v4017 = vadd.f32 %v3934, %v4016
        %v4018 = vpop.f32.mrf.mxu0
        %4019 = vdwg.mxu0
        %4020 = vmatprep.subr.mxu0 0.0
        %4021 = vmatpush1.msra.mxu0 0.0
        %4022 = vmatprep.subr.mxu0 0.0
        %4023 = vmatpush1.msra.mxu0 0.0
        %4024 = vmatprep.subr.mxu0 0.0
        %4025 = vmatpush1.msra.mxu0 0.0
        %4026 = vmatprep.subr.mxu0 0.0
        %4027 = vmatpush1.msra.mxu0 0.0
        %4028 = vmatprep.subr.mxu0 0.0
        %4029 = vmatpush1.msra.mxu0 0.0
        %4030 = vmatprep.subr.mxu0 0.0
        %4031 = vmatpush1.msra.mxu0 0.0
        %4032 = vmatprep.subr.mxu0 0.0
        %4033 = vmatpush1.msra.mxu0 0.0
        %4034 = vmatprep.subr.mxu0 0.0
        %4035 = vmatpush1.msra.mxu0 0.0
        %4036 = vmatprep.subr.mxu0 0.0
        %4037 = vmatpush1.msra.mxu0 0.0
        %4038 = vmatprep.subr.mxu0 0.0
        %4039 = vmatpush1.msra.mxu0 0.0
        %4040 = vmatprep.subr.mxu0 0.0
        %4041 = vmatpush1.msra.mxu0 0.0
        %4042 = vmatprep.subr.mxu0 0.0
        %4043 = vmatpush1.msra.mxu0 0.0
        %4044 = vmatprep.subr.mxu0 0.0
        %v4045 = vand.u32 %v3599, 4294901760
        %4046 = vmatpush1.msra.mxu0 %v4045
        %4047 = vmatprep.subr.mxu0 0.0
        %v4048 = vand.u32 %v3598, 4294901760
        %4049 = vmatpush1.msra.mxu0 %v4048
        %4050 = vmatprep.subr.mxu0 0.0
        %v4051 = vand.u32 %v3597, 4294901760
        %4052 = vmatpush1.msra.mxu0 %v4051
        %4053 = vmatprep.subr.mxu0 0.0
        %v4054 = vand.u32 %v3596, 4294901760
        %4055 = vmatpush1.msra.mxu0 %v4054
        %4056 = vmatprep.subr.mxu0 0.0
        %4057 = vmatpush2.msra.mxu0 0.0
        %4058 = vmatprep.subr.mxu0 0.0
        %4059 = vmatpush2.msra.mxu0 0.0
        %4060 = vmatprep.subr.mxu0 0.0
        %4061 = vmatpush2.msra.mxu0 0.0
        %4062 = vmatprep.subr.mxu0 0.0
        %4063 = vmatpush2.msra.mxu0 0.0
        %4064 = vmatprep.subr.mxu0 0.0
        %4065 = vmatpush2.msra.mxu0 0.0
        %4066 = vmatprep.subr.mxu0 0.0
        %4067 = vmatpush2.msra.mxu0 0.0
        %4068 = vmatprep.subr.mxu0 0.0
        %4069 = vmatpush2.msra.mxu0 0.0
        %4070 = vmatprep.subr.mxu0 0.0
        %4071 = vmatpush2.msra.mxu0 0.0
        %4072 = vmatprep.subr.mxu0 0.0
        %4073 = vmatpush2.msra.mxu0 0.0
        %4074 = vmatprep.subr.mxu0 0.0
        %4075 = vmatpush2.msra.mxu0 0.0
        %4076 = vmatprep.subr.mxu0 0.0
        %4077 = vmatpush2.msra.mxu0 0.0
        %4078 = vmatprep.subr.mxu0 0.0
        %4079 = vmatpush2.msra.mxu0 0.0
        %4080 = vmatprep.subr.mxu0 0.0
        %4081 = vmatpush2.msra.mxu0 0.0
        %4082 = vmatprep.subr.mxu0 0.0
        %4083 = vmatpush2.msra.mxu0 0.0
        %4084 = vmatprep.subr.mxu0 0.0
        %4085 = vmatpush2.msra.mxu0 0.0
        %4086 = vmatprep.subr.mxu0 0.0
        %4087 = vmatpush2.msra.mxu0 0.0
        %4088 = vmatprep.mubr.f32.mxu0 0.0
        %v4089 = vand.u32 %v3608, 4294901760
        %4090 = vmatmul.mubr.f32.gmra.mxu0 %v4089
        %v4091 = vpop.f32.mrf.mxu0
        %v4092 = vadd.f32 %v4017, %v4091
        %v4093 = vpop.f32.mrf.mxu0
        %4094 = vdwg.mxu0
        %v4095 = vmax.f32 %v4092, 0.0
        %v4096 = vld [vmem:[%s10] sm:$0xff]
        %v4097 = vld [vmem:[%s10 + $0x8] sm:$0xff]
        %v4098 = vld [vmem:[%s10 + $0x10] sm:$0xff]
        %v4099 = vld [vmem:[%s10 + $0x18] sm:$0xff]
        %v4100 = vld [vmem:[%s10 + $0x20] sm:$0xff]
        %v4101 = vld [vmem:[%s10 + $0x28] sm:$0xff]
        %v4102 = vld [vmem:[%s10 + $0x30] sm:$0xff]
        %v4103 = vld [vmem:[%s10 + $0x38] sm:$0xff]
        %v4104 = vlaneseq
        %v4105 = vshrl.u32 %v4104, 7
        %v4106 = vsub.s32 6, %v4105
        %v4107 = vrot.slane %v551, %v4106
        %vm4108 = vcmask 523264
        %v4110 = vsel %vm4108, %v4095, 0
        %4112 = vmatprep.subr.mxu0 0.0
        %4113 = vmatpush1.msra.mxu0 0.0
        %4114 = vmatprep.subr.mxu0 0.0
        %4115 = vmatpush1.msra.mxu0 0.0
        %4116 = vmatprep.subr.mxu0 0.0
        %4117 = vmatpush1.msra.mxu0 0.0
        %4118 = vmatprep.subr.mxu0 0.0
        %4119 = vmatpush1.msra.mxu0 0.0
        %4120 = vmatprep.subr.mxu0 0.0
        %4121 = vmatpush1.msra.mxu0 0.0
        %4122 = vmatprep.subr.mxu0 0.0
        %4123 = vmatpush1.msra.mxu0 0.0
        %4124 = vmatprep.subr.mxu0 0.0
        %4125 = vmatpush1.msra.mxu0 0.0
        %4126 = vmatprep.subr.mxu0 0.0
        %4127 = vmatpush1.msra.mxu0 0.0
        %4128 = vmatprep.subr.mxu0 0.0
        %v4129 = vand.u32 %v4103, 4294901760
        %4130 = vmatpush1.msra.mxu0 %v4129
        %4131 = vmatprep.subr.mxu0 0.0
        %v4132 = vand.u32 %v4102, 4294901760
        %4133 = vmatpush1.msra.mxu0 %v4132
        %4134 = vmatprep.subr.mxu0 0.0
        %v4135 = vand.u32 %v4101, 4294901760
        %4136 = vmatpush1.msra.mxu0 %v4135
        %4137 = vmatprep.subr.mxu0 0.0
        %v4138 = vand.u32 %v4100, 4294901760
        %4139 = vmatpush1.msra.mxu0 %v4138
        %4140 = vmatprep.subr.mxu0 0.0
        %v4141 = vand.u32 %v4099, 4294901760
        %4142 = vmatpush1.msra.mxu0 %v4141
        %4143 = vmatprep.subr.mxu0 0.0
        %v4144 = vand.u32 %v4098, 4294901760
        %4145 = vmatpush1.msra.mxu0 %v4144
        %4146 = vmatprep.subr.mxu0 0.0
        %v4147 = vand.u32 %v4097, 4294901760
        %4148 = vmatpush1.msra.mxu0 %v4147
        %4149 = vmatprep.subr.mxu0 0.0
        %v4150 = vand.u32 %v4096, 4294901760
        %4151 = vmatpush1.msra.mxu0 %v4150
        %4152 = vmatprep.subr.mxu0 0.0
        %4153 = vmatpush2.msra.mxu0 0.0
        %4154 = vmatprep.subr.mxu0 0.0
        %4155 = vmatpush2.msra.mxu0 0.0
        %4156 = vmatprep.subr.mxu0 0.0
        %4157 = vmatpush2.msra.mxu0 0.0
        %4158 = vmatprep.subr.mxu0 0.0
        %4159 = vmatpush2.msra.mxu0 0.0
        %4160 = vmatprep.subr.mxu0 0.0
        %4161 = vmatpush2.msra.mxu0 0.0
        %4162 = vmatprep.subr.mxu0 0.0
        %4163 = vmatpush2.msra.mxu0 0.0
        %4164 = vmatprep.subr.mxu0 0.0
        %4165 = vmatpush2.msra.mxu0 0.0
        %4166 = vmatprep.subr.mxu0 0.0
        %4167 = vmatpush2.msra.mxu0 0.0
        %4168 = vmatprep.subr.mxu0 0.0
        %4169 = vmatpush2.msra.mxu0 0.0
        %4170 = vmatprep.subr.mxu0 0.0
        %4171 = vmatpush2.msra.mxu0 0.0
        %4172 = vmatprep.subr.mxu0 0.0
        %4173 = vmatpush2.msra.mxu0 0.0
        %4174 = vmatprep.subr.mxu0 0.0
        %4175 = vmatpush2.msra.mxu0 0.0
        %4176 = vmatprep.subr.mxu0 0.0
        %4177 = vmatpush2.msra.mxu0 0.0
        %4178 = vmatprep.subr.mxu0 0.0
        %4179 = vmatpush2.msra.mxu0 0.0
        %4180 = vmatprep.subr.mxu0 0.0
        %4181 = vmatpush2.msra.mxu0 0.0
        %4182 = vmatprep.subr.mxu0 0.0
        %4183 = vmatpush2.msra.mxu0 0.0
        %4184 = vmatprep.mubr.f32.mxu0 0.0
        %v4185 = vand.u32 %v4110, 4294901760
        %v4186 = vsub.f32 %v4110, %v4185
        %v4187 = vand.u32 %v4186, 4294901760
        %v4188 = vsub.f32 %v4186, %v4187
        %v4189 = vand.u32 %v4188, 4294901760
        %4190 = vmatmul.mubr.f32.gmra.mxu0 %v4189
        %v4191 = vpop.f32.mrf.mxu0
        %v4192 = vadd.f32 %v4107, %v4191
        %v4193 = vpop.f32.mrf.mxu0
        %4194 = vdwg.mxu0
        %4195 = vmatprep.subr.mxu0 0.0
        %4196 = vmatpush1.msra.mxu0 0.0
        %4197 = vmatprep.subr.mxu0 0.0
        %4198 = vmatpush1.msra.mxu0 0.0
        %4199 = vmatprep.subr.mxu0 0.0
        %4200 = vmatpush1.msra.mxu0 0.0
        %4201 = vmatprep.subr.mxu0 0.0
        %4202 = vmatpush1.msra.mxu0 0.0
        %4203 = vmatprep.subr.mxu0 0.0
        %4204 = vmatpush1.msra.mxu0 0.0
        %4205 = vmatprep.subr.mxu0 0.0
        %4206 = vmatpush1.msra.mxu0 0.0
        %4207 = vmatprep.subr.mxu0 0.0
        %4208 = vmatpush1.msra.mxu0 0.0
        %4209 = vmatprep.subr.mxu0 0.0
        %4210 = vmatpush1.msra.mxu0 0.0
        %4211 = vmatprep.subr.mxu0 0.0
        %v4212 = vand.u32 %v4103, 4294901760
        %v4213 = vsub.f32 %v4103, %v4212
        %v4214 = vand.u32 %v4213, 4294901760
        %v4215 = vsub.f32 %v4213, %v4214
        %v4216 = vand.u32 %v4215, 4294901760
        %4217 = vmatpush1.msra.mxu0 %v4216
        %4218 = vmatprep.subr.mxu0 0.0
        %v4219 = vand.u32 %v4102, 4294901760
        %v4220 = vsub.f32 %v4102, %v4219
        %v4221 = vand.u32 %v4220, 4294901760
        %v4222 = vsub.f32 %v4220, %v4221
        %v4223 = vand.u32 %v4222, 4294901760
        %4224 = vmatpush1.msra.mxu0 %v4223
        %4225 = vmatprep.subr.mxu0 0.0
        %v4226 = vand.u32 %v4101, 4294901760
        %v4227 = vsub.f32 %v4101, %v4226
        %v4228 = vand.u32 %v4227, 4294901760
        %v4229 = vsub.f32 %v4227, %v4228
        %v4230 = vand.u32 %v4229, 4294901760
        %4231 = vmatpush1.msra.mxu0 %v4230
        %4232 = vmatprep.subr.mxu0 0.0
        %v4233 = vand.u32 %v4100, 4294901760
        %v4234 = vsub.f32 %v4100, %v4233
        %v4235 = vand.u32 %v4234, 4294901760
        %v4236 = vsub.f32 %v4234, %v4235
        %v4237 = vand.u32 %v4236, 4294901760
        %4238 = vmatpush1.msra.mxu0 %v4237
        %4239 = vmatprep.subr.mxu0 0.0
        %v4240 = vand.u32 %v4099, 4294901760
        %v4241 = vsub.f32 %v4099, %v4240
        %v4242 = vand.u32 %v4241, 4294901760
        %v4243 = vsub.f32 %v4241, %v4242
        %v4244 = vand.u32 %v4243, 4294901760
        %4245 = vmatpush1.msra.mxu0 %v4244
        %4246 = vmatprep.subr.mxu0 0.0
        %v4247 = vand.u32 %v4098, 4294901760
        %v4248 = vsub.f32 %v4098, %v4247
        %v4249 = vand.u32 %v4248, 4294901760
        %v4250 = vsub.f32 %v4248, %v4249
        %v4251 = vand.u32 %v4250, 4294901760
        %4252 = vmatpush1.msra.mxu0 %v4251
        %4253 = vmatprep.subr.mxu0 0.0
        %v4254 = vand.u32 %v4097, 4294901760
        %v4255 = vsub.f32 %v4097, %v4254
        %v4256 = vand.u32 %v4255, 4294901760
        %v4257 = vsub.f32 %v4255, %v4256
        %v4258 = vand.u32 %v4257, 4294901760
        %4259 = vmatpush1.msra.mxu0 %v4258
        %4260 = vmatprep.subr.mxu0 0.0
        %v4261 = vand.u32 %v4096, 4294901760
        %v4262 = vsub.f32 %v4096, %v4261
        %v4263 = vand.u32 %v4262, 4294901760
        %v4264 = vsub.f32 %v4262, %v4263
        %v4265 = vand.u32 %v4264, 4294901760
        %4266 = vmatpush1.msra.mxu0 %v4265
        %4267 = vmatprep.subr.mxu0 0.0
        %4268 = vmatpush2.msra.mxu0 0.0
        %4269 = vmatprep.subr.mxu0 0.0
        %4270 = vmatpush2.msra.mxu0 0.0
        %4271 = vmatprep.subr.mxu0 0.0
        %4272 = vmatpush2.msra.mxu0 0.0
        %4273 = vmatprep.subr.mxu0 0.0
        %4274 = vmatpush2.msra.mxu0 0.0
        %4275 = vmatprep.subr.mxu0 0.0
        %4276 = vmatpush2.msra.mxu0 0.0
        %4277 = vmatprep.subr.mxu0 0.0
        %4278 = vmatpush2.msra.mxu0 0.0
        %4279 = vmatprep.subr.mxu0 0.0
        %4280 = vmatpush2.msra.mxu0 0.0
        %4281 = vmatprep.subr.mxu0 0.0
        %4282 = vmatpush2.msra.mxu0 0.0
        %4283 = vmatprep.subr.mxu0 0.0
        %4284 = vmatpush2.msra.mxu0 0.0
        %4285 = vmatprep.subr.mxu0 0.0
        %4286 = vmatpush2.msra.mxu0 0.0
        %4287 = vmatprep.subr.mxu0 0.0
        %4288 = vmatpush2.msra.mxu0 0.0
        %4289 = vmatprep.subr.mxu0 0.0
        %4290 = vmatpush2.msra.mxu0 0.0
        %4291 = vmatprep.subr.mxu0 0.0
        %4292 = vmatpush2.msra.mxu0 0.0
        %4293 = vmatprep.subr.mxu0 0.0
        %4294 = vmatpush2.msra.mxu0 0.0
        %4295 = vmatprep.subr.mxu0 0.0
        %4296 = vmatpush2.msra.mxu0 0.0
        %4297 = vmatprep.subr.mxu0 0.0
        %4298 = vmatpush2.msra.mxu0 0.0
        %4299 = vmatprep.mubr.f32.mxu0 0.0
        %v4300 = vand.u32 %v4110, 4294901760
        %4301 = vmatmul.mubr.f32.gmra.mxu0 %v4300
        %v4302 = vpop.f32.mrf.mxu0
        %v4303 = vadd.f32 %v4192, %v4302
        %v4304 = vpop.f32.mrf.mxu0
        %4305 = vdwg.mxu0
        %4306 = vmatprep.subr.mxu0 0.0
        %4307 = vmatpush1.msra.mxu0 0.0
        %4308 = vmatprep.subr.mxu0 0.0
        %4309 = vmatpush1.msra.mxu0 0.0
        %4310 = vmatprep.subr.mxu0 0.0
        %4311 = vmatpush1.msra.mxu0 0.0
        %4312 = vmatprep.subr.mxu0 0.0
        %4313 = vmatpush1.msra.mxu0 0.0
        %4314 = vmatprep.subr.mxu0 0.0
        %4315 = vmatpush1.msra.mxu0 0.0
        %4316 = vmatprep.subr.mxu0 0.0
        %4317 = vmatpush1.msra.mxu0 0.0
        %4318 = vmatprep.subr.mxu0 0.0
        %4319 = vmatpush1.msra.mxu0 0.0
        %4320 = vmatprep.subr.mxu0 0.0
        %4321 = vmatpush1.msra.mxu0 0.0
        %4322 = vmatprep.subr.mxu0 0.0
        %v4323 = vand.u32 %v4103, 4294901760
        %v4324 = vsub.f32 %v4103, %v4323
        %4325 = vmatpush1.msra.mxu0 %v4324
        %4326 = vmatprep.subr.mxu0 0.0
        %v4327 = vand.u32 %v4102, 4294901760
        %v4328 = vsub.f32 %v4102, %v4327
        %4329 = vmatpush1.msra.mxu0 %v4328
        %4330 = vmatprep.subr.mxu0 0.0
        %v4331 = vand.u32 %v4101, 4294901760
        %v4332 = vsub.f32 %v4101, %v4331
        %4333 = vmatpush1.msra.mxu0 %v4332
        %4334 = vmatprep.subr.mxu0 0.0
        %v4335 = vand.u32 %v4100, 4294901760
        %v4336 = vsub.f32 %v4100, %v4335
        %4337 = vmatpush1.msra.mxu0 %v4336
        %4338 = vmatprep.subr.mxu0 0.0
        %v4339 = vand.u32 %v4099, 4294901760
        %v4340 = vsub.f32 %v4099, %v4339
        %4341 = vmatpush1.msra.mxu0 %v4340
        %4342 = vmatprep.subr.mxu0 0.0
        %v4343 = vand.u32 %v4098, 4294901760
        %v4344 = vsub.f32 %v4098, %v4343
        %4345 = vmatpush1.msra.mxu0 %v4344
        %4346 = vmatprep.subr.mxu0 0.0
        %v4347 = vand.u32 %v4097, 4294901760
        %v4348 = vsub.f32 %v4097, %v4347
        %4349 = vmatpush1.msra.mxu0 %v4348
        %4350 = vmatprep.subr.mxu0 0.0
        %v4351 = vand.u32 %v4096, 4294901760
        %v4352 = vsub.f32 %v4096, %v4351
        %4353 = vmatpush1.msra.mxu0 %v4352
        %4354 = vmatprep.subr.mxu0 0.0
        %4355 = vmatpush2.msra.mxu0 0.0
        %4356 = vmatprep.subr.mxu0 0.0
        %4357 = vmatpush2.msra.mxu0 0.0
        %4358 = vmatprep.subr.mxu0 0.0
        %4359 = vmatpush2.msra.mxu0 0.0
        %4360 = vmatprep.subr.mxu0 0.0
        %4361 = vmatpush2.msra.mxu0 0.0
        %4362 = vmatprep.subr.mxu0 0.0
        %4363 = vmatpush2.msra.mxu0 0.0
        %4364 = vmatprep.subr.mxu0 0.0
        %4365 = vmatpush2.msra.mxu0 0.0
        %4366 = vmatprep.subr.mxu0 0.0
        %4367 = vmatpush2.msra.mxu0 0.0
        %4368 = vmatprep.subr.mxu0 0.0
        %4369 = vmatpush2.msra.mxu0 0.0
        %4370 = vmatprep.subr.mxu0 0.0
        %4371 = vmatpush2.msra.mxu0 0.0
        %4372 = vmatprep.subr.mxu0 0.0
        %4373 = vmatpush2.msra.mxu0 0.0
        %4374 = vmatprep.subr.mxu0 0.0
        %4375 = vmatpush2.msra.mxu0 0.0
        %4376 = vmatprep.subr.mxu0 0.0
        %4377 = vmatpush2.msra.mxu0 0.0
        %4378 = vmatprep.subr.mxu0 0.0
        %4379 = vmatpush2.msra.mxu0 0.0
        %4380 = vmatprep.subr.mxu0 0.0
        %4381 = vmatpush2.msra.mxu0 0.0
        %4382 = vmatprep.subr.mxu0 0.0
        %4383 = vmatpush2.msra.mxu0 0.0
        %4384 = vmatprep.subr.mxu0 0.0
        %4385 = vmatpush2.msra.mxu0 0.0
        %4386 = vmatprep.mubr.f32.mxu0 0.0
        %v4387 = vand.u32 %v4110, 4294901760
        %v4388 = vsub.f32 %v4110, %v4387
        %4389 = vmatmul.mubr.f32.gmra.mxu0 %v4388
        %v4390 = vpop.f32.mrf.mxu0
        %v4391 = vadd.f32 %v4303, %v4390
        %v4392 = vpop.f32.mrf.mxu0
        %4393 = vdwg.mxu0
        %4394 = vmatprep.subr.mxu0 0.0
        %4395 = vmatpush1.msra.mxu0 0.0
        %4396 = vmatprep.subr.mxu0 0.0
        %4397 = vmatpush1.msra.mxu0 0.0
        %4398 = vmatprep.subr.mxu0 0.0
        %4399 = vmatpush1.msra.mxu0 0.0
        %4400 = vmatprep.subr.mxu0 0.0
        %4401 = vmatpush1.msra.mxu0 0.0
        %4402 = vmatprep.subr.mxu0 0.0
        %4403 = vmatpush1.msra.mxu0 0.0
        %4404 = vmatprep.subr.mxu0 0.0
        %4405 = vmatpush1.msra.mxu0 0.0
        %4406 = vmatprep.subr.mxu0 0.0
        %4407 = vmatpush1.msra.mxu0 0.0
        %4408 = vmatprep.subr.mxu0 0.0
        %4409 = vmatpush1.msra.mxu0 0.0
        %4410 = vmatprep.subr.mxu0 0.0
        %v4411 = vand.u32 %v4103, 4294901760
        %4412 = vmatpush1.msra.mxu0 %v4411
        %4413 = vmatprep.subr.mxu0 0.0
        %v4414 = vand.u32 %v4102, 4294901760
        %4415 = vmatpush1.msra.mxu0 %v4414
        %4416 = vmatprep.subr.mxu0 0.0
        %v4417 = vand.u32 %v4101, 4294901760
        %4418 = vmatpush1.msra.mxu0 %v4417
        %4419 = vmatprep.subr.mxu0 0.0
        %v4420 = vand.u32 %v4100, 4294901760
        %4421 = vmatpush1.msra.mxu0 %v4420
        %4422 = vmatprep.subr.mxu0 0.0
        %v4423 = vand.u32 %v4099, 4294901760
        %4424 = vmatpush1.msra.mxu0 %v4423
        %4425 = vmatprep.subr.mxu0 0.0
        %v4426 = vand.u32 %v4098, 4294901760
        %4427 = vmatpush1.msra.mxu0 %v4426
        %4428 = vmatprep.subr.mxu0 0.0
        %v4429 = vand.u32 %v4097, 4294901760
        %4430 = vmatpush1.msra.mxu0 %v4429
        %4431 = vmatprep.subr.mxu0 0.0
        %v4432 = vand.u32 %v4096, 4294901760
        %4433 = vmatpush1.msra.mxu0 %v4432
        %4434 = vmatprep.subr.mxu0 0.0
        %4435 = vmatpush2.msra.mxu0 0.0
        %4436 = vmatprep.subr.mxu0 0.0
        %4437 = vmatpush2.msra.mxu0 0.0
        %4438 = vmatprep.subr.mxu0 0.0
        %4439 = vmatpush2.msra.mxu0 0.0
        %4440 = vmatprep.subr.mxu0 0.0
        %4441 = vmatpush2.msra.mxu0 0.0
        %4442 = vmatprep.subr.mxu0 0.0
        %4443 = vmatpush2.msra.mxu0 0.0
        %4444 = vmatprep.subr.mxu0 0.0
        %4445 = vmatpush2.msra.mxu0 0.0
        %4446 = vmatprep.subr.mxu0 0.0
        %4447 = vmatpush2.msra.mxu0 0.0
        %4448 = vmatprep.subr.mxu0 0.0
        %4449 = vmatpush2.msra.mxu0 0.0
        %4450 = vmatprep.subr.mxu0 0.0
        %4451 = vmatpush2.msra.mxu0 0.0
        %4452 = vmatprep.subr.mxu0 0.0
        %4453 = vmatpush2.msra.mxu0 0.0
        %4454 = vmatprep.subr.mxu0 0.0
        %4455 = vmatpush2.msra.mxu0 0.0
        %4456 = vmatprep.subr.mxu0 0.0
        %4457 = vmatpush2.msra.mxu0 0.0
        %4458 = vmatprep.subr.mxu0 0.0
        %4459 = vmatpush2.msra.mxu0 0.0
        %4460 = vmatprep.subr.mxu0 0.0
        %4461 = vmatpush2.msra.mxu0 0.0
        %4462 = vmatprep.subr.mxu0 0.0
        %4463 = vmatpush2.msra.mxu0 0.0
        %4464 = vmatprep.subr.mxu0 0.0
        %4465 = vmatpush2.msra.mxu0 0.0
        %4466 = vmatprep.mubr.f32.mxu0 0.0
        %v4467 = vand.u32 %v4110, 4294901760
        %v4468 = vsub.f32 %v4110, %v4467
        %v4469 = vand.u32 %v4468, 4294901760
        %4470 = vmatmul.mubr.f32.gmra.mxu0 %v4469
        %v4471 = vpop.f32.mrf.mxu0
        %v4472 = vadd.f32 %v4391, %v4471
        %v4473 = vpop.f32.mrf.mxu0
        %4474 = vdwg.mxu0
        %4475 = vmatprep.subr.mxu0 0.0
        %4476 = vmatpush1.msra.mxu0 0.0
        %4477 = vmatprep.subr.mxu0 0.0
        %4478 = vmatpush1.msra.mxu0 0.0
        %4479 = vmatprep.subr.mxu0 0.0
        %4480 = vmatpush1.msra.mxu0 0.0
        %4481 = vmatprep.subr.mxu0 0.0
        %4482 = vmatpush1.msra.mxu0 0.0
        %4483 = vmatprep.subr.mxu0 0.0
        %4484 = vmatpush1.msra.mxu0 0.0
        %4485 = vmatprep.subr.mxu0 0.0
        %4486 = vmatpush1.msra.mxu0 0.0
        %4487 = vmatprep.subr.mxu0 0.0
        %4488 = vmatpush1.msra.mxu0 0.0
        %4489 = vmatprep.subr.mxu0 0.0
        %4490 = vmatpush1.msra.mxu0 0.0
        %4491 = vmatprep.subr.mxu0 0.0
        %v4492 = vand.u32 %v4103, 4294901760
        %v4493 = vsub.f32 %v4103, %v4492
        %v4494 = vand.u32 %v4493, 4294901760
        %4495 = vmatpush1.msra.mxu0 %v4494
        %4496 = vmatprep.subr.mxu0 0.0
        %v4497 = vand.u32 %v4102, 4294901760
        %v4498 = vsub.f32 %v4102, %v4497
        %v4499 = vand.u32 %v4498, 4294901760
        %4500 = vmatpush1.msra.mxu0 %v4499
        %4501 = vmatprep.subr.mxu0 0.0
        %v4502 = vand.u32 %v4101, 4294901760
        %v4503 = vsub.f32 %v4101, %v4502
        %v4504 = vand.u32 %v4503, 4294901760
        %4505 = vmatpush1.msra.mxu0 %v4504
        %4506 = vmatprep.subr.mxu0 0.0
        %v4507 = vand.u32 %v4100, 4294901760
        %v4508 = vsub.f32 %v4100, %v4507
        %v4509 = vand.u32 %v4508, 4294901760
        %4510 = vmatpush1.msra.mxu0 %v4509
        %4511 = vmatprep.subr.mxu0 0.0
        %v4512 = vand.u32 %v4099, 4294901760
        %v4513 = vsub.f32 %v4099, %v4512
        %v4514 = vand.u32 %v4513, 4294901760
        %4515 = vmatpush1.msra.mxu0 %v4514
        %4516 = vmatprep.subr.mxu0 0.0
        %v4517 = vand.u32 %v4098, 4294901760
        %v4518 = vsub.f32 %v4098, %v4517
        %v4519 = vand.u32 %v4518, 4294901760
        %4520 = vmatpush1.msra.mxu0 %v4519
        %4521 = vmatprep.subr.mxu0 0.0
        %v4522 = vand.u32 %v4097, 4294901760
        %v4523 = vsub.f32 %v4097, %v4522
        %v4524 = vand.u32 %v4523, 4294901760
        %4525 = vmatpush1.msra.mxu0 %v4524
        %4526 = vmatprep.subr.mxu0 0.0
        %v4527 = vand.u32 %v4096, 4294901760
        %v4528 = vsub.f32 %v4096, %v4527
        %v4529 = vand.u32 %v4528, 4294901760
        %4530 = vmatpush1.msra.mxu0 %v4529
        %4531 = vmatprep.subr.mxu0 0.0
        %4532 = vmatpush2.msra.mxu0 0.0
        %4533 = vmatprep.subr.mxu0 0.0
        %4534 = vmatpush2.msra.mxu0 0.0
        %4535 = vmatprep.subr.mxu0 0.0
        %4536 = vmatpush2.msra.mxu0 0.0
        %4537 = vmatprep.subr.mxu0 0.0
        %4538 = vmatpush2.msra.mxu0 0.0
        %4539 = vmatprep.subr.mxu0 0.0
        %4540 = vmatpush2.msra.mxu0 0.0
        %4541 = vmatprep.subr.mxu0 0.0
        %4542 = vmatpush2.msra.mxu0 0.0
        %4543 = vmatprep.subr.mxu0 0.0
        %4544 = vmatpush2.msra.mxu0 0.0
        %4545 = vmatprep.subr.mxu0 0.0
        %4546 = vmatpush2.msra.mxu0 0.0
        %4547 = vmatprep.subr.mxu0 0.0
        %4548 = vmatpush2.msra.mxu0 0.0
        %4549 = vmatprep.subr.mxu0 0.0
        %4550 = vmatpush2.msra.mxu0 0.0
        %4551 = vmatprep.subr.mxu0 0.0
        %4552 = vmatpush2.msra.mxu0 0.0
        %4553 = vmatprep.subr.mxu0 0.0
        %4554 = vmatpush2.msra.mxu0 0.0
        %4555 = vmatprep.subr.mxu0 0.0
        %4556 = vmatpush2.msra.mxu0 0.0
        %4557 = vmatprep.subr.mxu0 0.0
        %4558 = vmatpush2.msra.mxu0 0.0
        %4559 = vmatprep.subr.mxu0 0.0
        %4560 = vmatpush2.msra.mxu0 0.0
        %4561 = vmatprep.subr.mxu0 0.0
        %4562 = vmatpush2.msra.mxu0 0.0
        %4563 = vmatprep.mubr.f32.mxu0 0.0
        %v4564 = vand.u32 %v4110, 4294901760
        %4565 = vmatmul.mubr.f32.gmra.mxu0 %v4564
        %v4566 = vpop.f32.mrf.mxu0
        %v4567 = vadd.f32 %v4472, %v4566
        %v4568 = vpop.f32.mrf.mxu0
        %4569 = vdwg.mxu0
        %4570 = vmatprep.subr.mxu0 0.0
        %4571 = vmatpush1.msra.mxu0 0.0
        %4572 = vmatprep.subr.mxu0 0.0
        %4573 = vmatpush1.msra.mxu0 0.0
        %4574 = vmatprep.subr.mxu0 0.0
        %4575 = vmatpush1.msra.mxu0 0.0
        %4576 = vmatprep.subr.mxu0 0.0
        %4577 = vmatpush1.msra.mxu0 0.0
        %4578 = vmatprep.subr.mxu0 0.0
        %4579 = vmatpush1.msra.mxu0 0.0
        %4580 = vmatprep.subr.mxu0 0.0
        %4581 = vmatpush1.msra.mxu0 0.0
        %4582 = vmatprep.subr.mxu0 0.0
        %4583 = vmatpush1.msra.mxu0 0.0
        %4584 = vmatprep.subr.mxu0 0.0
        %4585 = vmatpush1.msra.mxu0 0.0
        %4586 = vmatprep.subr.mxu0 0.0
        %v4587 = vand.u32 %v4103, 4294901760
        %4588 = vmatpush1.msra.mxu0 %v4587
        %4589 = vmatprep.subr.mxu0 0.0
        %v4590 = vand.u32 %v4102, 4294901760
        %4591 = vmatpush1.msra.mxu0 %v4590
        %4592 = vmatprep.subr.mxu0 0.0
        %v4593 = vand.u32 %v4101, 4294901760
        %4594 = vmatpush1.msra.mxu0 %v4593
        %4595 = vmatprep.subr.mxu0 0.0
        %v4596 = vand.u32 %v4100, 4294901760
        %4597 = vmatpush1.msra.mxu0 %v4596
        %4598 = vmatprep.subr.mxu0 0.0
        %v4599 = vand.u32 %v4099, 4294901760
        %4600 = vmatpush1.msra.mxu0 %v4599
        %4601 = vmatprep.subr.mxu0 0.0
        %v4602 = vand.u32 %v4098, 4294901760
        %4603 = vmatpush1.msra.mxu0 %v4602
        %4604 = vmatprep.subr.mxu0 0.0
        %v4605 = vand.u32 %v4097, 4294901760
        %4606 = vmatpush1.msra.mxu0 %v4605
        %4607 = vmatprep.subr.mxu0 0.0
        %v4608 = vand.u32 %v4096, 4294901760
        %4609 = vmatpush1.msra.mxu0 %v4608
        %4610 = vmatprep.subr.mxu0 0.0
        %4611 = vmatpush2.msra.mxu0 0.0
        %4612 = vmatprep.subr.mxu0 0.0
        %4613 = vmatpush2.msra.mxu0 0.0
        %4614 = vmatprep.subr.mxu0 0.0
        %4615 = vmatpush2.msra.mxu0 0.0
        %4616 = vmatprep.subr.mxu0 0.0
        %4617 = vmatpush2.msra.mxu0 0.0
        %4618 = vmatprep.subr.mxu0 0.0
        %4619 = vmatpush2.msra.mxu0 0.0
        %4620 = vmatprep.subr.mxu0 0.0
        %4621 = vmatpush2.msra.mxu0 0.0
        %4622 = vmatprep.subr.mxu0 0.0
        %4623 = vmatpush2.msra.mxu0 0.0
        %4624 = vmatprep.subr.mxu0 0.0
        %4625 = vmatpush2.msra.mxu0 0.0
        %4626 = vmatprep.subr.mxu0 0.0
        %4627 = vmatpush2.msra.mxu0 0.0
        %4628 = vmatprep.subr.mxu0 0.0
        %4629 = vmatpush2.msra.mxu0 0.0
        %4630 = vmatprep.subr.mxu0 0.0
        %4631 = vmatpush2.msra.mxu0 0.0
        %4632 = vmatprep.subr.mxu0 0.0
        %4633 = vmatpush2.msra.mxu0 0.0
        %4634 = vmatprep.subr.mxu0 0.0
        %4635 = vmatpush2.msra.mxu0 0.0
        %4636 = vmatprep.subr.mxu0 0.0
        %4637 = vmatpush2.msra.mxu0 0.0
        %4638 = vmatprep.subr.mxu0 0.0
        %4639 = vmatpush2.msra.mxu0 0.0
        %4640 = vmatprep.subr.mxu0 0.0
        %4641 = vmatpush2.msra.mxu0 0.0
        %4642 = vmatprep.mubr.f32.mxu0 0.0
        %v4643 = vand.u32 %v4110, 4294901760
        %4644 = vmatmul.mubr.f32.gmra.mxu0 %v4643
        %v4645 = vpop.f32.mrf.mxu0
        %v4646 = vadd.f32 %v4567, %v4645
        %v4647 = vpop.f32.mrf.mxu0
        %4648 = vdwg.mxu0
        %v4649 = vadd.f32 %v3595, %v4646
        %v4650 = vsel %vm1034, %v4649, 0.0
        %4651 = vadd.xlane.f32.xlu0 %v4650
        %v4652 = vpop.xlane.xlu0 %4651
        %v4653 = vmul.f32 %v4652, %v3575
        %v4654 = vsub.f32 %v4649, %v4653
        %v4655 = vmul.f32 %v4654, %v4654
        %v4656 = vsel %vm1034, %v4655, 0.0
        %4657 = vadd.xlane.f32.xlu0 %v4656
        %v4658 = vpop.xlane.xlu0 %4657
        %v4659 = vmul.f32 %v4658, %v3575
        %v4660 = vadd.f32 %v4659, 1e-05
        %v4661 = vrsqrt.pop %v4660
        %v4662 = vmul.f32 %v4654, %v4661
        %v4663 = vlaneseq
        %v4664 = vshrl.u32 %v4663, 7
        %v4665 = vsub.s32 4, %v4664
        %v4666 = vrot.slane %v551, %v4665
        %v4667 = vmul.f32 %v4662, %v4666
        %v4668 = vlaneseq
        %v4669 = vshrl.u32 %v4668, 7
        %v4670 = vsub.s32 5, %v4669
        %v4671 = vrot.slane %v551, %v4670
        %v4672 = vadd.f32 %v4667, %v4671
        %v4673 = vld [vmem:[#allocation2] sm:$0xff]
        %v4674 = vld [vmem:[#allocation2 + $0x8] sm:$0xff]
        %v4675 = vld [vmem:[#allocation2 + $0x10] sm:$0xff]
        %v4676 = vld [vmem:[#allocation2 + $0x18] sm:$0xff]
        %v4677 = vld [vmem:[%s12] sm:$0x1]
        %v4679 = vlaneseq
        %v4680 = vshrl.u32 %v4679, 7
        %v4681 = vsub.s32 0, %v4680
        %v4682 = vrot.slane %v4677, %v4681
        %v4685 = vsel %vm1034, %v4672, 0
        %4687 = vmatprep.subr.mxu0 0.0
        %4688 = vmatpush1.msra.mxu0 0.0
        %4689 = vmatprep.subr.mxu0 0.0
        %4690 = vmatpush1.msra.mxu0 0.0
        %4691 = vmatprep.subr.mxu0 0.0
        %4692 = vmatpush1.msra.mxu0 0.0
        %4693 = vmatprep.subr.mxu0 0.0
        %4694 = vmatpush1.msra.mxu0 0.0
        %4695 = vmatprep.subr.mxu0 0.0
        %4696 = vmatpush1.msra.mxu0 0.0
        %4697 = vmatprep.subr.mxu0 0.0
        %4698 = vmatpush1.msra.mxu0 0.0
        %4699 = vmatprep.subr.mxu0 0.0
        %4700 = vmatpush1.msra.mxu0 0.0
        %4701 = vmatprep.subr.mxu0 0.0
        %4702 = vmatpush1.msra.mxu0 0.0
        %4703 = vmatprep.subr.mxu0 0.0
        %4704 = vmatpush1.msra.mxu0 0.0
        %4705 = vmatprep.subr.mxu0 0.0
        %4706 = vmatpush1.msra.mxu0 0.0
        %4707 = vmatprep.subr.mxu0 0.0
        %4708 = vmatpush1.msra.mxu0 0.0
        %4709 = vmatprep.subr.mxu0 0.0
        %4710 = vmatpush1.msra.mxu0 0.0
        %4711 = vmatprep.subr.mxu0 0.0
        %v4712 = vand.u32 %v4676, 4294901760
        %4713 = vmatpush1.msra.mxu0 %v4712
        %4714 = vmatprep.subr.mxu0 0.0
        %v4715 = vand.u32 %v4675, 4294901760
        %4716 = vmatpush1.msra.mxu0 %v4715
        %4717 = vmatprep.subr.mxu0 0.0
        %v4718 = vand.u32 %v4674, 4294901760
        %4719 = vmatpush1.msra.mxu0 %v4718
        %4720 = vmatprep.subr.mxu0 0.0
        %v4721 = vand.u32 %v4673, 4294901760
        %4722 = vmatpush1.msra.mxu0 %v4721
        %4723 = vmatprep.subr.mxu0 0.0
        %4724 = vmatpush2.msra.mxu0 0.0
        %4725 = vmatprep.subr.mxu0 0.0
        %4726 = vmatpush2.msra.mxu0 0.0
        %4727 = vmatprep.subr.mxu0 0.0
        %4728 = vmatpush2.msra.mxu0 0.0
        %4729 = vmatprep.subr.mxu0 0.0
        %4730 = vmatpush2.msra.mxu0 0.0
        %4731 = vmatprep.subr.mxu0 0.0
        %4732 = vmatpush2.msra.mxu0 0.0
        %4733 = vmatprep.subr.mxu0 0.0
        %4734 = vmatpush2.msra.mxu0 0.0
        %4735 = vmatprep.subr.mxu0 0.0
        %4736 = vmatpush2.msra.mxu0 0.0
        %4737 = vmatprep.subr.mxu0 0.0
        %4738 = vmatpush2.msra.mxu0 0.0
        %4739 = vmatprep.subr.mxu0 0.0
        %4740 = vmatpush2.msra.mxu0 0.0
        %4741 = vmatprep.subr.mxu0 0.0
        %4742 = vmatpush2.msra.mxu0 0.0
        %4743 = vmatprep.subr.mxu0 0.0
        %4744 = vmatpush2.msra.mxu0 0.0
        %4745 = vmatprep.subr.mxu0 0.0
        %4746 = vmatpush2.msra.mxu0 0.0
        %4747 = vmatprep.subr.mxu0 0.0
        %4748 = vmatpush2.msra.mxu0 0.0
        %4749 = vmatprep.subr.mxu0 0.0
        %4750 = vmatpush2.msra.mxu0 0.0
        %4751 = vmatprep.subr.mxu0 0.0
        %4752 = vmatpush2.msra.mxu0 0.0
        %4753 = vmatprep.subr.mxu0 0.0
        %4754 = vmatpush2.msra.mxu0 0.0
        %4755 = vmatprep.mubr.f32.mxu0 0.0
        %v4756 = vand.u32 %v4685, 4294901760
        %v4757 = vsub.f32 %v4685, %v4756
        %v4758 = vand.u32 %v4757, 4294901760
        %v4759 = vsub.f32 %v4757, %v4758
        %v4760 = vand.u32 %v4759, 4294901760
        %4761 = vmatmul.mubr.f32.gmra.mxu0 %v4760
        %v4762 = vpop.f32.mrf.mxu0
        %v4763 = vadd.f32 %v4682, %v4762
        %v4764 = vpop.f32.mrf.mxu0
        %4765 = vdwg.mxu0
        %4766 = vmatprep.subr.mxu0 0.0
        %4767 = vmatpush1.msra.mxu0 0.0
        %4768 = vmatprep.subr.mxu0 0.0
        %4769 = vmatpush1.msra.mxu0 0.0
        %4770 = vmatprep.subr.mxu0 0.0
        %4771 = vmatpush1.msra.mxu0 0.0
        %4772 = vmatprep.subr.mxu0 0.0
        %4773 = vmatpush1.msra.mxu0 0.0
        %4774 = vmatprep.subr.mxu0 0.0
        %4775 = vmatpush1.msra.mxu0 0.0
        %4776 = vmatprep.subr.mxu0 0.0
        %4777 = vmatpush1.msra.mxu0 0.0
        %4778 = vmatprep.subr.mxu0 0.0
        %4779 = vmatpush1.msra.mxu0 0.0
        %4780 = vmatprep.subr.mxu0 0.0
        %4781 = vmatpush1.msra.mxu0 0.0
        %4782 = vmatprep.subr.mxu0 0.0
        %4783 = vmatpush1.msra.mxu0 0.0
        %4784 = vmatprep.subr.mxu0 0.0
        %4785 = vmatpush1.msra.mxu0 0.0
        %4786 = vmatprep.subr.mxu0 0.0
        %4787 = vmatpush1.msra.mxu0 0.0
        %4788 = vmatprep.subr.mxu0 0.0
        %4789 = vmatpush1.msra.mxu0 0.0
        %4790 = vmatprep.subr.mxu0 0.0
        %v4791 = vand.u32 %v4676, 4294901760
        %v4792 = vsub.f32 %v4676, %v4791
        %v4793 = vand.u32 %v4792, 4294901760
        %v4794 = vsub.f32 %v4792, %v4793
        %v4795 = vand.u32 %v4794, 4294901760
        %4796 = vmatpush1.msra.mxu0 %v4795
        %4797 = vmatprep.subr.mxu0 0.0
        %v4798 = vand.u32 %v4675, 4294901760
        %v4799 = vsub.f32 %v4675, %v4798
        %v4800 = vand.u32 %v4799, 4294901760
        %v4801 = vsub.f32 %v4799, %v4800
        %v4802 = vand.u32 %v4801, 4294901760
        %4803 = vmatpush1.msra.mxu0 %v4802
        %4804 = vmatprep.subr.mxu0 0.0
        %v4805 = vand.u32 %v4674, 4294901760
        %v4806 = vsub.f32 %v4674, %v4805
        %v4807 = vand.u32 %v4806, 4294901760
        %v4808 = vsub.f32 %v4806, %v4807
        %v4809 = vand.u32 %v4808, 4294901760
        %4810 = vmatpush1.msra.mxu0 %v4809
        %4811 = vmatprep.subr.mxu0 0.0
        %v4812 = vand.u32 %v4673, 4294901760
        %v4813 = vsub.f32 %v4673, %v4812
        %v4814 = vand.u32 %v4813, 4294901760
        %v4815 = vsub.f32 %v4813, %v4814
        %v4816 = vand.u32 %v4815, 4294901760
        %4817 = vmatpush1.msra.mxu0 %v4816
        %4818 = vmatprep.subr.mxu0 0.0
        %4819 = vmatpush2.msra.mxu0 0.0
        %4820 = vmatprep.subr.mxu0 0.0
        %4821 = vmatpush2.msra.mxu0 0.0
        %4822 = vmatprep.subr.mxu0 0.0
        %4823 = vmatpush2.msra.mxu0 0.0
        %4824 = vmatprep.subr.mxu0 0.0
        %4825 = vmatpush2.msra.mxu0 0.0
        %4826 = vmatprep.subr.mxu0 0.0
        %4827 = vmatpush2.msra.mxu0 0.0
        %4828 = vmatprep.subr.mxu0 0.0
        %4829 = vmatpush2.msra.mxu0 0.0
        %4830 = vmatprep.subr.mxu0 0.0
        %4831 = vmatpush2.msra.mxu0 0.0
        %4832 = vmatprep.subr.mxu0 0.0
        %4833 = vmatpush2.msra.mxu0 0.0
        %4834 = vmatprep.subr.mxu0 0.0
        %4835 = vmatpush2.msra.mxu0 0.0
        %4836 = vmatprep.subr.mxu0 0.0
        %4837 = vmatpush2.msra.mxu0 0.0
        %4838 = vmatprep.subr.mxu0 0.0
        %4839 = vmatpush2.msra.mxu0 0.0
        %4840 = vmatprep.subr.mxu0 0.0
        %4841 = vmatpush2.msra.mxu0 0.0
        %4842 = vmatprep.subr.mxu0 0.0
        %4843 = vmatpush2.msra.mxu0 0.0
        %4844 = vmatprep.subr.mxu0 0.0
        %4845 = vmatpush2.msra.mxu0 0.0
        %4846 = vmatprep.subr.mxu0 0.0
        %4847 = vmatpush2.msra.mxu0 0.0
        %4848 = vmatprep.subr.mxu0 0.0
        %4849 = vmatpush2.msra.mxu0 0.0
        %4850 = vmatprep.mubr.f32.mxu0 0.0
        %v4851 = vand.u32 %v4685, 4294901760
        %4852 = vmatmul.mubr.f32.gmra.mxu0 %v4851
        %v4853 = vpop.f32.mrf.mxu0
        %v4854 = vadd.f32 %v4763, %v4853
        %v4855 = vpop.f32.mrf.mxu0
        %4856 = vdwg.mxu0
        %4857 = vmatprep.subr.mxu0 0.0
        %4858 = vmatpush1.msra.mxu0 0.0
        %4859 = vmatprep.subr.mxu0 0.0
        %4860 = vmatpush1.msra.mxu0 0.0
        %4861 = vmatprep.subr.mxu0 0.0
        %4862 = vmatpush1.msra.mxu0 0.0
        %4863 = vmatprep.subr.mxu0 0.0
        %4864 = vmatpush1.msra.mxu0 0.0
        %4865 = vmatprep.subr.mxu0 0.0
        %4866 = vmatpush1.msra.mxu0 0.0
        %4867 = vmatprep.subr.mxu0 0.0
        %4868 = vmatpush1.msra.mxu0 0.0
        %4869 = vmatprep.subr.mxu0 0.0
        %4870 = vmatpush1.msra.mxu0 0.0
        %4871 = vmatprep.subr.mxu0 0.0
        %4872 = vmatpush1.msra.mxu0 0.0
        %4873 = vmatprep.subr.mxu0 0.0
        %4874 = vmatpush1.msra.mxu0 0.0
        %4875 = vmatprep.subr.mxu0 0.0
        %4876 = vmatpush1.msra.mxu0 0.0
        %4877 = vmatprep.subr.mxu0 0.0
        %4878 = vmatpush1.msra.mxu0 0.0
        %4879 = vmatprep.subr.mxu0 0.0
        %4880 = vmatpush1.msra.mxu0 0.0
        %4881 = vmatprep.subr.mxu0 0.0
        %v4882 = vand.u32 %v4676, 4294901760
        %v4883 = vsub.f32 %v4676, %v4882
        %4884 = vmatpush1.msra.mxu0 %v4883
        %4885 = vmatprep.subr.mxu0 0.0
        %v4886 = vand.u32 %v4675, 4294901760
        %v4887 = vsub.f32 %v4675, %v4886
        %4888 = vmatpush1.msra.mxu0 %v4887
        %4889 = vmatprep.subr.mxu0 0.0
        %v4890 = vand.u32 %v4674, 4294901760
        %v4891 = vsub.f32 %v4674, %v4890
        %4892 = vmatpush1.msra.mxu0 %v4891
        %4893 = vmatprep.subr.mxu0 0.0
        %v4894 = vand.u32 %v4673, 4294901760
        %v4895 = vsub.f32 %v4673, %v4894
        %4896 = vmatpush1.msra.mxu0 %v4895
        %4897 = vmatprep.subr.mxu0 0.0
        %4898 = vmatpush2.msra.mxu0 0.0
        %4899 = vmatprep.subr.mxu0 0.0
        %4900 = vmatpush2.msra.mxu0 0.0
        %4901 = vmatprep.subr.mxu0 0.0
        %4902 = vmatpush2.msra.mxu0 0.0
        %4903 = vmatprep.subr.mxu0 0.0
        %4904 = vmatpush2.msra.mxu0 0.0
        %4905 = vmatprep.subr.mxu0 0.0
        %4906 = vmatpush2.msra.mxu0 0.0
        %4907 = vmatprep.subr.mxu0 0.0
        %4908 = vmatpush2.msra.mxu0 0.0
        %4909 = vmatprep.subr.mxu0 0.0
        %4910 = vmatpush2.msra.mxu0 0.0
        %4911 = vmatprep.subr.mxu0 0.0
        %4912 = vmatpush2.msra.mxu0 0.0
        %4913 = vmatprep.subr.mxu0 0.0
        %4914 = vmatpush2.msra.mxu0 0.0
        %4915 = vmatprep.subr.mxu0 0.0
        %4916 = vmatpush2.msra.mxu0 0.0
        %4917 = vmatprep.subr.mxu0 0.0
        %4918 = vmatpush2.msra.mxu0 0.0
        %4919 = vmatprep.subr.mxu0 0.0
        %4920 = vmatpush2.msra.mxu0 0.0
        %4921 = vmatprep.subr.mxu0 0.0
        %4922 = vmatpush2.msra.mxu0 0.0
        %4923 = vmatprep.subr.mxu0 0.0
        %4924 = vmatpush2.msra.mxu0 0.0
        %4925 = vmatprep.subr.mxu0 0.0
        %4926 = vmatpush2.msra.mxu0 0.0
        %4927 = vmatprep.subr.mxu0 0.0
        %4928 = vmatpush2.msra.mxu0 0.0
        %4929 = vmatprep.mubr.f32.mxu0 0.0
        %v4930 = vand.u32 %v4685, 4294901760
        %v4931 = vsub.f32 %v4685, %v4930
        %4932 = vmatmul.mubr.f32.gmra.mxu0 %v4931
        %v4933 = vpop.f32.mrf.mxu0
        %v4934 = vadd.f32 %v4854, %v4933
        %v4935 = vpop.f32.mrf.mxu0
        %4936 = vdwg.mxu0
        %4937 = vmatprep.subr.mxu0 0.0
        %4938 = vmatpush1.msra.mxu0 0.0
        %4939 = vmatprep.subr.mxu0 0.0
        %4940 = vmatpush1.msra.mxu0 0.0
        %4941 = vmatprep.subr.mxu0 0.0
        %4942 = vmatpush1.msra.mxu0 0.0
        %4943 = vmatprep.subr.mxu0 0.0
        %4944 = vmatpush1.msra.mxu0 0.0
        %4945 = vmatprep.subr.mxu0 0.0
        %4946 = vmatpush1.msra.mxu0 0.0
        %4947 = vmatprep.subr.mxu0 0.0
        %4948 = vmatpush1.msra.mxu0 0.0
        %4949 = vmatprep.subr.mxu0 0.0
        %4950 = vmatpush1.msra.mxu0 0.0
        %4951 = vmatprep.subr.mxu0 0.0
        %4952 = vmatpush1.msra.mxu0 0.0
        %4953 = vmatprep.subr.mxu0 0.0
        %4954 = vmatpush1.msra.mxu0 0.0
        %4955 = vmatprep.subr.mxu0 0.0
        %4956 = vmatpush1.msra.mxu0 0.0
        %4957 = vmatprep.subr.mxu0 0.0
        %4958 = vmatpush1.msra.mxu0 0.0
        %4959 = vmatprep.subr.mxu0 0.0
        %4960 = vmatpush1.msra.mxu0 0.0
        %4961 = vmatprep.subr.mxu0 0.0
        %v4962 = vand.u32 %v4676, 4294901760
        %4963 = vmatpush1.msra.mxu0 %v4962
        %4964 = vmatprep.subr.mxu0 0.0
        %v4965 = vand.u32 %v4675, 4294901760
        %4966 = vmatpush1.msra.mxu0 %v4965
        %4967 = vmatprep.subr.mxu0 0.0
        %v4968 = vand.u32 %v4674, 4294901760
        %4969 = vmatpush1.msra.mxu0 %v4968
        %4970 = vmatprep.subr.mxu0 0.0
        %v4971 = vand.u32 %v4673, 4294901760
        %4972 = vmatpush1.msra.mxu0 %v4971
        %4973 = vmatprep.subr.mxu0 0.0
        %4974 = vmatpush2.msra.mxu0 0.0
        %4975 = vmatprep.subr.mxu0 0.0
        %4976 = vmatpush2.msra.mxu0 0.0
        %4977 = vmatprep.subr.mxu0 0.0
        %4978 = vmatpush2.msra.mxu0 0.0
        %4979 = vmatprep.subr.mxu0 0.0
        %4980 = vmatpush2.msra.mxu0 0.0
        %4981 = vmatprep.subr.mxu0 0.0
        %4982 = vmatpush2.msra.mxu0 0.0
        %4983 = vmatprep.subr.mxu0 0.0
        %4984 = vmatpush2.msra.mxu0 0.0
        %4985 = vmatprep.subr.mxu0 0.0
        %4986 = vmatpush2.msra.mxu0 0.0
        %4987 = vmatprep.subr.mxu0 0.0
        %4988 = vmatpush2.msra.mxu0 0.0
        %4989 = vmatprep.subr.mxu0 0.0
        %4990 = vmatpush2.msra.mxu0 0.0
        %4991 = vmatprep.subr.mxu0 0.0
        %4992 = vmatpush2.msra.mxu0 0.0
        %4993 = vmatprep.subr.mxu0 0.0
        %4994 = vmatpush2.msra.mxu0 0.0
        %4995 = vmatprep.subr.mxu0 0.0
        %4996 = vmatpush2.msra.mxu0 0.0
        %4997 = vmatprep.subr.mxu0 0.0
        %4998 = vmatpush2.msra.mxu0 0.0
        %4999 = vmatprep.subr.mxu0 0.0
        %5000 = vmatpush2.msra.mxu0 0.0
        %5001 = vmatprep.subr.mxu0 0.0
        %5002 = vmatpush2.msra.mxu0 0.0
        %5003 = vmatprep.subr.mxu0 0.0
        %5004 = vmatpush2.msra.mxu0 0.0
        %5005 = vmatprep.mubr.f32.mxu0 0.0
        %v5006 = vand.u32 %v4685, 4294901760
        %v5007 = vsub.f32 %v4685, %v5006
        %v5008 = vand.u32 %v5007, 4294901760
        %5009 = vmatmul.mubr.f32.gmra.mxu0 %v5008
        %v5010 = vpop.f32.mrf.mxu0
        %v5011 = vadd.f32 %v4934, %v5010
        %v5012 = vpop.f32.mrf.mxu0
        %5013 = vdwg.mxu0
        %5014 = vmatprep.subr.mxu0 0.0
        %5015 = vmatpush1.msra.mxu0 0.0
        %5016 = vmatprep.subr.mxu0 0.0
        %5017 = vmatpush1.msra.mxu0 0.0
        %5018 = vmatprep.subr.mxu0 0.0
        %5019 = vmatpush1.msra.mxu0 0.0
        %5020 = vmatprep.subr.mxu0 0.0
        %5021 = vmatpush1.msra.mxu0 0.0
        %5022 = vmatprep.subr.mxu0 0.0
        %5023 = vmatpush1.msra.mxu0 0.0
        %5024 = vmatprep.subr.mxu0 0.0
        %5025 = vmatpush1.msra.mxu0 0.0
        %5026 = vmatprep.subr.mxu0 0.0
        %5027 = vmatpush1.msra.mxu0 0.0
        %5028 = vmatprep.subr.mxu0 0.0
        %5029 = vmatpush1.msra.mxu0 0.0
        %5030 = vmatprep.subr.mxu0 0.0
        %5031 = vmatpush1.msra.mxu0 0.0
        %5032 = vmatprep.subr.mxu0 0.0
        %5033 = vmatpush1.msra.mxu0 0.0
        %5034 = vmatprep.subr.mxu0 0.0
        %5035 = vmatpush1.msra.mxu0 0.0
        %5036 = vmatprep.subr.mxu0 0.0
        %5037 = vmatpush1.msra.mxu0 0.0
        %5038 = vmatprep.subr.mxu0 0.0
        %v5039 = vand.u32 %v4676, 4294901760
        %v5040 = vsub.f32 %v4676, %v5039
        %v5041 = vand.u32 %v5040, 4294901760
        %5042 = vmatpush1.msra.mxu0 %v5041
        %5043 = vmatprep.subr.mxu0 0.0
        %v5044 = vand.u32 %v4675, 4294901760
        %v5045 = vsub.f32 %v4675, %v5044
        %v5046 = vand.u32 %v5045, 4294901760
        %5047 = vmatpush1.msra.mxu0 %v5046
        %5048 = vmatprep.subr.mxu0 0.0
        %v5049 = vand.u32 %v4674, 4294901760
        %v5050 = vsub.f32 %v4674, %v5049
        %v5051 = vand.u32 %v5050, 4294901760
        %5052 = vmatpush1.msra.mxu0 %v5051
        %5053 = vmatprep.subr.mxu0 0.0
        %v5054 = vand.u32 %v4673, 4294901760
        %v5055 = vsub.f32 %v4673, %v5054
        %v5056 = vand.u32 %v5055, 4294901760
        %5057 = vmatpush1.msra.mxu0 %v5056
        %5058 = vmatprep.subr.mxu0 0.0
        %5059 = vmatpush2.msra.mxu0 0.0
        %5060 = vmatprep.subr.mxu0 0.0
        %5061 = vmatpush2.msra.mxu0 0.0
        %5062 = vmatprep.subr.mxu0 0.0
        %5063 = vmatpush2.msra.mxu0 0.0
        %5064 = vmatprep.subr.mxu0 0.0
        %5065 = vmatpush2.msra.mxu0 0.0
        %5066 = vmatprep.subr.mxu0 0.0
        %5067 = vmatpush2.msra.mxu0 0.0
        %5068 = vmatprep.subr.mxu0 0.0
        %5069 = vmatpush2.msra.mxu0 0.0
        %5070 = vmatprep.subr.mxu0 0.0
        %5071 = vmatpush2.msra.mxu0 0.0
        %5072 = vmatprep.subr.mxu0 0.0
        %5073 = vmatpush2.msra.mxu0 0.0
        %5074 = vmatprep.subr.mxu0 0.0
        %5075 = vmatpush2.msra.mxu0 0.0
        %5076 = vmatprep.subr.mxu0 0.0
        %5077 = vmatpush2.msra.mxu0 0.0
        %5078 = vmatprep.subr.mxu0 0.0
        %5079 = vmatpush2.msra.mxu0 0.0
        %5080 = vmatprep.subr.mxu0 0.0
        %5081 = vmatpush2.msra.mxu0 0.0
        %5082 = vmatprep.subr.mxu0 0.0
        %5083 = vmatpush2.msra.mxu0 0.0
        %5084 = vmatprep.subr.mxu0 0.0
        %5085 = vmatpush2.msra.mxu0 0.0
        %5086 = vmatprep.subr.mxu0 0.0
        %5087 = vmatpush2.msra.mxu0 0.0
        %5088 = vmatprep.subr.mxu0 0.0
        %5089 = vmatpush2.msra.mxu0 0.0
        %5090 = vmatprep.mubr.f32.mxu0 0.0
        %v5091 = vand.u32 %v4685, 4294901760
        %5092 = vmatmul.mubr.f32.gmra.mxu0 %v5091
        %v5093 = vpop.f32.mrf.mxu0
        %v5094 = vadd.f32 %v5011, %v5093
        %v5095 = vpop.f32.mrf.mxu0
        %5096 = vdwg.mxu0
        %5097 = vmatprep.subr.mxu0 0.0
        %5098 = vmatpush1.msra.mxu0 0.0
        %5099 = vmatprep.subr.mxu0 0.0
        %5100 = vmatpush1.msra.mxu0 0.0
        %5101 = vmatprep.subr.mxu0 0.0
        %5102 = vmatpush1.msra.mxu0 0.0
        %5103 = vmatprep.subr.mxu0 0.0
        %5104 = vmatpush1.msra.mxu0 0.0
        %5105 = vmatprep.subr.mxu0 0.0
        %5106 = vmatpush1.msra.mxu0 0.0
        %5107 = vmatprep.subr.mxu0 0.0
        %5108 = vmatpush1.msra.mxu0 0.0
        %5109 = vmatprep.subr.mxu0 0.0
        %5110 = vmatpush1.msra.mxu0 0.0
        %5111 = vmatprep.subr.mxu0 0.0
        %5112 = vmatpush1.msra.mxu0 0.0
        %5113 = vmatprep.subr.mxu0 0.0
        %5114 = vmatpush1.msra.mxu0 0.0
        %5115 = vmatprep.subr.mxu0 0.0
        %5116 = vmatpush1.msra.mxu0 0.0
        %5117 = vmatprep.subr.mxu0 0.0
        %5118 = vmatpush1.msra.mxu0 0.0
        %5119 = vmatprep.subr.mxu0 0.0
        %5120 = vmatpush1.msra.mxu0 0.0
        %5121 = vmatprep.subr.mxu0 0.0
        %v5122 = vand.u32 %v4676, 4294901760
        %5123 = vmatpush1.msra.mxu0 %v5122
        %5124 = vmatprep.subr.mxu0 0.0
        %v5125 = vand.u32 %v4675, 4294901760
        %5126 = vmatpush1.msra.mxu0 %v5125
        %5127 = vmatprep.subr.mxu0 0.0
        %v5128 = vand.u32 %v4674, 4294901760
        %5129 = vmatpush1.msra.mxu0 %v5128
        %5130 = vmatprep.subr.mxu0 0.0
        %v5131 = vand.u32 %v4673, 4294901760
        %5132 = vmatpush1.msra.mxu0 %v5131
        %5133 = vmatprep.subr.mxu0 0.0
        %5134 = vmatpush2.msra.mxu0 0.0
        %5135 = vmatprep.subr.mxu0 0.0
        %5136 = vmatpush2.msra.mxu0 0.0
        %5137 = vmatprep.subr.mxu0 0.0
        %5138 = vmatpush2.msra.mxu0 0.0
        %5139 = vmatprep.subr.mxu0 0.0
        %5140 = vmatpush2.msra.mxu0 0.0
        %5141 = vmatprep.subr.mxu0 0.0
        %5142 = vmatpush2.msra.mxu0 0.0
        %5143 = vmatprep.subr.mxu0 0.0
        %5144 = vmatpush2.msra.mxu0 0.0
        %5145 = vmatprep.subr.mxu0 0.0
        %5146 = vmatpush2.msra.mxu0 0.0
        %5147 = vmatprep.subr.mxu0 0.0
        %5148 = vmatpush2.msra.mxu0 0.0
        %5149 = vmatprep.subr.mxu0 0.0
        %5150 = vmatpush2.msra.mxu0 0.0
        %5151 = vmatprep.subr.mxu0 0.0
        %5152 = vmatpush2.msra.mxu0 0.0
        %5153 = vmatprep.subr.mxu0 0.0
        %5154 = vmatpush2.msra.mxu0 0.0
        %5155 = vmatprep.subr.mxu0 0.0
        %5156 = vmatpush2.msra.mxu0 0.0
        %5157 = vmatprep.subr.mxu0 0.0
        %5158 = vmatpush2.msra.mxu0 0.0
        %5159 = vmatprep.subr.mxu0 0.0
        %5160 = vmatpush2.msra.mxu0 0.0
        %5161 = vmatprep.subr.mxu0 0.0
        %5162 = vmatpush2.msra.mxu0 0.0
        %5163 = vmatprep.subr.mxu0 0.0
        %5164 = vmatpush2.msra.mxu0 0.0
        %5165 = vmatprep.mubr.f32.mxu0 0.0
        %v5166 = vand.u32 %v4685, 4294901760
        %5167 = vmatmul.mubr.f32.gmra.mxu0 %v5166
        %v5168 = vpop.f32.mrf.mxu0
        %v5169 = vadd.f32 %v5094, %v5168
        %v5170 = vpop.f32.mrf.mxu0
        %5171 = vdwg.mxu0
        %5172 = vst [vmem:[%s542] sm:$0xff] %v5169
        %s5173 = sand.u32 %s364, 1
        %s5174 = scalar_lea.sflag [#allocation4], %s5173
        %s5175 = sand.u32 %s364, 1
        %s5176 = smul.addr %s5175, 8
        %s5177 = scalar_lea.vmem [#allocation8], %s5176
        // Predicated region
        $region93: #{tpu_custom_call.1} parent=79 // pred_check
          %p5178 = pneg %p374
        $region94: #{tpu_custom_call.1} parent=79 // pred_check_branch
          %5180 = sbr.rel (%p5178) target = $region96
        $region95: #{tpu_custom_call.1} parent=79 // pred_region
          %s5182 = ssub.s32 128, 128
          %5183 = vsyncadd %s5174, %s5182
          %s5184 = smul.addr %s31, 128
          %s5185 = scalar_lea.hbm %s15, %s5184
          %s5187 = sshll.u32 %s5177, 4
          %s5188 = int_to_ptr.vmem [resolvable:$true] %s5187
          %5190 = dma.vmem_to_hbm [thread:$0]  %s5188, 128, %s5185, %s5174
        $region96: #{tpu_custom_call.1} parent=79 // pred_fallthru
          _
      $region80: #{tpu_custom_call.1} parent=5 // pred_fallthru
        _
      %p5191 = scmp.le.s32.totalorder 2, %s26
      // Predicated region
      $region97: #{tpu_custom_call.1} parent=5 // pred_check
        %p5192 = pneg %p5191
      $region98: #{tpu_custom_call.1} parent=5 // pred_check_branch
        %5194 = sbr.rel (%p5192) target = $region100
      $region99: #{tpu_custom_call.1} parent=5 // pred_region
        %s5195 = ssub.s32 %s26, 2
        // Predicated region
        $region101: #{tpu_custom_call.1} parent=99 // pred_check
          %p5196 = pneg %p380
        $region102: #{tpu_custom_call.1} parent=99 // pred_check_branch
          %5198 = sbr.rel (%p5196) target = $region104
        $region103: #{tpu_custom_call.1} parent=99 // pred_region
          %s5199 = sand.u32 %s365, 1
          %s5200 = scalar_lea.sflag [#allocation4], %s5199
          %s5201 = sand.u32 %s365, 1
          %s5202 = smul.addr %s5201, 8
          %s5203 = scalar_lea.vmem [#allocation8], %s5202
          %5204 = dma.done %s5200, 128
        $region104: #{tpu_custom_call.1} parent=99 // pred_fallthru
          _
      $region100: #{tpu_custom_call.1} parent=5 // pred_fallthru
        _
    $region6: #{tpu_custom_call.1} parent=1 // loop_footer
      %s30 = sadd.s32 1, %s26
    $region7: #{tpu_custom_call.1} parent=1 // loop_footer_branch
      %25 = sbr.rel target = $region3
    $region8: #{tpu_custom_call.1} parent=1 // loop_exit
      _
    %5205 = vsyncpa [#allocation3], 1
    %s5206 = scalar_lea.sflag [#allocation3], 1
    %5207 = vsyncpa %s5206, 1
    %5208 = vsyncpa [#allocation6], 1
    %5209 = vsyncpa [#allocation4], 1
    %s5210 = scalar_lea.sflag [#allocation4], 1
    %5211 = vsyncpa %s5210, 1

</llo_original>
